<compile_context>
chip_gen: v7x
topology: tpu7x:2x2x1
jax: 0.10.0
libtpu: 0.0.40
codegen_flags: <defaults>
</compile_context>

<pallas_src>
import numpy as np

import jax
import jax.numpy as jnp
from jax.experimental import pallas as pl
from jax.experimental.pallas import tpu as pltpu

# ---------------------------------------------------------------- constants
IN_LEN = 30                  # conv input length
CONV_OUT_CH = 6              # conv out channels -> LSTM sequence length
CONV_K = 5
SEQ = CONV_OUT_CH            # 6
FEAT = IN_LEN - CONV_K + 1   # 26 = LSTM input_size
HID = 15                     # LSTM hidden size (real)
HP = 16                      # hidden size padded for aligned lane slices
GATE = 4 * HP                # padded gate width (64); gate blocks at 0/16/32/48
NUM_LAYERS = 5
FC1_OUT = 20
FC2_OUT = 5

MAX_TILE = 128               # max batch rows per grid step (multiple of 8)

# Packed gate-block order: [i, f, o, g]  (torch order is i, f, g, o).
# Blocks 0..2 (48 lanes) take sigmoid, block 3 (16 lanes) takes tanh.
_GATE_SRC = (0, 1, 3, 2)     # packed block p holds torch gate _GATE_SRC[p]


# ---------------------------------------------------------------- kernel
def fused_kernel(x_ref, h0_ref, c0_ref,
                 tpl_ref, w0bd_ref, b0_ref,
                 wihr_ref, brr_ref, whh_ref,
                 fc1w_ref, fc1b_ref, fc2w_ref, fc2b_ref,
                 o_ref):
    # ---- stage 1: Conv1d(k=5, no bias) + ReLU as one lane-dense Toeplitz matmul
    x = x_ref[...]                                                    # (Nt, 30)
    conv = jnp.dot(x, tpl_ref[...], preferred_element_type=jnp.float32)  # (Nt, 156)
    conv = jnp.maximum(conv, 0.0)
    # TODO(synk): nn.Dropout(p=0.5) is stochastic; implemented as identity (eval mode).

    def lstm_recurrence(xproj_list, h, c, whh):
        # xproj_list: SEQ tensors of (Nt, GATE) holding W_ih x_t + b (hoisted).
        # Only h @ W_hh remains inside the serial recurrence.
        hs = []
        for _t in range(SEQ):                                         # T=6, unrolled
            gates = xproj_list[_t] + jnp.dot(h, whh,
                                             preferred_element_type=jnp.float32)
            # gate blocks packed as [i | f | o | g]: one sigmoid over 48 lanes,
            # one tanh over 16 lanes.
            sig = jax.nn.sigmoid(gates[:, 0:3 * HP])
            i_g = sig[:, 0 * HP:1 * HP]
            f_g = sig[:, 1 * HP:2 * HP]
            o_g = sig[:, 2 * HP:3 * HP]
            g_g = jnp.tanh(gates[:, 3 * HP:4 * HP])
            c = f_g * c + i_g * g_g
            h = o_g * jnp.tanh(c)
            hs.append(h)
        return hs

    # ---- stage 2: LSTM layer 0.
    # Hoisted input projection: one matmul against a block-diagonal (156, 6*64)
    # W_ih (per-timestep bias pre-tiled and folded in here, outside the t loop).
    xproj0 = jnp.dot(conv, w0bd_ref[...],
                     preferred_element_type=jnp.float32) + b0_ref[...]  # (Nt, 384)
    hs = lstm_recurrence([xproj0[:, t * GATE:(t + 1) * GATE] for t in range(SEQ)],
                         h0_ref[0], c0_ref[0], whh_ref[0])

    # ---- stage 3: LSTM layers 1..4.
    # Hoisted input projection: stack the 6 timestep outputs along sublanes and
    # do one (6*Nt, 16) @ (16, 64) matmul per layer; slice back at Nt multiples.
    n_t = x.shape[0]
    for l in range(1, NUM_LAYERS):
        xcat = jnp.concatenate(hs, axis=0)                            # (6*Nt, 16)
        xproj = jnp.dot(xcat, wihr_ref[l - 1],
                        preferred_element_type=jnp.float32) + brr_ref[l - 1]
        xproj_list = [xproj[t * n_t:(t + 1) * n_t, :] for t in range(SEQ)]
        hs = lstm_recurrence(xproj_list, h0_ref[l], c0_ref[l], whh_ref[l])

    # ---- stage 4: t-major flatten (matches torch .reshape(-1, 90)) + FC head.
    # FC1 weight was remapped in init_params to the padded (6*16=96) layout,
    # with zero rows on the padded hidden lanes.
    y_flat = jnp.concatenate(hs, axis=1)                              # (Nt, 96)
    h1 = jnp.dot(y_flat, fc1w_ref[...],
                 preferred_element_type=jnp.float32) + fc1b_ref[...]
    h1 = jnp.maximum(h1, 0.0)
    out = jnp.dot(h1, fc2w_ref[...],
                  preferred_element_type=jnp.float32) + fc2b_ref[...]
    o_ref[...] = jnp.maximum(out, 0.0)                                # (Nt, 5)


# ---------------------------------------------------------------- wrapper
def _full_spec(shape):
    nd = len(shape)

    def imap(i, _nd=nd):
        return (0,) * _nd

    return pl.BlockSpec(shape, imap)


def _round_up(v, m):
    return ((v + m - 1) // m) * m


@jax.jit
def model_forward(x, params, h0, c0):
    # x: (N, 1, 30) PyTorch NCL layout; h0/c0: (5, N, 15).
    n = x.shape[0]
    tile = min(MAX_TILE, _round_up(n, 8))      # adaptive batch tile (static)
    n_pad = _round_up(n, tile)

    x2d = jnp.pad(x[:, 0, :].astype(jnp.float32), ((0, n_pad - n), (0, 0)))
    h0p = jnp.pad(h0.astype(jnp.float32), ((0, 0), (0, n_pad - n), (0, HP - HID)))
    c0p = jnp.pad(c0.astype(jnp.float32), ((0, 0), (0, n_pad - n), (0, HP - HID)))

    weights = (params["conv_tpl"], params["w0_bd"], params["b0_tiled"],
               params["wih_rest"], params["b_rest"], params["whh_all"],
               params["fc1_w"], params["fc1_b"], params["fc2_w"], params["fc2_b"])

    in_specs = [
        pl.BlockSpec((tile, IN_LEN), lambda i: (i, 0)),
        pl.BlockSpec((NUM_LAYERS, tile, HP), lambda i: (0, i, 0)),
        pl.BlockSpec((NUM_LAYERS, tile, HP), lambda i: (0, i, 0)),
    ] + [_full_spec(w.shape) for w in weights]

    out = pl.pallas_call(
        fused_kernel,
        out_shape=jax.ShapeDtypeStruct((n_pad, FC2_OUT), jnp.float32),
        grid_spec=pltpu.PrefetchScalarGridSpec(
            num_scalar_prefetch=0,
            grid=(n_pad // tile,),
            in_specs=in_specs,
            out_specs=pl.BlockSpec((tile, FC2_OUT), lambda i: (i, 0)),
        ),
        compiler_params=pltpu.CompilerParams(
            dimension_semantics=("parallel",),   # batch tiles split across TCs
        ),
    )(x2d, h0p, c0p, *weights)
    return out[:n]


# ---------------------------------------------------------------- params
def init_params(key):
    keys = jax.random.split(key, 32)
    ki = iter(keys)

    # ---- raw parameters in PyTorch layout ----
    conv_w = 0.2 * np.asarray(
        jax.random.normal(next(ki), (CONV_OUT_CH, CONV_K), dtype=jnp.float32))

    bound = 1.0 / float(np.sqrt(HID))
    lstm_raw = []
    for layer in range(NUM_LAYERS):
        in_sz = FEAT if layer == 0 else HID
        wih = np.asarray(jax.random.uniform(next(ki), (4 * HID, in_sz),
                                            jnp.float32, -bound, bound))
        whh = np.asarray(jax.random.uniform(next(ki), (4 * HID, HID),
                                            jnp.float32, -bound, bound))
        bih = np.asarray(jax.random.uniform(next(ki), (4 * HID,),
                                            jnp.float32, -bound, bound))
        bhh = np.asarray(jax.random.uniform(next(ki), (4 * HID,),
                                            jnp.float32, -bound, bound))
        lstm_raw.append((wih, whh, bih + bhh))    # PyTorch adds the two biases

    b1 = 1.0 / float(np.sqrt(HID * SEQ))
    fc1_w = 0.1 * np.asarray(
        jax.random.normal(next(ki), (FC1_OUT, HID * SEQ), dtype=jnp.float32))
    fc1_b = np.asarray(jax.random.uniform(next(ki), (FC1_OUT,),
                                          jnp.float32, -b1, b1))
    b2 = 1.0 / float(np.sqrt(FC1_OUT))
    fc2_w = 0.1 * np.asarray(
        jax.random.normal(next(ki), (FC2_OUT, FC1_OUT), dtype=jnp.float32))
    fc2_b = np.asarray(jax.random.uniform(next(ki), (FC2_OUT,),
                                          jnp.float32, -b2, b2))

    # ---- kernel-ready packing (done once, host side) ----
    def pad_gates(w):
        # (60, I) torch rows in i|f|g|o order -> (I, 64) cols packed as i|f|o|g,
        # each gate zero-padded from 15 to 16 lanes.
        wt = w.T
        out = np.zeros((wt.shape[0], GATE), np.float32)
        for p in range(4):
            src = _GATE_SRC[p]
            out[:, p * HP:p * HP + HID] = wt[:, src * HID:(src + 1) * HID]
        return out

    def pad_gate_bias(b):
        # (60,) -> (64,) packed as i|f|o|g with zeros on padded lanes.
        out = np.zeros((GATE,), np.float32)
        for p in range(4):
            src = _GATE_SRC[p]
            out[p * HP:p * HP + HID] = b[src * HID:(src + 1) * HID]
        return out

    # Conv1d as Toeplitz matmul: flat column index = channel*26 + position.
    tpl = np.zeros((IN_LEN, CONV_OUT_CH * FEAT), np.float32)
    for c in range(CONV_OUT_CH):
        for k in range(CONV_K):
            for j in range(FEAT):
                tpl[j + k, c * FEAT + j] = conv_w[c, k]

    # Layer 0: block-diagonal hoisted input projection (156, 6*64) + tiled bias.
    wih0_p = pad_gates(lstm_raw[0][0])                     # (26, 64)
    w0_bd = np.zeros((CONV_OUT_CH * FEAT, SEQ * GATE), np.float32)
    for t in range(SEQ):
        w0_bd[t * FEAT:(t + 1) * FEAT, t * GATE:(t + 1) * GATE] = wih0_p
    b0_tiled = np.tile(pad_gate_bias(lstm_raw[0][2]), SEQ).reshape(1, SEQ * GATE)

    # Layers 1..4: padded (16, 64) input weights + (1, 64) biases, stacked.
    wih_rest = np.zeros((NUM_LAYERS - 1, HP, GATE), np.float32)
    b_rest = np.zeros((NUM_LAYERS - 1, 1, GATE), np.float32)
    for l in range(1, NUM_LAYERS):
        wih_rest[l - 1, :HID, :] = pad_gates(lstm_raw[l][0])
        b_rest[l - 1, 0, :] = pad_gate_bias(lstm_raw[l][2])

    # All layers: padded (16, 64) recurrent weights, stacked.
    whh_all = np.zeros((NUM_LAYERS, HP, GATE), np.float32)
    for l in range(NUM_LAYERS):
        whh_all[l, :HID, :] = pad_gates(lstm_raw[l][1])

    # FC1 weight remapped to the padded t-major flatten layout (6*16 = 96 rows).
    fc1_wt = fc1_w.T.reshape(SEQ, HID, FC1_OUT)            # (6, 15, 20)
    fc1_w_pad = np.zeros((SEQ * HP, FC1_OUT), np.float32)
    for t in range(SEQ):
        fc1_w_pad[t * HP:t * HP + HID, :] = fc1_wt[t]

    return {
        "conv_tpl": jnp.asarray(tpl),                      # (30, 156)
        "w0_bd": jnp.asarray(w0_bd),                       # (156, 384)
        "b0_tiled": jnp.asarray(b0_tiled),                 # (1, 384)
        "wih_rest": jnp.asarray(wih_rest),                 # (4, 16, 64)
        "b_rest": jnp.asarray(b_rest),                     # (4, 1, 64)
        "whh_all": jnp.asarray(whh_all),                   # (5, 16, 64)
        "fc1_w": jnp.asarray(fc1_w_pad),                   # (96, 20)
        "fc1_b": jnp.asarray(fc1_b.reshape(1, FC1_OUT)),   # (1, 20)
        "fc2_w": jnp.asarray(fc2_w.T),                     # (20, 5)
        "fc2_b": jnp.asarray(fc2_b.reshape(1, FC2_OUT)),   # (1, 5)
    }


# ---------------------------------------------------------------- main
if __name__ == "__main__":
    key = jax.random.PRNGKey(0)
    k_x, k_p, k_h, k_c = jax.random.split(key, 4)

    batch = 2
    x = jax.random.normal(k_x, (batch, 1, IN_LEN), dtype=jnp.float32)   # (N, 1, 30)
    params = init_params(k_p)
    # torch.randn initial states are drawn inside forward() in PyTorch;
    # generated deterministically here instead and passed in.
    h0 = jax.random.normal(k_h, (NUM_LAYERS, batch, HID), dtype=jnp.float32)
    c0 = jax.random.normal(k_c, (NUM_LAYERS, batch, HID), dtype=jnp.float32)

    out = jax.block_until_ready(model_forward(x, params, h0, c0))
    assert out.shape == (batch, FC2_OUT), out.shape
    assert bool(jnp.all(jnp.isfinite(out)))
    print("KERNEL_OK")
</pallas_src>

<mosaic_0001>
module attributes {stable_mosaic.version = 11 : i64} {
  func.func @fused_kernel(%arg0: i32, %arg1: memref<8x30xf32, #tpu.memory_space<vmem>>, %arg2: memref<5x8x16xf32, #tpu.memory_space<vmem>>, %arg3: memref<5x8x16xf32, #tpu.memory_space<vmem>>, %arg4: memref<30x156xf32, #tpu.memory_space<vmem>>, %arg5: memref<156x384xf32, #tpu.memory_space<vmem>>, %arg6: memref<1x384xf32, #tpu.memory_space<vmem>>, %arg7: memref<4x16x64xf32, #tpu.memory_space<vmem>>, %arg8: memref<4x1x64xf32, #tpu.memory_space<vmem>>, %arg9: memref<5x16x64xf32, #tpu.memory_space<vmem>>, %arg10: memref<96x20xf32, #tpu.memory_space<vmem>>, %arg11: memref<1x20xf32, #tpu.memory_space<vmem>>, %arg12: memref<20x5xf32, #tpu.memory_space<vmem>>, %arg13: memref<1x5xf32, #tpu.memory_space<vmem>>, %arg14: memref<8x5xf32, #tpu.memory_space<vmem>>) attributes {dimension_semantics = [#tpu.dimension_semantics<parallel>], iteration_bounds = array<i64: 1>, scalar_prefetch = 0 : i64, scratch_operands = 0 : i64, tpu.core_type = #tpu.core_type<tc>, window_params = [{transform_indices = @transform_0, window_bounds = array<i64: 8, 30>}, {transform_indices = @transform_1, window_bounds = array<i64: 5, 8, 16>}, {transform_indices = @transform_2, window_bounds = array<i64: 5, 8, 16>}, {pipeline_mode = #tpu.pipeline_mode<synchronous>, transform_indices = @transform_3, window_bounds = array<i64: 30, 156>}, {pipeline_mode = #tpu.pipeline_mode<synchronous>, transform_indices = @transform_4, window_bounds = array<i64: 156, 384>}, {pipeline_mode = #tpu.pipeline_mode<synchronous>, transform_indices = @transform_5, window_bounds = array<i64: 1, 384>}, {pipeline_mode = #tpu.pipeline_mode<synchronous>, transform_indices = @transform_6, window_bounds = array<i64: 4, 16, 64>}, {pipeline_mode = #tpu.pipeline_mode<synchronous>, transform_indices = @transform_7, window_bounds = array<i64: 4, 1, 64>}, {pipeline_mode = #tpu.pipeline_mode<synchronous>, transform_indices = @transform_8, window_bounds = array<i64: 5, 16, 64>}, {pipeline_mode = #tpu.pipeline_mode<synchronous>, transform_indices = @transform_9, window_bounds = array<i64: 96, 20>}, {pipeline_mode = #tpu.pipeline_mode<synchronous>, transform_indices = @transform_10, window_bounds = array<i64: 1, 20>}, {pipeline_mode = #tpu.pipeline_mode<synchronous>, transform_indices = @transform_11, window_bounds = array<i64: 20, 5>}, {pipeline_mode = #tpu.pipeline_mode<synchronous>, transform_indices = @transform_12, window_bounds = array<i64: 1, 5>}, {transform_indices = @transform_13, window_bounds = array<i64: 8, 5>}]} {
    %c0 = arith.constant 0 : index
    %c0_0 = arith.constant 0 : index
    %0 = vector.load %arg1[%c0, %c0_0] : memref<8x30xf32, #tpu.memory_space<vmem>>, vector<8x30xf32>
    %c0_1 = arith.constant 0 : index
    %c0_2 = arith.constant 0 : index
    %1 = vector.load %arg4[%c0_1, %c0_2] : memref<30x156xf32, #tpu.memory_space<vmem>>, vector<30x156xf32>
    %cst = arith.constant dense<0.000000e+00> : vector<8x156xf32>
    %2 = tpu.matmul %0, %1, %cst {dimension_numbers = #tpu.dot_dimension_numbers<[1], [0], [0], [1], [0, 0, 1, 1], [], []>} : vector<8x30xf32>, vector<30x156xf32>, vector<8x156xf32> -> vector<8x156xf32>
    %cst_3 = arith.constant 0.000000e+00 : f32
    %3 = vector.broadcast %cst_3 : f32 to vector<8x156xf32>
    %4 = arith.maximumf %2, %3 : vector<8x156xf32>
    %c0_4 = arith.constant 0 : index
    %c0_5 = arith.constant 0 : index
    %5 = vector.load %arg5[%c0_4, %c0_5] : memref<156x384xf32, #tpu.memory_space<vmem>>, vector<156x384xf32>
    %cst_6 = arith.constant dense<0.000000e+00> : vector<8x384xf32>
    %6 = tpu.matmul %4, %5, %cst_6 {dimension_numbers = #tpu.dot_dimension_numbers<[1], [0], [0], [1], [0, 0, 1, 1], [], []>} : vector<8x156xf32>, vector<156x384xf32>, vector<8x384xf32> -> vector<8x384xf32>
    %c0_7 = arith.constant 0 : index
    %c0_8 = arith.constant 0 : index
    %7 = vector.load %arg6[%c0_7, %c0_8] : memref<1x384xf32, #tpu.memory_space<vmem>>, vector<1x384xf32>
    %8 = vector.broadcast %7 : vector<1x384xf32> to vector<8x384xf32>
    %9 = arith.addf %6, %8 : vector<8x384xf32>
    %10 = vector.extract_strided_slice %9 {offsets = [0, 0], sizes = [8, 64], strides = [1, 1]} : vector<8x384xf32> to vector<8x64xf32>
    %11 = vector.extract_strided_slice %9 {offsets = [0, 64], sizes = [8, 64], strides = [1, 1]} : vector<8x384xf32> to vector<8x64xf32>
    %12 = vector.extract_strided_slice %9 {offsets = [0, 128], sizes = [8, 64], strides = [1, 1]} : vector<8x384xf32> to vector<8x64xf32>
    %13 = vector.extract_strided_slice %9 {offsets = [0, 192], sizes = [8, 64], strides = [1, 1]} : vector<8x384xf32> to vector<8x64xf32>
    %14 = vector.extract_strided_slice %9 {offsets = [0, 256], sizes = [8, 64], strides = [1, 1]} : vector<8x384xf32> to vector<8x64xf32>
    %15 = vector.extract_strided_slice %9 {offsets = [0, 320], sizes = [8, 64], strides = [1, 1]} : vector<8x384xf32> to vector<8x64xf32>
    %c0_9 = arith.constant 0 : index
    %c0_10 = arith.constant 0 : index
    %c0_11 = arith.constant 0 : index
    %16 = vector.load %arg2[%c0_9, %c0_10, %c0_11] : memref<5x8x16xf32, #tpu.memory_space<vmem>>, vector<1x8x16xf32>
    %17 = vector.shape_cast %16 : vector<1x8x16xf32> to vector<8x16xf32>
    %c0_12 = arith.constant 0 : index
    %c0_13 = arith.constant 0 : index
    %c0_14 = arith.constant 0 : index
    %18 = vector.load %arg3[%c0_12, %c0_13, %c0_14] : memref<5x8x16xf32, #tpu.memory_space<vmem>>, vector<1x8x16xf32>
    %19 = vector.shape_cast %18 : vector<1x8x16xf32> to vector<8x16xf32>
    %c0_15 = arith.constant 0 : index
    %c0_16 = arith.constant 0 : index
    %c0_17 = arith.constant 0 : index
    %20 = vector.load %arg9[%c0_15, %c0_16, %c0_17] : memref<5x16x64xf32, #tpu.memory_space<vmem>>, vector<1x16x64xf32>
    %21 = vector.shape_cast %20 : vector<1x16x64xf32> to vector<16x64xf32>
    %cst_18 = arith.constant dense<0.000000e+00> : vector<8x64xf32>
    %22 = tpu.matmul %17, %21, %cst_18 {dimension_numbers = #tpu.dot_dimension_numbers<[1], [0], [0], [1], [0, 0, 1, 1], [], []>} : vector<8x16xf32>, vector<16x64xf32>, vector<8x64xf32> -> vector<8x64xf32>
    %23 = arith.addf %10, %22 : vector<8x64xf32>
    %24 = vector.extract_strided_slice %23 {offsets = [0, 0], sizes = [8, 48], strides = [1, 1]} : vector<8x64xf32> to vector<8x48xf32>
    %25 = arith.negf %24 : vector<8x48xf32>
    %26 = math.exp %25 : vector<8x48xf32>
    %cst_19 = arith.constant 1.000000e+00 : f32
    %27 = vector.broadcast %cst_19 : f32 to vector<8x48xf32>
    %28 = arith.addf %27, %26 : vector<8x48xf32>
    %29 = arith.divf %27, %28 : vector<8x48xf32>
    %30 = vector.extract_strided_slice %29 {offsets = [0, 0], sizes = [8, 16], strides = [1, 1]} : vector<8x48xf32> to vector<8x16xf32>
    %31 = vector.extract_strided_slice %29 {offsets = [0, 16], sizes = [8, 16], strides = [1, 1]} : vector<8x48xf32> to vector<8x16xf32>
    %32 = vector.extract_strided_slice %29 {offsets = [0, 32], sizes = [8, 16], strides = [1, 1]} : vector<8x48xf32> to vector<8x16xf32>
    %33 = vector.extract_strided_slice %23 {offsets = [0, 48], sizes = [8, 16], strides = [1, 1]} : vector<8x64xf32> to vector<8x16xf32>
    %34 = math.tanh %33 : vector<8x16xf32>
    %35 = arith.mulf %31, %19 : vector<8x16xf32>
    %36 = arith.mulf %30, %34 : vector<8x16xf32>
    %37 = arith.addf %35, %36 : vector<8x16xf32>
    %38 = math.tanh %37 : vector<8x16xf32>
    %39 = arith.mulf %32, %38 : vector<8x16xf32>
    %cst_20 = arith.constant dense<0.000000e+00> : vector<8x64xf32>
    %40 = tpu.matmul %39, %21, %cst_20 {dimension_numbers = #tpu.dot_dimension_numbers<[1], [0], [0], [1], [0, 0, 1, 1], [], []>} : vector<8x16xf32>, vector<16x64xf32>, vector<8x64xf32> -> vector<8x64xf32>
    %41 = arith.addf %11, %40 : vector<8x64xf32>
    %42 = vector.extract_strided_slice %41 {offsets = [0, 0], sizes = [8, 48], strides = [1, 1]} : vector<8x64xf32> to vector<8x48xf32>
    %43 = arith.negf %42 : vector<8x48xf32>
    %44 = math.exp %43 : vector<8x48xf32>
    %cst_21 = arith.constant 1.000000e+00 : f32
    %45 = vector.broadcast %cst_21 : f32 to vector<8x48xf32>
    %46 = arith.addf %45, %44 : vector<8x48xf32>
    %47 = arith.divf %45, %46 : vector<8x48xf32>
    %48 = vector.extract_strided_slice %47 {offsets = [0, 0], sizes = [8, 16], strides = [1, 1]} : vector<8x48xf32> to vector<8x16xf32>
    %49 = vector.extract_strided_slice %47 {offsets = [0, 16], sizes = [8, 16], strides = [1, 1]} : vector<8x48xf32> to vector<8x16xf32>
    %50 = vector.extract_strided_slice %47 {offsets = [0, 32], sizes = [8, 16], strides = [1, 1]} : vector<8x48xf32> to vector<8x16xf32>
    %51 = vector.extract_strided_slice %41 {offsets = [0, 48], sizes = [8, 16], strides = [1, 1]} : vector<8x64xf32> to vector<8x16xf32>
    %52 = math.tanh %51 : vector<8x16xf32>
    %53 = arith.mulf %49, %37 : vector<8x16xf32>
    %54 = arith.mulf %48, %52 : vector<8x16xf32>
    %55 = arith.addf %53, %54 : vector<8x16xf32>
    %56 = math.tanh %55 : vector<8x16xf32>
    %57 = arith.mulf %50, %56 : vector<8x16xf32>
    %cst_22 = arith.constant dense<0.000000e+00> : vector<8x64xf32>
    %58 = tpu.matmul %57, %21, %cst_22 {dimension_numbers = #tpu.dot_dimension_numbers<[1], [0], [0], [1], [0, 0, 1, 1], [], []>} : vector<8x16xf32>, vector<16x64xf32>, vector<8x64xf32> -> vector<8x64xf32>
    %59 = arith.addf %12, %58 : vector<8x64xf32>
    %60 = vector.extract_strided_slice %59 {offsets = [0, 0], sizes = [8, 48], strides = [1, 1]} : vector<8x64xf32> to vector<8x48xf32>
    %61 = arith.negf %60 : vector<8x48xf32>
    %62 = math.exp %61 : vector<8x48xf32>
    %cst_23 = arith.constant 1.000000e+00 : f32
    %63 = vector.broadcast %cst_23 : f32 to vector<8x48xf32>
    %64 = arith.addf %63, %62 : vector<8x48xf32>
    %65 = arith.divf %63, %64 : vector<8x48xf32>
    %66 = vector.extract_strided_slice %65 {offsets = [0, 0], sizes = [8, 16], strides = [1, 1]} : vector<8x48xf32> to vector<8x16xf32>
    %67 = vector.extract_strided_slice %65 {offsets = [0, 16], sizes = [8, 16], strides = [1, 1]} : vector<8x48xf32> to vector<8x16xf32>
    %68 = vector.extract_strided_slice %65 {offsets = [0, 32], sizes = [8, 16], strides = [1, 1]} : vector<8x48xf32> to vector<8x16xf32>
    %69 = vector.extract_strided_slice %59 {offsets = [0, 48], sizes = [8, 16], strides = [1, 1]} : vector<8x64xf32> to vector<8x16xf32>
    %70 = math.tanh %69 : vector<8x16xf32>
    %71 = arith.mulf %67, %55 : vector<8x16xf32>
    %72 = arith.mulf %66, %70 : vector<8x16xf32>
    %73 = arith.addf %71, %72 : vector<8x16xf32>
    %74 = math.tanh %73 : vector<8x16xf32>
    %75 = arith.mulf %68, %74 : vector<8x16xf32>
    %cst_24 = arith.constant dense<0.000000e+00> : vector<8x64xf32>
    %76 = tpu.matmul %75, %21, %cst_24 {dimension_numbers = #tpu.dot_dimension_numbers<[1], [0], [0], [1], [0, 0, 1, 1], [], []>} : vector<8x16xf32>, vector<16x64xf32>, vector<8x64xf32> -> vector<8x64xf32>
    %77 = arith.addf %13, %76 : vector<8x64xf32>
    %78 = vector.extract_strided_slice %77 {offsets = [0, 0], sizes = [8, 48], strides = [1, 1]} : vector<8x64xf32> to vector<8x48xf32>
    %79 = arith.negf %78 : vector<8x48xf32>
    %80 = math.exp %79 : vector<8x48xf32>
    %cst_25 = arith.constant 1.000000e+00 : f32
    %81 = vector.broadcast %cst_25 : f32 to vector<8x48xf32>
    %82 = arith.addf %81, %80 : vector<8x48xf32>
    %83 = arith.divf %81, %82 : vector<8x48xf32>
    %84 = vector.extract_strided_slice %83 {offsets = [0, 0], sizes = [8, 16], strides = [1, 1]} : vector<8x48xf32> to vector<8x16xf32>
    %85 = vector.extract_strided_slice %83 {offsets = [0, 16], sizes = [8, 16], strides = [1, 1]} : vector<8x48xf32> to vector<8x16xf32>
    %86 = vector.extract_strided_slice %83 {offsets = [0, 32], sizes = [8, 16], strides = [1, 1]} : vector<8x48xf32> to vector<8x16xf32>
    %87 = vector.extract_strided_slice %77 {offsets = [0, 48], sizes = [8, 16], strides = [1, 1]} : vector<8x64xf32> to vector<8x16xf32>
    %88 = math.tanh %87 : vector<8x16xf32>
    %89 = arith.mulf %85, %73 : vector<8x16xf32>
    %90 = arith.mulf %84, %88 : vector<8x16xf32>
    %91 = arith.addf %89, %90 : vector<8x16xf32>
    %92 = math.tanh %91 : vector<8x16xf32>
    %93 = arith.mulf %86, %92 : vector<8x16xf32>
    %cst_26 = arith.constant dense<0.000000e+00> : vector<8x64xf32>
    %94 = tpu.matmul %93, %21, %cst_26 {dimension_numbers = #tpu.dot_dimension_numbers<[1], [0], [0], [1], [0, 0, 1, 1], [], []>} : vector<8x16xf32>, vector<16x64xf32>, vector<8x64xf32> -> vector<8x64xf32>
    %95 = arith.addf %14, %94 : vector<8x64xf32>
    %96 = vector.extract_strided_slice %95 {offsets = [0, 0], sizes = [8, 48], strides = [1, 1]} : vector<8x64xf32> to vector<8x48xf32>
    %97 = arith.negf %96 : vector<8x48xf32>
    %98 = math.exp %97 : vector<8x48xf32>
    %cst_27 = arith.constant 1.000000e+00 : f32
    %99 = vector.broadcast %cst_27 : f32 to vector<8x48xf32>
    %100 = arith.addf %99, %98 : vector<8x48xf32>
    %101 = arith.divf %99, %100 : vector<8x48xf32>
    %102 = vector.extract_strided_slice %101 {offsets = [0, 0], sizes = [8, 16], strides = [1, 1]} : vector<8x48xf32> to vector<8x16xf32>
    %103 = vector.extract_strided_slice %101 {offsets = [0, 16], sizes = [8, 16], strides = [1, 1]} : vector<8x48xf32> to vector<8x16xf32>
    %104 = vector.extract_strided_slice %101 {offsets = [0, 32], sizes = [8, 16], strides = [1, 1]} : vector<8x48xf32> to vector<8x16xf32>
    %105 = vector.extract_strided_slice %95 {offsets = [0, 48], sizes = [8, 16], strides = [1, 1]} : vector<8x64xf32> to vector<8x16xf32>
    %106 = math.tanh %105 : vector<8x16xf32>
    %107 = arith.mulf %103, %91 : vector<8x16xf32>
    %108 = arith.mulf %102, %106 : vector<8x16xf32>
    %109 = arith.addf %107, %108 : vector<8x16xf32>
    %110 = math.tanh %109 : vector<8x16xf32>
    %111 = arith.mulf %104, %110 : vector<8x16xf32>
    %cst_28 = arith.constant dense<0.000000e+00> : vector<8x64xf32>
    %112 = tpu.matmul %111, %21, %cst_28 {dimension_numbers = #tpu.dot_dimension_numbers<[1], [0], [0], [1], [0, 0, 1, 1], [], []>} : vector<8x16xf32>, vector<16x64xf32>, vector<8x64xf32> -> vector<8x64xf32>
    %113 = arith.addf %15, %112 : vector<8x64xf32>
    %114 = vector.extract_strided_slice %113 {offsets = [0, 0], sizes = [8, 48], strides = [1, 1]} : vector<8x64xf32> to vector<8x48xf32>
    %115 = arith.negf %114 : vector<8x48xf32>
    %116 = math.exp %115 : vector<8x48xf32>
    %cst_29 = arith.constant 1.000000e+00 : f32
    %117 = vector.broadcast %cst_29 : f32 to vector<8x48xf32>
    %118 = arith.addf %117, %116 : vector<8x48xf32>
    %119 = arith.divf %117, %118 : vector<8x48xf32>
    %120 = vector.extract_strided_slice %119 {offsets = [0, 0], sizes = [8, 16], strides = [1, 1]} : vector<8x48xf32> to vector<8x16xf32>
    %121 = vector.extract_strided_slice %119 {offsets = [0, 16], sizes = [8, 16], strides = [1, 1]} : vector<8x48xf32> to vector<8x16xf32>
    %122 = vector.extract_strided_slice %119 {offsets = [0, 32], sizes = [8, 16], strides = [1, 1]} : vector<8x48xf32> to vector<8x16xf32>
    %123 = vector.extract_strided_slice %113 {offsets = [0, 48], sizes = [8, 16], strides = [1, 1]} : vector<8x64xf32> to vector<8x16xf32>
    %124 = math.tanh %123 : vector<8x16xf32>
    %125 = arith.mulf %121, %109 : vector<8x16xf32>
    %126 = arith.mulf %120, %124 : vector<8x16xf32>
    %127 = arith.addf %125, %126 : vector<8x16xf32>
    %128 = math.tanh %127 : vector<8x16xf32>
    %129 = arith.mulf %122, %128 : vector<8x16xf32>
    %130 = tpu.concatenate %39, %57, %75, %93, %111, %129 in 0 : vector<8x16xf32>, vector<8x16xf32>, vector<8x16xf32>, vector<8x16xf32>, vector<8x16xf32>, vector<8x16xf32> -> vector<48x16xf32>
    %c0_30 = arith.constant 0 : index
    %c0_31 = arith.constant 0 : index
    %c0_32 = arith.constant 0 : index
    %131 = vector.load %arg7[%c0_30, %c0_31, %c0_32] : memref<4x16x64xf32, #tpu.memory_space<vmem>>, vector<1x16x64xf32>
    %132 = vector.shape_cast %131 : vector<1x16x64xf32> to vector<16x64xf32>
    %cst_33 = arith.constant dense<0.000000e+00> : vector<48x64xf32>
    %133 = tpu.matmul %130, %132, %cst_33 {dimension_numbers = #tpu.dot_dimension_numbers<[1], [0], [0], [1], [0, 0, 1, 1], [], []>} : vector<48x16xf32>, vector<16x64xf32>, vector<48x64xf32> -> vector<48x64xf32>
    %c0_34 = arith.constant 0 : index
    %c0_35 = arith.constant 0 : index
    %c0_36 = arith.constant 0 : index
    %134 = vector.load %arg8[%c0_34, %c0_35, %c0_36] : memref<4x1x64xf32, #tpu.memory_space<vmem>>, vector<1x1x64xf32>
    %135 = vector.shape_cast %134 : vector<1x1x64xf32> to vector<1x64xf32>
    %136 = vector.broadcast %135 : vector<1x64xf32> to vector<48x64xf32>
    %137 = arith.addf %133, %136 : vector<48x64xf32>
    %138 = vector.extract_strided_slice %137 {offsets = [0, 0], sizes = [8, 64], strides = [1, 1]} : vector<48x64xf32> to vector<8x64xf32>
    %139 = vector.extract_strided_slice %137 {offsets = [8, 0], sizes = [8, 64], strides = [1, 1]} : vector<48x64xf32> to vector<8x64xf32>
    %140 = vector.extract_strided_slice %137 {offsets = [16, 0], sizes = [8, 64], strides = [1, 1]} : vector<48x64xf32> to vector<8x64xf32>
    %141 = vector.extract_strided_slice %137 {offsets = [24, 0], sizes = [8, 64], strides = [1, 1]} : vector<48x64xf32> to vector<8x64xf32>
    %142 = vector.extract_strided_slice %137 {offsets = [32, 0], sizes = [8, 64], strides = [1, 1]} : vector<48x64xf32> to vector<8x64xf32>
    %143 = vector.extract_strided_slice %137 {offsets = [40, 0], sizes = [8, 64], strides = [1, 1]} : vector<48x64xf32> to vector<8x64xf32>
    %c1 = arith.constant 1 : index
    %c0_37 = arith.constant 0 : index
    %c0_38 = arith.constant 0 : index
    %144 = vector.load %arg2[%c1, %c0_37, %c0_38] : memref<5x8x16xf32, #tpu.memory_space<vmem>>, vector<1x8x16xf32>
    %145 = vector.shape_cast %144 : vector<1x8x16xf32> to vector<8x16xf32>
    %c1_39 = arith.constant 1 : index
    %c0_40 = arith.constant 0 : index
    %c0_41 = arith.constant 0 : index
    %146 = vector.load %arg3[%c1_39, %c0_40, %c0_41] : memref<5x8x16xf32, #tpu.memory_space<vmem>>, vector<1x8x16xf32>
    %147 = vector.shape_cast %146 : vector<1x8x16xf32> to vector<8x16xf32>
    %c1_42 = arith.constant 1 : index
    %c0_43 = arith.constant 0 : index
    %c0_44 = arith.constant 0 : index
    %148 = vector.load %arg9[%c1_42, %c0_43, %c0_44] : memref<5x16x64xf32, #tpu.memory_space<vmem>>, vector<1x16x64xf32>
    %149 = vector.shape_cast %148 : vector<1x16x64xf32> to vector<16x64xf32>
    %cst_45 = arith.constant dense<0.000000e+00> : vector<8x64xf32>
    %150 = tpu.matmul %145, %149, %cst_45 {dimension_numbers = #tpu.dot_dimension_numbers<[1], [0], [0], [1], [0, 0, 1, 1], [], []>} : vector<8x16xf32>, vector<16x64xf32>, vector<8x64xf32> -> vector<8x64xf32>
    %151 = arith.addf %138, %150 : vector<8x64xf32>
    %152 = vector.extract_strided_slice %151 {offsets = [0, 0], sizes = [8, 48], strides = [1, 1]} : vector<8x64xf32> to vector<8x48xf32>
    %153 = arith.negf %152 : vector<8x48xf32>
    %154 = math.exp %153 : vector<8x48xf32>
    %cst_46 = arith.constant 1.000000e+00 : f32
    %155 = vector.broadcast %cst_46 : f32 to vector<8x48xf32>
    %156 = arith.addf %155, %154 : vector<8x48xf32>
    %157 = arith.divf %155, %156 : vector<8x48xf32>
    %158 = vector.extract_strided_slice %157 {offsets = [0, 0], sizes = [8, 16], strides = [1, 1]} : vector<8x48xf32> to vector<8x16xf32>
    %159 = vector.extract_strided_slice %157 {offsets = [0, 16], sizes = [8, 16], strides = [1, 1]} : vector<8x48xf32> to vector<8x16xf32>
    %160 = vector.extract_strided_slice %157 {offsets = [0, 32], sizes = [8, 16], strides = [1, 1]} : vector<8x48xf32> to vector<8x16xf32>
    %161 = vector.extract_strided_slice %151 {offsets = [0, 48], sizes = [8, 16], strides = [1, 1]} : vector<8x64xf32> to vector<8x16xf32>
    %162 = math.tanh %161 : vector<8x16xf32>
    %163 = arith.mulf %159, %147 : vector<8x16xf32>
    %164 = arith.mulf %158, %162 : vector<8x16xf32>
    %165 = arith.addf %163, %164 : vector<8x16xf32>
    %166 = math.tanh %165 : vector<8x16xf32>
    %167 = arith.mulf %160, %166 : vector<8x16xf32>
    %cst_47 = arith.constant dense<0.000000e+00> : vector<8x64xf32>
    %168 = tpu.matmul %167, %149, %cst_47 {dimension_numbers = #tpu.dot_dimension_numbers<[1], [0], [0], [1], [0, 0, 1, 1], [], []>} : vector<8x16xf32>, vector<16x64xf32>, vector<8x64xf32> -> vector<8x64xf32>
    %169 = arith.addf %139, %168 : vector<8x64xf32>
    %170 = vector.extract_strided_slice %169 {offsets = [0, 0], sizes = [8, 48], strides = [1, 1]} : vector<8x64xf32> to vector<8x48xf32>
    %171 = arith.negf %170 : vector<8x48xf32>
    %172 = math.exp %171 : vector<8x48xf32>
    %cst_48 = arith.constant 1.000000e+00 : f32
    %173 = vector.broadcast %cst_48 : f32 to vector<8x48xf32>
    %174 = arith.addf %173, %172 : vector<8x48xf32>
    %175 = arith.divf %173, %174 : vector<8x48xf32>
    %176 = vector.extract_strided_slice %175 {offsets = [0, 0], sizes = [8, 16], strides = [1, 1]} : vector<8x48xf32> to vector<8x16xf32>
    %177 = vector.extract_strided_slice %175 {offsets = [0, 16], sizes = [8, 16], strides = [1, 1]} : vector<8x48xf32> to vector<8x16xf32>
    %178 = vector.extract_strided_slice %175 {offsets = [0, 32], sizes = [8, 16], strides = [1, 1]} : vector<8x48xf32> to vector<8x16xf32>
    %179 = vector.extract_strided_slice %169 {offsets = [0, 48], sizes = [8, 16], strides = [1, 1]} : vector<8x64xf32> to vector<8x16xf32>
    %180 = math.tanh %179 : vector<8x16xf32>
    %181 = arith.mulf %177, %165 : vector<8x16xf32>
    %182 = arith.mulf %176, %180 : vector<8x16xf32>
    %183 = arith.addf %181, %182 : vector<8x16xf32>
    %184 = math.tanh %183 : vector<8x16xf32>
    %185 = arith.mulf %178, %184 : vector<8x16xf32>
    %cst_49 = arith.constant dense<0.000000e+00> : vector<8x64xf32>
    %186 = tpu.matmul %185, %149, %cst_49 {dimension_numbers = #tpu.dot_dimension_numbers<[1], [0], [0], [1], [0, 0, 1, 1], [], []>} : vector<8x16xf32>, vector<16x64xf32>, vector<8x64xf32> -> vector<8x64xf32>
    %187 = arith.addf %140, %186 : vector<8x64xf32>
    %188 = vector.extract_strided_slice %187 {offsets = [0, 0], sizes = [8, 48], strides = [1, 1]} : vector<8x64xf32> to vector<8x48xf32>
    %189 = arith.negf %188 : vector<8x48xf32>
    %190 = math.exp %189 : vector<8x48xf32>
    %cst_50 = arith.constant 1.000000e+00 : f32
    %191 = vector.broadcast %cst_50 : f32 to vector<8x48xf32>
    %192 = arith.addf %191, %190 : vector<8x48xf32>
    %193 = arith.divf %191, %192 : vector<8x48xf32>
    %194 = vector.extract_strided_slice %193 {offsets = [0, 0], sizes = [8, 16], strides = [1, 1]} : vector<8x48xf32> to vector<8x16xf32>
    %195 = vector.extract_strided_slice %193 {offsets = [0, 16], sizes = [8, 16], strides = [1, 1]} : vector<8x48xf32> to vector<8x16xf32>
    %196 = vector.extract_strided_slice %193 {offsets = [0, 32], sizes = [8, 16], strides = [1, 1]} : vector<8x48xf32> to vector<8x16xf32>
    %197 = vector.extract_strided_slice %187 {offsets = [0, 48], sizes = [8, 16], strides = [1, 1]} : vector<8x64xf32> to vector<8x16xf32>
    %198 = math.tanh %197 : vector<8x16xf32>
    %199 = arith.mulf %195, %183 : vector<8x16xf32>
    %200 = arith.mulf %194, %198 : vector<8x16xf32>
    %201 = arith.addf %199, %200 : vector<8x16xf32>
    %202 = math.tanh %201 : vector<8x16xf32>
    %203 = arith.mulf %196, %202 : vector<8x16xf32>
    %cst_51 = arith.constant dense<0.000000e+00> : vector<8x64xf32>
    %204 = tpu.matmul %203, %149, %cst_51 {dimension_numbers = #tpu.dot_dimension_numbers<[1], [0], [0], [1], [0, 0, 1, 1], [], []>} : vector<8x16xf32>, vector<16x64xf32>, vector<8x64xf32> -> vector<8x64xf32>
    %205 = arith.addf %141, %204 : vector<8x64xf32>
    %206 = vector.extract_strided_slice %205 {offsets = [0, 0], sizes = [8, 48], strides = [1, 1]} : vector<8x64xf32> to vector<8x48xf32>
    %207 = arith.negf %206 : vector<8x48xf32>
    %208 = math.exp %207 : vector<8x48xf32>
    %cst_52 = arith.constant 1.000000e+00 : f32
    %209 = vector.broadcast %cst_52 : f32 to vector<8x48xf32>
    %210 = arith.addf %209, %208 : vector<8x48xf32>
    %211 = arith.divf %209, %210 : vector<8x48xf32>
    %212 = vector.extract_strided_slice %211 {offsets = [0, 0], sizes = [8, 16], strides = [1, 1]} : vector<8x48xf32> to vector<8x16xf32>
    %213 = vector.extract_strided_slice %211 {offsets = [0, 16], sizes = [8, 16], strides = [1, 1]} : vector<8x48xf32> to vector<8x16xf32>
    %214 = vector.extract_strided_slice %211 {offsets = [0, 32], sizes = [8, 16], strides = [1, 1]} : vector<8x48xf32> to vector<8x16xf32>
    %215 = vector.extract_strided_slice %205 {offsets = [0, 48], sizes = [8, 16], strides = [1, 1]} : vector<8x64xf32> to vector<8x16xf32>
    %216 = math.tanh %215 : vector<8x16xf32>
    %217 = arith.mulf %213, %201 : vector<8x16xf32>
    %218 = arith.mulf %212, %216 : vector<8x16xf32>
    %219 = arith.addf %217, %218 : vector<8x16xf32>
    %220 = math.tanh %219 : vector<8x16xf32>
    %221 = arith.mulf %214, %220 : vector<8x16xf32>
    %cst_53 = arith.constant dense<0.000000e+00> : vector<8x64xf32>
    %222 = tpu.matmul %221, %149, %cst_53 {dimension_numbers = #tpu.dot_dimension_numbers<[1], [0], [0], [1], [0, 0, 1, 1], [], []>} : vector<8x16xf32>, vector<16x64xf32>, vector<8x64xf32> -> vector<8x64xf32>
    %223 = arith.addf %142, %222 : vector<8x64xf32>
    %224 = vector.extract_strided_slice %223 {offsets = [0, 0], sizes = [8, 48], strides = [1, 1]} : vector<8x64xf32> to vector<8x48xf32>
    %225 = arith.negf %224 : vector<8x48xf32>
    %226 = math.exp %225 : vector<8x48xf32>
    %cst_54 = arith.constant 1.000000e+00 : f32
    %227 = vector.broadcast %cst_54 : f32 to vector<8x48xf32>
    %228 = arith.addf %227, %226 : vector<8x48xf32>
    %229 = arith.divf %227, %228 : vector<8x48xf32>
    %230 = vector.extract_strided_slice %229 {offsets = [0, 0], sizes = [8, 16], strides = [1, 1]} : vector<8x48xf32> to vector<8x16xf32>
    %231 = vector.extract_strided_slice %229 {offsets = [0, 16], sizes = [8, 16], strides = [1, 1]} : vector<8x48xf32> to vector<8x16xf32>
    %232 = vector.extract_strided_slice %229 {offsets = [0, 32], sizes = [8, 16], strides = [1, 1]} : vector<8x48xf32> to vector<8x16xf32>
    %233 = vector.extract_strided_slice %223 {offsets = [0, 48], sizes = [8, 16], strides = [1, 1]} : vector<8x64xf32> to vector<8x16xf32>
    %234 = math.tanh %233 : vector<8x16xf32>
    %235 = arith.mulf %231, %219 : vector<8x16xf32>
    %236 = arith.mulf %230, %234 : vector<8x16xf32>
    %237 = arith.addf %235, %236 : vector<8x16xf32>
    %238 = math.tanh %237 : vector<8x16xf32>
    %239 = arith.mulf %232, %238 : vector<8x16xf32>
    %cst_55 = arith.constant dense<0.000000e+00> : vector<8x64xf32>
    %240 = tpu.matmul %239, %149, %cst_55 {dimension_numbers = #tpu.dot_dimension_numbers<[1], [0], [0], [1], [0, 0, 1, 1], [], []>} : vector<8x16xf32>, vector<16x64xf32>, vector<8x64xf32> -> vector<8x64xf32>
    %241 = arith.addf %143, %240 : vector<8x64xf32>
    %242 = vector.extract_strided_slice %241 {offsets = [0, 0], sizes = [8, 48], strides = [1, 1]} : vector<8x64xf32> to vector<8x48xf32>
    %243 = arith.negf %242 : vector<8x48xf32>
    %244 = math.exp %243 : vector<8x48xf32>
    %cst_56 = arith.constant 1.000000e+00 : f32
    %245 = vector.broadcast %cst_56 : f32 to vector<8x48xf32>
    %246 = arith.addf %245, %244 : vector<8x48xf32>
    %247 = arith.divf %245, %246 : vector<8x48xf32>
    %248 = vector.extract_strided_slice %247 {offsets = [0, 0], sizes = [8, 16], strides = [1, 1]} : vector<8x48xf32> to vector<8x16xf32>
    %249 = vector.extract_strided_slice %247 {offsets = [0, 16], sizes = [8, 16], strides = [1, 1]} : vector<8x48xf32> to vector<8x16xf32>
    %250 = vector.extract_strided_slice %247 {offsets = [0, 32], sizes = [8, 16], strides = [1, 1]} : vector<8x48xf32> to vector<8x16xf32>
    %251 = vector.extract_strided_slice %241 {offsets = [0, 48], sizes = [8, 16], strides = [1, 1]} : vector<8x64xf32> to vector<8x16xf32>
    %252 = math.tanh %251 : vector<8x16xf32>
    %253 = arith.mulf %249, %237 : vector<8x16xf32>
    %254 = arith.mulf %248, %252 : vector<8x16xf32>
    %255 = arith.addf %253, %254 : vector<8x16xf32>
    %256 = math.tanh %255 : vector<8x16xf32>
    %257 = arith.mulf %250, %256 : vector<8x16xf32>
    %258 = tpu.concatenate %167, %185, %203, %221, %239, %257 in 0 : vector<8x16xf32>, vector<8x16xf32>, vector<8x16xf32>, vector<8x16xf32>, vector<8x16xf32>, vector<8x16xf32> -> vector<48x16xf32>
    %c1_57 = arith.constant 1 : index
    %c0_58 = arith.constant 0 : index
    %c0_59 = arith.constant 0 : index
    %259 = vector.load %arg7[%c1_57, %c0_58, %c0_59] : memref<4x16x64xf32, #tpu.memory_space<vmem>>, vector<1x16x64xf32>
    %260 = vector.shape_cast %259 : vector<1x16x64xf32> to vector<16x64xf32>
    %cst_60 = arith.constant dense<0.000000e+00> : vector<48x64xf32>
    %261 = tpu.matmul %258, %260, %cst_60 {dimension_numbers = #tpu.dot_dimension_numbers<[1], [0], [0], [1], [0, 0, 1, 1], [], []>} : vector<48x16xf32>, vector<16x64xf32>, vector<48x64xf32> -> vector<48x64xf32>
    %c1_61 = arith.constant 1 : index
    %c0_62 = arith.constant 0 : index
    %c0_63 = arith.constant 0 : index
    %262 = vector.load %arg8[%c1_61, %c0_62, %c0_63] : memref<4x1x64xf32, #tpu.memory_space<vmem>>, vector<1x1x64xf32>
    %263 = vector.shape_cast %262 : vector<1x1x64xf32> to vector<1x64xf32>
    %264 = vector.broadcast %263 : vector<1x64xf32> to vector<48x64xf32>
    %265 = arith.addf %261, %264 : vector<48x64xf32>
    %266 = vector.extract_strided_slice %265 {offsets = [0, 0], sizes = [8, 64], strides = [1, 1]} : vector<48x64xf32> to vector<8x64xf32>
    %267 = vector.extract_strided_slice %265 {offsets = [8, 0], sizes = [8, 64], strides = [1, 1]} : vector<48x64xf32> to vector<8x64xf32>
    %268 = vector.extract_strided_slice %265 {offsets = [16, 0], sizes = [8, 64], strides = [1, 1]} : vector<48x64xf32> to vector<8x64xf32>
    %269 = vector.extract_strided_slice %265 {offsets = [24, 0], sizes = [8, 64], strides = [1, 1]} : vector<48x64xf32> to vector<8x64xf32>
    %270 = vector.extract_strided_slice %265 {offsets = [32, 0], sizes = [8, 64], strides = [1, 1]} : vector<48x64xf32> to vector<8x64xf32>
    %271 = vector.extract_strided_slice %265 {offsets = [40, 0], sizes = [8, 64], strides = [1, 1]} : vector<48x64xf32> to vector<8x64xf32>
    %c2 = arith.constant 2 : index
    %c0_64 = arith.constant 0 : index
    %c0_65 = arith.constant 0 : index
    %272 = vector.load %arg2[%c2, %c0_64, %c0_65] : memref<5x8x16xf32, #tpu.memory_space<vmem>>, vector<1x8x16xf32>
    %273 = vector.shape_cast %272 : vector<1x8x16xf32> to vector<8x16xf32>
    %c2_66 = arith.constant 2 : index
    %c0_67 = arith.constant 0 : index
    %c0_68 = arith.constant 0 : index
    %274 = vector.load %arg3[%c2_66, %c0_67, %c0_68] : memref<5x8x16xf32, #tpu.memory_space<vmem>>, vector<1x8x16xf32>
    %275 = vector.shape_cast %274 : vector<1x8x16xf32> to vector<8x16xf32>
    %c2_69 = arith.constant 2 : index
    %c0_70 = arith.constant 0 : index
    %c0_71 = arith.constant 0 : index
    %276 = vector.load %arg9[%c2_69, %c0_70, %c0_71] : memref<5x16x64xf32, #tpu.memory_space<vmem>>, vector<1x16x64xf32>
    %277 = vector.shape_cast %276 : vector<1x16x64xf32> to vector<16x64xf32>
    %cst_72 = arith.constant dense<0.000000e+00> : vector<8x64xf32>
    %278 = tpu.matmul %273, %277, %cst_72 {dimension_numbers = #tpu.dot_dimension_numbers<[1], [0], [0], [1], [0, 0, 1, 1], [], []>} : vector<8x16xf32>, vector<16x64xf32>, vector<8x64xf32> -> vector<8x64xf32>
    %279 = arith.addf %266, %278 : vector<8x64xf32>
    %280 = vector.extract_strided_slice %279 {offsets = [0, 0], sizes = [8, 48], strides = [1, 1]} : vector<8x64xf32> to vector<8x48xf32>
    %281 = arith.negf %280 : vector<8x48xf32>
    %282 = math.exp %281 : vector<8x48xf32>
    %cst_73 = arith.constant 1.000000e+00 : f32
    %283 = vector.broadcast %cst_73 : f32 to vector<8x48xf32>
    %284 = arith.addf %283, %282 : vector<8x48xf32>
    %285 = arith.divf %283, %284 : vector<8x48xf32>
    %286 = vector.extract_strided_slice %285 {offsets = [0, 0], sizes = [8, 16], strides = [1, 1]} : vector<8x48xf32> to vector<8x16xf32>
    %287 = vector.extract_strided_slice %285 {offsets = [0, 16], sizes = [8, 16], strides = [1, 1]} : vector<8x48xf32> to vector<8x16xf32>
    %288 = vector.extract_strided_slice %285 {offsets = [0, 32], sizes = [8, 16], strides = [1, 1]} : vector<8x48xf32> to vector<8x16xf32>
    %289 = vector.extract_strided_slice %279 {offsets = [0, 48], sizes = [8, 16], strides = [1, 1]} : vector<8x64xf32> to vector<8x16xf32>
    %290 = math.tanh %289 : vector<8x16xf32>
    %291 = arith.mulf %287, %275 : vector<8x16xf32>
    %292 = arith.mulf %286, %290 : vector<8x16xf32>
    %293 = arith.addf %291, %292 : vector<8x16xf32>
    %294 = math.tanh %293 : vector<8x16xf32>
    %295 = arith.mulf %288, %294 : vector<8x16xf32>
    %cst_74 = arith.constant dense<0.000000e+00> : vector<8x64xf32>
    %296 = tpu.matmul %295, %277, %cst_74 {dimension_numbers = #tpu.dot_dimension_numbers<[1], [0], [0], [1], [0, 0, 1, 1], [], []>} : vector<8x16xf32>, vector<16x64xf32>, vector<8x64xf32> -> vector<8x64xf32>
    %297 = arith.addf %267, %296 : vector<8x64xf32>
    %298 = vector.extract_strided_slice %297 {offsets = [0, 0], sizes = [8, 48], strides = [1, 1]} : vector<8x64xf32> to vector<8x48xf32>
    %299 = arith.negf %298 : vector<8x48xf32>
    %300 = math.exp %299 : vector<8x48xf32>
    %cst_75 = arith.constant 1.000000e+00 : f32
    %301 = vector.broadcast %cst_75 : f32 to vector<8x48xf32>
    %302 = arith.addf %301, %300 : vector<8x48xf32>
    %303 = arith.divf %301, %302 : vector<8x48xf32>
    %304 = vector.extract_strided_slice %303 {offsets = [0, 0], sizes = [8, 16], strides = [1, 1]} : vector<8x48xf32> to vector<8x16xf32>
    %305 = vector.extract_strided_slice %303 {offsets = [0, 16], sizes = [8, 16], strides = [1, 1]} : vector<8x48xf32> to vector<8x16xf32>
    %306 = vector.extract_strided_slice %303 {offsets = [0, 32], sizes = [8, 16], strides = [1, 1]} : vector<8x48xf32> to vector<8x16xf32>
    %307 = vector.extract_strided_slice %297 {offsets = [0, 48], sizes = [8, 16], strides = [1, 1]} : vector<8x64xf32> to vector<8x16xf32>
    %308 = math.tanh %307 : vector<8x16xf32>
    %309 = arith.mulf %305, %293 : vector<8x16xf32>
    %310 = arith.mulf %304, %308 : vector<8x16xf32>
    %311 = arith.addf %309, %310 : vector<8x16xf32>
    %312 = math.tanh %311 : vector<8x16xf32>
    %313 = arith.mulf %306, %312 : vector<8x16xf32>
    %cst_76 = arith.constant dense<0.000000e+00> : vector<8x64xf32>
    %314 = tpu.matmul %313, %277, %cst_76 {dimension_numbers = #tpu.dot_dimension_numbers<[1], [0], [0], [1], [0, 0, 1, 1], [], []>} : vector<8x16xf32>, vector<16x64xf32>, vector<8x64xf32> -> vector<8x64xf32>
    %315 = arith.addf %268, %314 : vector<8x64xf32>
    %316 = vector.extract_strided_slice %315 {offsets = [0, 0], sizes = [8, 48], strides = [1, 1]} : vector<8x64xf32> to vector<8x48xf32>
    %317 = arith.negf %316 : vector<8x48xf32>
    %318 = math.exp %317 : vector<8x48xf32>
    %cst_77 = arith.constant 1.000000e+00 : f32
    %319 = vector.broadcast %cst_77 : f32 to vector<8x48xf32>
    %320 = arith.addf %319, %318 : vector<8x48xf32>
    %321 = arith.divf %319, %320 : vector<8x48xf32>
    %322 = vector.extract_strided_slice %321 {offsets = [0, 0], sizes = [8, 16], strides = [1, 1]} : vector<8x48xf32> to vector<8x16xf32>
    %323 = vector.extract_strided_slice %321 {offsets = [0, 16], sizes = [8, 16], strides = [1, 1]} : vector<8x48xf32> to vector<8x16xf32>
    %324 = vector.extract_strided_slice %321 {offsets = [0, 32], sizes = [8, 16], strides = [1, 1]} : vector<8x48xf32> to vector<8x16xf32>
    %325 = vector.extract_strided_slice %315 {offsets = [0, 48], sizes = [8, 16], strides = [1, 1]} : vector<8x64xf32> to vector<8x16xf32>
    %326 = math.tanh %325 : vector<8x16xf32>
    %327 = arith.mulf %323, %311 : vector<8x16xf32>
    %328 = arith.mulf %322, %326 : vector<8x16xf32>
    %329 = arith.addf %327, %328 : vector<8x16xf32>
    %330 = math.tanh %329 : vector<8x16xf32>
    %331 = arith.mulf %324, %330 : vector<8x16xf32>
    %cst_78 = arith.constant dense<0.000000e+00> : vector<8x64xf32>
    %332 = tpu.matmul %331, %277, %cst_78 {dimension_numbers = #tpu.dot_dimension_numbers<[1], [0], [0], [1], [0, 0, 1, 1], [], []>} : vector<8x16xf32>, vector<16x64xf32>, vector<8x64xf32> -> vector<8x64xf32>
    %333 = arith.addf %269, %332 : vector<8x64xf32>
    %334 = vector.extract_strided_slice %333 {offsets = [0, 0], sizes = [8, 48], strides = [1, 1]} : vector<8x64xf32> to vector<8x48xf32>
    %335 = arith.negf %334 : vector<8x48xf32>
    %336 = math.exp %335 : vector<8x48xf32>
    %cst_79 = arith.constant 1.000000e+00 : f32
    %337 = vector.broadcast %cst_79 : f32 to vector<8x48xf32>
    %338 = arith.addf %337, %336 : vector<8x48xf32>
    %339 = arith.divf %337, %338 : vector<8x48xf32>
    %340 = vector.extract_strided_slice %339 {offsets = [0, 0], sizes = [8, 16], strides = [1, 1]} : vector<8x48xf32> to vector<8x16xf32>
    %341 = vector.extract_strided_slice %339 {offsets = [0, 16], sizes = [8, 16], strides = [1, 1]} : vector<8x48xf32> to vector<8x16xf32>
    %342 = vector.extract_strided_slice %339 {offsets = [0, 32], sizes = [8, 16], strides = [1, 1]} : vector<8x48xf32> to vector<8x16xf32>
    %343 = vector.extract_strided_slice %333 {offsets = [0, 48], sizes = [8, 16], strides = [1, 1]} : vector<8x64xf32> to vector<8x16xf32>
    %344 = math.tanh %343 : vector<8x16xf32>
    %345 = arith.mulf %341, %329 : vector<8x16xf32>
    %346 = arith.mulf %340, %344 : vector<8x16xf32>
    %347 = arith.addf %345, %346 : vector<8x16xf32>
    %348 = math.tanh %347 : vector<8x16xf32>
    %349 = arith.mulf %342, %348 : vector<8x16xf32>
    %cst_80 = arith.constant dense<0.000000e+00> : vector<8x64xf32>
    %350 = tpu.matmul %349, %277, %cst_80 {dimension_numbers = #tpu.dot_dimension_numbers<[1], [0], [0], [1], [0, 0, 1, 1], [], []>} : vector<8x16xf32>, vector<16x64xf32>, vector<8x64xf32> -> vector<8x64xf32>
    %351 = arith.addf %270, %350 : vector<8x64xf32>
    %352 = vector.extract_strided_slice %351 {offsets = [0, 0], sizes = [8, 48], strides = [1, 1]} : vector<8x64xf32> to vector<8x48xf32>
    %353 = arith.negf %352 : vector<8x48xf32>
    %354 = math.exp %353 : vector<8x48xf32>
    %cst_81 = arith.constant 1.000000e+00 : f32
    %355 = vector.broadcast %cst_81 : f32 to vector<8x48xf32>
    %356 = arith.addf %355, %354 : vector<8x48xf32>
    %357 = arith.divf %355, %356 : vector<8x48xf32>
    %358 = vector.extract_strided_slice %357 {offsets = [0, 0], sizes = [8, 16], strides = [1, 1]} : vector<8x48xf32> to vector<8x16xf32>
    %359 = vector.extract_strided_slice %357 {offsets = [0, 16], sizes = [8, 16], strides = [1, 1]} : vector<8x48xf32> to vector<8x16xf32>
    %360 = vector.extract_strided_slice %357 {offsets = [0, 32], sizes = [8, 16], strides = [1, 1]} : vector<8x48xf32> to vector<8x16xf32>
    %361 = vector.extract_strided_slice %351 {offsets = [0, 48], sizes = [8, 16], strides = [1, 1]} : vector<8x64xf32> to vector<8x16xf32>
    %362 = math.tanh %361 : vector<8x16xf32>
    %363 = arith.mulf %359, %347 : vector<8x16xf32>
    %364 = arith.mulf %358, %362 : vector<8x16xf32>
    %365 = arith.addf %363, %364 : vector<8x16xf32>
    %366 = math.tanh %365 : vector<8x16xf32>
    %367 = arith.mulf %360, %366 : vector<8x16xf32>
    %cst_82 = arith.constant dense<0.000000e+00> : vector<8x64xf32>
    %368 = tpu.matmul %367, %277, %cst_82 {dimension_numbers = #tpu.dot_dimension_numbers<[1], [0], [0], [1], [0, 0, 1, 1], [], []>} : vector<8x16xf32>, vector<16x64xf32>, vector<8x64xf32> -> vector<8x64xf32>
    %369 = arith.addf %271, %368 : vector<8x64xf32>
    %370 = vector.extract_strided_slice %369 {offsets = [0, 0], sizes = [8, 48], strides = [1, 1]} : vector<8x64xf32> to vector<8x48xf32>
    %371 = arith.negf %370 : vector<8x48xf32>
    %372 = math.exp %371 : vector<8x48xf32>
    %cst_83 = arith.constant 1.000000e+00 : f32
    %373 = vector.broadcast %cst_83 : f32 to vector<8x48xf32>
    %374 = arith.addf %373, %372 : vector<8x48xf32>
    %375 = arith.divf %373, %374 : vector<8x48xf32>
    %376 = vector.extract_strided_slice %375 {offsets = [0, 0], sizes = [8, 16], strides = [1, 1]} : vector<8x48xf32> to vector<8x16xf32>
    %377 = vector.extract_strided_slice %375 {offsets = [0, 16], sizes = [8, 16], strides = [1, 1]} : vector<8x48xf32> to vector<8x16xf32>
    %378 = vector.extract_strided_slice %375 {offsets = [0, 32], sizes = [8, 16], strides = [1, 1]} : vector<8x48xf32> to vector<8x16xf32>
    %379 = vector.extract_strided_slice %369 {offsets = [0, 48], sizes = [8, 16], strides = [1, 1]} : vector<8x64xf32> to vector<8x16xf32>
    %380 = math.tanh %379 : vector<8x16xf32>
    %381 = arith.mulf %377, %365 : vector<8x16xf32>
    %382 = arith.mulf %376, %380 : vector<8x16xf32>
    %383 = arith.addf %381, %382 : vector<8x16xf32>
    %384 = math.tanh %383 : vector<8x16xf32>
    %385 = arith.mulf %378, %384 : vector<8x16xf32>
    %386 = tpu.concatenate %295, %313, %331, %349, %367, %385 in 0 : vector<8x16xf32>, vector<8x16xf32>, vector<8x16xf32>, vector<8x16xf32>, vector<8x16xf32>, vector<8x16xf32> -> vector<48x16xf32>
    %c2_84 = arith.constant 2 : index
    %c0_85 = arith.constant 0 : index
    %c0_86 = arith.constant 0 : index
    %387 = vector.load %arg7[%c2_84, %c0_85, %c0_86] : memref<4x16x64xf32, #tpu.memory_space<vmem>>, vector<1x16x64xf32>
    %388 = vector.shape_cast %387 : vector<1x16x64xf32> to vector<16x64xf32>
    %cst_87 = arith.constant dense<0.000000e+00> : vector<48x64xf32>
    %389 = tpu.matmul %386, %388, %cst_87 {dimension_numbers = #tpu.dot_dimension_numbers<[1], [0], [0], [1], [0, 0, 1, 1], [], []>} : vector<48x16xf32>, vector<16x64xf32>, vector<48x64xf32> -> vector<48x64xf32>
    %c2_88 = arith.constant 2 : index
    %c0_89 = arith.constant 0 : index
    %c0_90 = arith.constant 0 : index
    %390 = vector.load %arg8[%c2_88, %c0_89, %c0_90] : memref<4x1x64xf32, #tpu.memory_space<vmem>>, vector<1x1x64xf32>
    %391 = vector.shape_cast %390 : vector<1x1x64xf32> to vector<1x64xf32>
    %392 = vector.broadcast %391 : vector<1x64xf32> to vector<48x64xf32>
    %393 = arith.addf %389, %392 : vector<48x64xf32>
    %394 = vector.extract_strided_slice %393 {offsets = [0, 0], sizes = [8, 64], strides = [1, 1]} : vector<48x64xf32> to vector<8x64xf32>
    %395 = vector.extract_strided_slice %393 {offsets = [8, 0], sizes = [8, 64], strides = [1, 1]} : vector<48x64xf32> to vector<8x64xf32>
    %396 = vector.extract_strided_slice %393 {offsets = [16, 0], sizes = [8, 64], strides = [1, 1]} : vector<48x64xf32> to vector<8x64xf32>
    %397 = vector.extract_strided_slice %393 {offsets = [24, 0], sizes = [8, 64], strides = [1, 1]} : vector<48x64xf32> to vector<8x64xf32>
    %398 = vector.extract_strided_slice %393 {offsets = [32, 0], sizes = [8, 64], strides = [1, 1]} : vector<48x64xf32> to vector<8x64xf32>
    %399 = vector.extract_strided_slice %393 {offsets = [40, 0], sizes = [8, 64], strides = [1, 1]} : vector<48x64xf32> to vector<8x64xf32>
    %c3 = arith.constant 3 : index
    %c0_91 = arith.constant 0 : index
    %c0_92 = arith.constant 0 : index
    %400 = vector.load %arg2[%c3, %c0_91, %c0_92] : memref<5x8x16xf32, #tpu.memory_space<vmem>>, vector<1x8x16xf32>
    %401 = vector.shape_cast %400 : vector<1x8x16xf32> to vector<8x16xf32>
    %c3_93 = arith.constant 3 : index
    %c0_94 = arith.constant 0 : index
    %c0_95 = arith.constant 0 : index
    %402 = vector.load %arg3[%c3_93, %c0_94, %c0_95] : memref<5x8x16xf32, #tpu.memory_space<vmem>>, vector<1x8x16xf32>
    %403 = vector.shape_cast %402 : vector<1x8x16xf32> to vector<8x16xf32>
    %c3_96 = arith.constant 3 : index
    %c0_97 = arith.constant 0 : index
    %c0_98 = arith.constant 0 : index
    %404 = vector.load %arg9[%c3_96, %c0_97, %c0_98] : memref<5x16x64xf32, #tpu.memory_space<vmem>>, vector<1x16x64xf32>
    %405 = vector.shape_cast %404 : vector<1x16x64xf32> to vector<16x64xf32>
    %cst_99 = arith.constant dense<0.000000e+00> : vector<8x64xf32>
    %406 = tpu.matmul %401, %405, %cst_99 {dimension_numbers = #tpu.dot_dimension_numbers<[1], [0], [0], [1], [0, 0, 1, 1], [], []>} : vector<8x16xf32>, vector<16x64xf32>, vector<8x64xf32> -> vector<8x64xf32>
    %407 = arith.addf %394, %406 : vector<8x64xf32>
    %408 = vector.extract_strided_slice %407 {offsets = [0, 0], sizes = [8, 48], strides = [1, 1]} : vector<8x64xf32> to vector<8x48xf32>
    %409 = arith.negf %408 : vector<8x48xf32>
    %410 = math.exp %409 : vector<8x48xf32>
    %cst_100 = arith.constant 1.000000e+00 : f32
    %411 = vector.broadcast %cst_100 : f32 to vector<8x48xf32>
    %412 = arith.addf %411, %410 : vector<8x48xf32>
    %413 = arith.divf %411, %412 : vector<8x48xf32>
    %414 = vector.extract_strided_slice %413 {offsets = [0, 0], sizes = [8, 16], strides = [1, 1]} : vector<8x48xf32> to vector<8x16xf32>
    %415 = vector.extract_strided_slice %413 {offsets = [0, 16], sizes = [8, 16], strides = [1, 1]} : vector<8x48xf32> to vector<8x16xf32>
    %416 = vector.extract_strided_slice %413 {offsets = [0, 32], sizes = [8, 16], strides = [1, 1]} : vector<8x48xf32> to vector<8x16xf32>
    %417 = vector.extract_strided_slice %407 {offsets = [0, 48], sizes = [8, 16], strides = [1, 1]} : vector<8x64xf32> to vector<8x16xf32>
    %418 = math.tanh %417 : vector<8x16xf32>
    %419 = arith.mulf %415, %403 : vector<8x16xf32>
    %420 = arith.mulf %414, %418 : vector<8x16xf32>
    %421 = arith.addf %419, %420 : vector<8x16xf32>
    %422 = math.tanh %421 : vector<8x16xf32>
    %423 = arith.mulf %416, %422 : vector<8x16xf32>
    %cst_101 = arith.constant dense<0.000000e+00> : vector<8x64xf32>
    %424 = tpu.matmul %423, %405, %cst_101 {dimension_numbers = #tpu.dot_dimension_numbers<[1], [0], [0], [1], [0, 0, 1, 1], [], []>} : vector<8x16xf32>, vector<16x64xf32>, vector<8x64xf32> -> vector<8x64xf32>
    %425 = arith.addf %395, %424 : vector<8x64xf32>
    %426 = vector.extract_strided_slice %425 {offsets = [0, 0], sizes = [8, 48], strides = [1, 1]} : vector<8x64xf32> to vector<8x48xf32>
    %427 = arith.negf %426 : vector<8x48xf32>
    %428 = math.exp %427 : vector<8x48xf32>
    %cst_102 = arith.constant 1.000000e+00 : f32
    %429 = vector.broadcast %cst_102 : f32 to vector<8x48xf32>
    %430 = arith.addf %429, %428 : vector<8x48xf32>
    %431 = arith.divf %429, %430 : vector<8x48xf32>
    %432 = vector.extract_strided_slice %431 {offsets = [0, 0], sizes = [8, 16], strides = [1, 1]} : vector<8x48xf32> to vector<8x16xf32>
    %433 = vector.extract_strided_slice %431 {offsets = [0, 16], sizes = [8, 16], strides = [1, 1]} : vector<8x48xf32> to vector<8x16xf32>
    %434 = vector.extract_strided_slice %431 {offsets = [0, 32], sizes = [8, 16], strides = [1, 1]} : vector<8x48xf32> to vector<8x16xf32>
    %435 = vector.extract_strided_slice %425 {offsets = [0, 48], sizes = [8, 16], strides = [1, 1]} : vector<8x64xf32> to vector<8x16xf32>
    %436 = math.tanh %435 : vector<8x16xf32>
    %437 = arith.mulf %433, %421 : vector<8x16xf32>
    %438 = arith.mulf %432, %436 : vector<8x16xf32>
    %439 = arith.addf %437, %438 : vector<8x16xf32>
    %440 = math.tanh %439 : vector<8x16xf32>
    %441 = arith.mulf %434, %440 : vector<8x16xf32>
    %cst_103 = arith.constant dense<0.000000e+00> : vector<8x64xf32>
    %442 = tpu.matmul %441, %405, %cst_103 {dimension_numbers = #tpu.dot_dimension_numbers<[1], [0], [0], [1], [0, 0, 1, 1], [], []>} : vector<8x16xf32>, vector<16x64xf32>, vector<8x64xf32> -> vector<8x64xf32>
    %443 = arith.addf %396, %442 : vector<8x64xf32>
    %444 = vector.extract_strided_slice %443 {offsets = [0, 0], sizes = [8, 48], strides = [1, 1]} : vector<8x64xf32> to vector<8x48xf32>
    %445 = arith.negf %444 : vector<8x48xf32>
    %446 = math.exp %445 : vector<8x48xf32>
    %cst_104 = arith.constant 1.000000e+00 : f32
    %447 = vector.broadcast %cst_104 : f32 to vector<8x48xf32>
    %448 = arith.addf %447, %446 : vector<8x48xf32>
    %449 = arith.divf %447, %448 : vector<8x48xf32>
    %450 = vector.extract_strided_slice %449 {offsets = [0, 0], sizes = [8, 16], strides = [1, 1]} : vector<8x48xf32> to vector<8x16xf32>
    %451 = vector.extract_strided_slice %449 {offsets = [0, 16], sizes = [8, 16], strides = [1, 1]} : vector<8x48xf32> to vector<8x16xf32>
    %452 = vector.extract_strided_slice %449 {offsets = [0, 32], sizes = [8, 16], strides = [1, 1]} : vector<8x48xf32> to vector<8x16xf32>
    %453 = vector.extract_strided_slice %443 {offsets = [0, 48], sizes = [8, 16], strides = [1, 1]} : vector<8x64xf32> to vector<8x16xf32>
    %454 = math.tanh %453 : vector<8x16xf32>
    %455 = arith.mulf %451, %439 : vector<8x16xf32>
    %456 = arith.mulf %450, %454 : vector<8x16xf32>
    %457 = arith.addf %455, %456 : vector<8x16xf32>
    %458 = math.tanh %457 : vector<8x16xf32>
    %459 = arith.mulf %452, %458 : vector<8x16xf32>
    %cst_105 = arith.constant dense<0.000000e+00> : vector<8x64xf32>
    %460 = tpu.matmul %459, %405, %cst_105 {dimension_numbers = #tpu.dot_dimension_numbers<[1], [0], [0], [1], [0, 0, 1, 1], [], []>} : vector<8x16xf32>, vector<16x64xf32>, vector<8x64xf32> -> vector<8x64xf32>
    %461 = arith.addf %397, %460 : vector<8x64xf32>
    %462 = vector.extract_strided_slice %461 {offsets = [0, 0], sizes = [8, 48], strides = [1, 1]} : vector<8x64xf32> to vector<8x48xf32>
    %463 = arith.negf %462 : vector<8x48xf32>
    %464 = math.exp %463 : vector<8x48xf32>
    %cst_106 = arith.constant 1.000000e+00 : f32
    %465 = vector.broadcast %cst_106 : f32 to vector<8x48xf32>
    %466 = arith.addf %465, %464 : vector<8x48xf32>
    %467 = arith.divf %465, %466 : vector<8x48xf32>
    %468 = vector.extract_strided_slice %467 {offsets = [0, 0], sizes = [8, 16], strides = [1, 1]} : vector<8x48xf32> to vector<8x16xf32>
    %469 = vector.extract_strided_slice %467 {offsets = [0, 16], sizes = [8, 16], strides = [1, 1]} : vector<8x48xf32> to vector<8x16xf32>
    %470 = vector.extract_strided_slice %467 {offsets = [0, 32], sizes = [8, 16], strides = [1, 1]} : vector<8x48xf32> to vector<8x16xf32>
    %471 = vector.extract_strided_slice %461 {offsets = [0, 48], sizes = [8, 16], strides = [1, 1]} : vector<8x64xf32> to vector<8x16xf32>
    %472 = math.tanh %471 : vector<8x16xf32>
    %473 = arith.mulf %469, %457 : vector<8x16xf32>
    %474 = arith.mulf %468, %472 : vector<8x16xf32>
    %475 = arith.addf %473, %474 : vector<8x16xf32>
    %476 = math.tanh %475 : vector<8x16xf32>
    %477 = arith.mulf %470, %476 : vector<8x16xf32>
    %cst_107 = arith.constant dense<0.000000e+00> : vector<8x64xf32>
    %478 = tpu.matmul %477, %405, %cst_107 {dimension_numbers = #tpu.dot_dimension_numbers<[1], [0], [0], [1], [0, 0, 1, 1], [], []>} : vector<8x16xf32>, vector<16x64xf32>, vector<8x64xf32> -> vector<8x64xf32>
    %479 = arith.addf %398, %478 : vector<8x64xf32>
    %480 = vector.extract_strided_slice %479 {offsets = [0, 0], sizes = [8, 48], strides = [1, 1]} : vector<8x64xf32> to vector<8x48xf32>
    %481 = arith.negf %480 : vector<8x48xf32>
    %482 = math.exp %481 : vector<8x48xf32>
    %cst_108 = arith.constant 1.000000e+00 : f32
    %483 = vector.broadcast %cst_108 : f32 to vector<8x48xf32>
    %484 = arith.addf %483, %482 : vector<8x48xf32>
    %485 = arith.divf %483, %484 : vector<8x48xf32>
    %486 = vector.extract_strided_slice %485 {offsets = [0, 0], sizes = [8, 16], strides = [1, 1]} : vector<8x48xf32> to vector<8x16xf32>
    %487 = vector.extract_strided_slice %485 {offsets = [0, 16], sizes = [8, 16], strides = [1, 1]} : vector<8x48xf32> to vector<8x16xf32>
    %488 = vector.extract_strided_slice %485 {offsets = [0, 32], sizes = [8, 16], strides = [1, 1]} : vector<8x48xf32> to vector<8x16xf32>
    %489 = vector.extract_strided_slice %479 {offsets = [0, 48], sizes = [8, 16], strides = [1, 1]} : vector<8x64xf32> to vector<8x16xf32>
    %490 = math.tanh %489 : vector<8x16xf32>
    %491 = arith.mulf %487, %475 : vector<8x16xf32>
    %492 = arith.mulf %486, %490 : vector<8x16xf32>
    %493 = arith.addf %491, %492 : vector<8x16xf32>
    %494 = math.tanh %493 : vector<8x16xf32>
    %495 = arith.mulf %488, %494 : vector<8x16xf32>
    %cst_109 = arith.constant dense<0.000000e+00> : vector<8x64xf32>
    %496 = tpu.matmul %495, %405, %cst_109 {dimension_numbers = #tpu.dot_dimension_numbers<[1], [0], [0], [1], [0, 0, 1, 1], [], []>} : vector<8x16xf32>, vector<16x64xf32>, vector<8x64xf32> -> vector<8x64xf32>
    %497 = arith.addf %399, %496 : vector<8x64xf32>
    %498 = vector.extract_strided_slice %497 {offsets = [0, 0], sizes = [8, 48], strides = [1, 1]} : vector<8x64xf32> to vector<8x48xf32>
    %499 = arith.negf %498 : vector<8x48xf32>
    %500 = math.exp %499 : vector<8x48xf32>
    %cst_110 = arith.constant 1.000000e+00 : f32
    %501 = vector.broadcast %cst_110 : f32 to vector<8x48xf32>
    %502 = arith.addf %501, %500 : vector<8x48xf32>
    %503 = arith.divf %501, %502 : vector<8x48xf32>
    %504 = vector.extract_strided_slice %503 {offsets = [0, 0], sizes = [8, 16], strides = [1, 1]} : vector<8x48xf32> to vector<8x16xf32>
    %505 = vector.extract_strided_slice %503 {offsets = [0, 16], sizes = [8, 16], strides = [1, 1]} : vector<8x48xf32> to vector<8x16xf32>
    %506 = vector.extract_strided_slice %503 {offsets = [0, 32], sizes = [8, 16], strides = [1, 1]} : vector<8x48xf32> to vector<8x16xf32>
    %507 = vector.extract_strided_slice %497 {offsets = [0, 48], sizes = [8, 16], strides = [1, 1]} : vector<8x64xf32> to vector<8x16xf32>
    %508 = math.tanh %507 : vector<8x16xf32>
    %509 = arith.mulf %505, %493 : vector<8x16xf32>
    %510 = arith.mulf %504, %508 : vector<8x16xf32>
    %511 = arith.addf %509, %510 : vector<8x16xf32>
    %512 = math.tanh %511 : vector<8x16xf32>
    %513 = arith.mulf %506, %512 : vector<8x16xf32>
    %514 = tpu.concatenate %423, %441, %459, %477, %495, %513 in 0 : vector<8x16xf32>, vector<8x16xf32>, vector<8x16xf32>, vector<8x16xf32>, vector<8x16xf32>, vector<8x16xf32> -> vector<48x16xf32>
    %c3_111 = arith.constant 3 : index
    %c0_112 = arith.constant 0 : index
    %c0_113 = arith.constant 0 : index
    %515 = vector.load %arg7[%c3_111, %c0_112, %c0_113] : memref<4x16x64xf32, #tpu.memory_space<vmem>>, vector<1x16x64xf32>
    %516 = vector.shape_cast %515 : vector<1x16x64xf32> to vector<16x64xf32>
    %cst_114 = arith.constant dense<0.000000e+00> : vector<48x64xf32>
    %517 = tpu.matmul %514, %516, %cst_114 {dimension_numbers = #tpu.dot_dimension_numbers<[1], [0], [0], [1], [0, 0, 1, 1], [], []>} : vector<48x16xf32>, vector<16x64xf32>, vector<48x64xf32> -> vector<48x64xf32>
    %c3_115 = arith.constant 3 : index
    %c0_116 = arith.constant 0 : index
    %c0_117 = arith.constant 0 : index
    %518 = vector.load %arg8[%c3_115, %c0_116, %c0_117] : memref<4x1x64xf32, #tpu.memory_space<vmem>>, vector<1x1x64xf32>
    %519 = vector.shape_cast %518 : vector<1x1x64xf32> to vector<1x64xf32>
    %520 = vector.broadcast %519 : vector<1x64xf32> to vector<48x64xf32>
    %521 = arith.addf %517, %520 : vector<48x64xf32>
    %522 = vector.extract_strided_slice %521 {offsets = [0, 0], sizes = [8, 64], strides = [1, 1]} : vector<48x64xf32> to vector<8x64xf32>
    %523 = vector.extract_strided_slice %521 {offsets = [8, 0], sizes = [8, 64], strides = [1, 1]} : vector<48x64xf32> to vector<8x64xf32>
    %524 = vector.extract_strided_slice %521 {offsets = [16, 0], sizes = [8, 64], strides = [1, 1]} : vector<48x64xf32> to vector<8x64xf32>
    %525 = vector.extract_strided_slice %521 {offsets = [24, 0], sizes = [8, 64], strides = [1, 1]} : vector<48x64xf32> to vector<8x64xf32>
    %526 = vector.extract_strided_slice %521 {offsets = [32, 0], sizes = [8, 64], strides = [1, 1]} : vector<48x64xf32> to vector<8x64xf32>
    %527 = vector.extract_strided_slice %521 {offsets = [40, 0], sizes = [8, 64], strides = [1, 1]} : vector<48x64xf32> to vector<8x64xf32>
    %c4 = arith.constant 4 : index
    %c0_118 = arith.constant 0 : index
    %c0_119 = arith.constant 0 : index
    %528 = vector.load %arg2[%c4, %c0_118, %c0_119] : memref<5x8x16xf32, #tpu.memory_space<vmem>>, vector<1x8x16xf32>
    %529 = vector.shape_cast %528 : vector<1x8x16xf32> to vector<8x16xf32>
    %c4_120 = arith.constant 4 : index
    %c0_121 = arith.constant 0 : index
    %c0_122 = arith.constant 0 : index
    %530 = vector.load %arg3[%c4_120, %c0_121, %c0_122] : memref<5x8x16xf32, #tpu.memory_space<vmem>>, vector<1x8x16xf32>
    %531 = vector.shape_cast %530 : vector<1x8x16xf32> to vector<8x16xf32>
    %c4_123 = arith.constant 4 : index
    %c0_124 = arith.constant 0 : index
    %c0_125 = arith.constant 0 : index
    %532 = vector.load %arg9[%c4_123, %c0_124, %c0_125] : memref<5x16x64xf32, #tpu.memory_space<vmem>>, vector<1x16x64xf32>
    %533 = vector.shape_cast %532 : vector<1x16x64xf32> to vector<16x64xf32>
    %cst_126 = arith.constant dense<0.000000e+00> : vector<8x64xf32>
    %534 = tpu.matmul %529, %533, %cst_126 {dimension_numbers = #tpu.dot_dimension_numbers<[1], [0], [0], [1], [0, 0, 1, 1], [], []>} : vector<8x16xf32>, vector<16x64xf32>, vector<8x64xf32> -> vector<8x64xf32>
    %535 = arith.addf %522, %534 : vector<8x64xf32>
    %536 = vector.extract_strided_slice %535 {offsets = [0, 0], sizes = [8, 48], strides = [1, 1]} : vector<8x64xf32> to vector<8x48xf32>
    %537 = arith.negf %536 : vector<8x48xf32>
    %538 = math.exp %537 : vector<8x48xf32>
    %cst_127 = arith.constant 1.000000e+00 : f32
    %539 = vector.broadcast %cst_127 : f32 to vector<8x48xf32>
    %540 = arith.addf %539, %538 : vector<8x48xf32>
    %541 = arith.divf %539, %540 : vector<8x48xf32>
    %542 = vector.extract_strided_slice %541 {offsets = [0, 0], sizes = [8, 16], strides = [1, 1]} : vector<8x48xf32> to vector<8x16xf32>
    %543 = vector.extract_strided_slice %541 {offsets = [0, 16], sizes = [8, 16], strides = [1, 1]} : vector<8x48xf32> to vector<8x16xf32>
    %544 = vector.extract_strided_slice %541 {offsets = [0, 32], sizes = [8, 16], strides = [1, 1]} : vector<8x48xf32> to vector<8x16xf32>
    %545 = vector.extract_strided_slice %535 {offsets = [0, 48], sizes = [8, 16], strides = [1, 1]} : vector<8x64xf32> to vector<8x16xf32>
    %546 = math.tanh %545 : vector<8x16xf32>
    %547 = arith.mulf %543, %531 : vector<8x16xf32>
    %548 = arith.mulf %542, %546 : vector<8x16xf32>
    %549 = arith.addf %547, %548 : vector<8x16xf32>
    %550 = math.tanh %549 : vector<8x16xf32>
    %551 = arith.mulf %544, %550 : vector<8x16xf32>
    %cst_128 = arith.constant dense<0.000000e+00> : vector<8x64xf32>
    %552 = tpu.matmul %551, %533, %cst_128 {dimension_numbers = #tpu.dot_dimension_numbers<[1], [0], [0], [1], [0, 0, 1, 1], [], []>} : vector<8x16xf32>, vector<16x64xf32>, vector<8x64xf32> -> vector<8x64xf32>
    %553 = arith.addf %523, %552 : vector<8x64xf32>
    %554 = vector.extract_strided_slice %553 {offsets = [0, 0], sizes = [8, 48], strides = [1, 1]} : vector<8x64xf32> to vector<8x48xf32>
    %555 = arith.negf %554 : vector<8x48xf32>
    %556 = math.exp %555 : vector<8x48xf32>
    %cst_129 = arith.constant 1.000000e+00 : f32
    %557 = vector.broadcast %cst_129 : f32 to vector<8x48xf32>
    %558 = arith.addf %557, %556 : vector<8x48xf32>
    %559 = arith.divf %557, %558 : vector<8x48xf32>
    %560 = vector.extract_strided_slice %559 {offsets = [0, 0], sizes = [8, 16], strides = [1, 1]} : vector<8x48xf32> to vector<8x16xf32>
    %561 = vector.extract_strided_slice %559 {offsets = [0, 16], sizes = [8, 16], strides = [1, 1]} : vector<8x48xf32> to vector<8x16xf32>
    %562 = vector.extract_strided_slice %559 {offsets = [0, 32], sizes = [8, 16], strides = [1, 1]} : vector<8x48xf32> to vector<8x16xf32>
    %563 = vector.extract_strided_slice %553 {offsets = [0, 48], sizes = [8, 16], strides = [1, 1]} : vector<8x64xf32> to vector<8x16xf32>
    %564 = math.tanh %563 : vector<8x16xf32>
    %565 = arith.mulf %561, %549 : vector<8x16xf32>
    %566 = arith.mulf %560, %564 : vector<8x16xf32>
    %567 = arith.addf %565, %566 : vector<8x16xf32>
    %568 = math.tanh %567 : vector<8x16xf32>
    %569 = arith.mulf %562, %568 : vector<8x16xf32>
    %cst_130 = arith.constant dense<0.000000e+00> : vector<8x64xf32>
    %570 = tpu.matmul %569, %533, %cst_130 {dimension_numbers = #tpu.dot_dimension_numbers<[1], [0], [0], [1], [0, 0, 1, 1], [], []>} : vector<8x16xf32>, vector<16x64xf32>, vector<8x64xf32> -> vector<8x64xf32>
    %571 = arith.addf %524, %570 : vector<8x64xf32>
    %572 = vector.extract_strided_slice %571 {offsets = [0, 0], sizes = [8, 48], strides = [1, 1]} : vector<8x64xf32> to vector<8x48xf32>
    %573 = arith.negf %572 : vector<8x48xf32>
    %574 = math.exp %573 : vector<8x48xf32>
    %cst_131 = arith.constant 1.000000e+00 : f32
    %575 = vector.broadcast %cst_131 : f32 to vector<8x48xf32>
    %576 = arith.addf %575, %574 : vector<8x48xf32>
    %577 = arith.divf %575, %576 : vector<8x48xf32>
    %578 = vector.extract_strided_slice %577 {offsets = [0, 0], sizes = [8, 16], strides = [1, 1]} : vector<8x48xf32> to vector<8x16xf32>
    %579 = vector.extract_strided_slice %577 {offsets = [0, 16], sizes = [8, 16], strides = [1, 1]} : vector<8x48xf32> to vector<8x16xf32>
    %580 = vector.extract_strided_slice %577 {offsets = [0, 32], sizes = [8, 16], strides = [1, 1]} : vector<8x48xf32> to vector<8x16xf32>
    %581 = vector.extract_strided_slice %571 {offsets = [0, 48], sizes = [8, 16], strides = [1, 1]} : vector<8x64xf32> to vector<8x16xf32>
    %582 = math.tanh %581 : vector<8x16xf32>
    %583 = arith.mulf %579, %567 : vector<8x16xf32>
    %584 = arith.mulf %578, %582 : vector<8x16xf32>
    %585 = arith.addf %583, %584 : vector<8x16xf32>
    %586 = math.tanh %585 : vector<8x16xf32>
    %587 = arith.mulf %580, %586 : vector<8x16xf32>
    %cst_132 = arith.constant dense<0.000000e+00> : vector<8x64xf32>
    %588 = tpu.matmul %587, %533, %cst_132 {dimension_numbers = #tpu.dot_dimension_numbers<[1], [0], [0], [1], [0, 0, 1, 1], [], []>} : vector<8x16xf32>, vector<16x64xf32>, vector<8x64xf32> -> vector<8x64xf32>
    %589 = arith.addf %525, %588 : vector<8x64xf32>
    %590 = vector.extract_strided_slice %589 {offsets = [0, 0], sizes = [8, 48], strides = [1, 1]} : vector<8x64xf32> to vector<8x48xf32>
    %591 = arith.negf %590 : vector<8x48xf32>
    %592 = math.exp %591 : vector<8x48xf32>
    %cst_133 = arith.constant 1.000000e+00 : f32
    %593 = vector.broadcast %cst_133 : f32 to vector<8x48xf32>
    %594 = arith.addf %593, %592 : vector<8x48xf32>
    %595 = arith.divf %593, %594 : vector<8x48xf32>
    %596 = vector.extract_strided_slice %595 {offsets = [0, 0], sizes = [8, 16], strides = [1, 1]} : vector<8x48xf32> to vector<8x16xf32>
    %597 = vector.extract_strided_slice %595 {offsets = [0, 16], sizes = [8, 16], strides = [1, 1]} : vector<8x48xf32> to vector<8x16xf32>
    %598 = vector.extract_strided_slice %595 {offsets = [0, 32], sizes = [8, 16], strides = [1, 1]} : vector<8x48xf32> to vector<8x16xf32>
    %599 = vector.extract_strided_slice %589 {offsets = [0, 48], sizes = [8, 16], strides = [1, 1]} : vector<8x64xf32> to vector<8x16xf32>
    %600 = math.tanh %599 : vector<8x16xf32>
    %601 = arith.mulf %597, %585 : vector<8x16xf32>
    %602 = arith.mulf %596, %600 : vector<8x16xf32>
    %603 = arith.addf %601, %602 : vector<8x16xf32>
    %604 = math.tanh %603 : vector<8x16xf32>
    %605 = arith.mulf %598, %604 : vector<8x16xf32>
    %cst_134 = arith.constant dense<0.000000e+00> : vector<8x64xf32>
    %606 = tpu.matmul %605, %533, %cst_134 {dimension_numbers = #tpu.dot_dimension_numbers<[1], [0], [0], [1], [0, 0, 1, 1], [], []>} : vector<8x16xf32>, vector<16x64xf32>, vector<8x64xf32> -> vector<8x64xf32>
    %607 = arith.addf %526, %606 : vector<8x64xf32>
    %608 = vector.extract_strided_slice %607 {offsets = [0, 0], sizes = [8, 48], strides = [1, 1]} : vector<8x64xf32> to vector<8x48xf32>
    %609 = arith.negf %608 : vector<8x48xf32>
    %610 = math.exp %609 : vector<8x48xf32>
    %cst_135 = arith.constant 1.000000e+00 : f32
    %611 = vector.broadcast %cst_135 : f32 to vector<8x48xf32>
    %612 = arith.addf %611, %610 : vector<8x48xf32>
    %613 = arith.divf %611, %612 : vector<8x48xf32>
    %614 = vector.extract_strided_slice %613 {offsets = [0, 0], sizes = [8, 16], strides = [1, 1]} : vector<8x48xf32> to vector<8x16xf32>
    %615 = vector.extract_strided_slice %613 {offsets = [0, 16], sizes = [8, 16], strides = [1, 1]} : vector<8x48xf32> to vector<8x16xf32>
    %616 = vector.extract_strided_slice %613 {offsets = [0, 32], sizes = [8, 16], strides = [1, 1]} : vector<8x48xf32> to vector<8x16xf32>
    %617 = vector.extract_strided_slice %607 {offsets = [0, 48], sizes = [8, 16], strides = [1, 1]} : vector<8x64xf32> to vector<8x16xf32>
    %618 = math.tanh %617 : vector<8x16xf32>
    %619 = arith.mulf %615, %603 : vector<8x16xf32>
    %620 = arith.mulf %614, %618 : vector<8x16xf32>
    %621 = arith.addf %619, %620 : vector<8x16xf32>
    %622 = math.tanh %621 : vector<8x16xf32>
    %623 = arith.mulf %616, %622 : vector<8x16xf32>
    %cst_136 = arith.constant dense<0.000000e+00> : vector<8x64xf32>
    %624 = tpu.matmul %623, %533, %cst_136 {dimension_numbers = #tpu.dot_dimension_numbers<[1], [0], [0], [1], [0, 0, 1, 1], [], []>} : vector<8x16xf32>, vector<16x64xf32>, vector<8x64xf32> -> vector<8x64xf32>
    %625 = arith.addf %527, %624 : vector<8x64xf32>
    %626 = vector.extract_strided_slice %625 {offsets = [0, 0], sizes = [8, 48], strides = [1, 1]} : vector<8x64xf32> to vector<8x48xf32>
    %627 = arith.negf %626 : vector<8x48xf32>
    %628 = math.exp %627 : vector<8x48xf32>
    %cst_137 = arith.constant 1.000000e+00 : f32
    %629 = vector.broadcast %cst_137 : f32 to vector<8x48xf32>
    %630 = arith.addf %629, %628 : vector<8x48xf32>
    %631 = arith.divf %629, %630 : vector<8x48xf32>
    %632 = vector.extract_strided_slice %631 {offsets = [0, 0], sizes = [8, 16], strides = [1, 1]} : vector<8x48xf32> to vector<8x16xf32>
    %633 = vector.extract_strided_slice %631 {offsets = [0, 16], sizes = [8, 16], strides = [1, 1]} : vector<8x48xf32> to vector<8x16xf32>
    %634 = vector.extract_strided_slice %631 {offsets = [0, 32], sizes = [8, 16], strides = [1, 1]} : vector<8x48xf32> to vector<8x16xf32>
    %635 = vector.extract_strided_slice %625 {offsets = [0, 48], sizes = [8, 16], strides = [1, 1]} : vector<8x64xf32> to vector<8x16xf32>
    %636 = math.tanh %635 : vector<8x16xf32>
    %637 = arith.mulf %633, %621 : vector<8x16xf32>
    %638 = arith.mulf %632, %636 : vector<8x16xf32>
    %639 = arith.addf %637, %638 : vector<8x16xf32>
    %640 = math.tanh %639 : vector<8x16xf32>
    %641 = arith.mulf %634, %640 : vector<8x16xf32>
    %642 = tpu.concatenate %551, %569, %587, %605, %623, %641 in 1 : vector<8x16xf32>, vector<8x16xf32>, vector<8x16xf32>, vector<8x16xf32>, vector<8x16xf32>, vector<8x16xf32> -> vector<8x96xf32>
    %c0_138 = arith.constant 0 : index
    %c0_139 = arith.constant 0 : index
    %643 = vector.load %arg10[%c0_138, %c0_139] : memref<96x20xf32, #tpu.memory_space<vmem>>, vector<96x20xf32>
    %cst_140 = arith.constant dense<0.000000e+00> : vector<8x20xf32>
    %644 = tpu.matmul %642, %643, %cst_140 {dimension_numbers = #tpu.dot_dimension_numbers<[1], [0], [0], [1], [0, 0, 1, 1], [], []>} : vector<8x96xf32>, vector<96x20xf32>, vector<8x20xf32> -> vector<8x20xf32>
    %c0_141 = arith.constant 0 : index
    %c0_142 = arith.constant 0 : index
    %645 = vector.load %arg11[%c0_141, %c0_142] : memref<1x20xf32, #tpu.memory_space<vmem>>, vector<1x20xf32>
    %646 = vector.broadcast %645 : vector<1x20xf32> to vector<8x20xf32>
    %647 = arith.addf %644, %646 : vector<8x20xf32>
    %cst_143 = arith.constant 0.000000e+00 : f32
    %648 = vector.broadcast %cst_143 : f32 to vector<8x20xf32>
    %649 = arith.maximumf %647, %648 : vector<8x20xf32>
    %c0_144 = arith.constant 0 : index
    %c0_145 = arith.constant 0 : index
    %650 = vector.load %arg12[%c0_144, %c0_145] : memref<20x5xf32, #tpu.memory_space<vmem>>, vector<20x5xf32>
    %cst_146 = arith.constant dense<0.000000e+00> : vector<8x5xf32>
    %651 = tpu.matmul %649, %650, %cst_146 {dimension_numbers = #tpu.dot_dimension_numbers<[1], [0], [0], [1], [0, 0, 1, 1], [], []>} : vector<8x20xf32>, vector<20x5xf32>, vector<8x5xf32> -> vector<8x5xf32>
    %c0_147 = arith.constant 0 : index
    %c0_148 = arith.constant 0 : index
    %652 = vector.load %arg13[%c0_147, %c0_148] : memref<1x5xf32, #tpu.memory_space<vmem>>, vector<1x5xf32>
    %653 = vector.broadcast %652 : vector<1x5xf32> to vector<8x5xf32>
    %654 = arith.addf %651, %653 : vector<8x5xf32>
    %cst_149 = arith.constant 0.000000e+00 : f32
    %655 = vector.broadcast %cst_149 : f32 to vector<8x5xf32>
    %656 = arith.maximumf %654, %655 : vector<8x5xf32>
    %c0_150 = arith.constant 0 : index
    %c0_151 = arith.constant 0 : index
    %657 = vector.load %arg14[%c0_150, %c0_151] : memref<8x5xf32, #tpu.memory_space<vmem>>, vector<8x5xf32>
    tpu.vector_store %arg14[%c0_150, %c0_151], %656 {strides = array<i32>} : memref<8x5xf32, #tpu.memory_space<vmem>>, vector<8x5xf32>,
    return
  }
  func.func @transform_0(%arg0: i32) -> (i32, i32) {
    %c0_i32 = arith.constant 0 : i32
    %c0_i32_0 = arith.constant 0 : i32
    return %arg0, %c0_i32 : i32, i32
  }
  func.func @transform_1(%arg0: i32) -> (i32, i32, i32) {
    %c0_i32 = arith.constant 0 : i32
    %c0_i32_0 = arith.constant 0 : i32
    %c0_i32_1 = arith.constant 0 : i32
    return %c0_i32, %arg0, %c0_i32_0 : i32, i32, i32
  }
  func.func @transform_2(%arg0: i32) -> (i32, i32, i32) {
    %c0_i32 = arith.constant 0 : i32
    %c0_i32_0 = arith.constant 0 : i32
    %c0_i32_1 = arith.constant 0 : i32
    return %c0_i32, %arg0, %c0_i32_0 : i32, i32, i32
  }
  func.func @transform_3(%arg0: i32) -> (i32, i32) {
    %c0_i32 = arith.constant 0 : i32
    %c0_i32_0 = arith.constant 0 : i32
    %c0_i32_1 = arith.constant 0 : i32
    return %c0_i32, %c0_i32_0 : i32, i32
  }
  func.func @transform_4(%arg0: i32) -> (i32, i32) {
    %c0_i32 = arith.constant 0 : i32
    %c0_i32_0 = arith.constant 0 : i32
    %c0_i32_1 = arith.constant 0 : i32
    return %c0_i32, %c0_i32_0 : i32, i32
  }
  func.func @transform_5(%arg0: i32) -> (i32, i32) {
    %c0_i32 = arith.constant 0 : i32
    %c0_i32_0 = arith.constant 0 : i32
    %c0_i32_1 = arith.constant 0 : i32
    return %c0_i32, %c0_i32_0 : i32, i32
  }
  func.func @transform_6(%arg0: i32) -> (i32, i32, i32) {
    %c0_i32 = arith.constant 0 : i32
    %c0_i32_0 = arith.constant 0 : i32
    %c0_i32_1 = arith.constant 0 : i32
    %c0_i32_2 = arith.constant 0 : i32
    return %c0_i32, %c0_i32_0, %c0_i32_1 : i32, i32, i32
  }
  func.func @transform_7(%arg0: i32) -> (i32, i32, i32) {
    %c0_i32 = arith.constant 0 : i32
    %c0_i32_0 = arith.constant 0 : i32
    %c0_i32_1 = arith.constant 0 : i32
    %c0_i32_2 = arith.constant 0 : i32
    return %c0_i32, %c0_i32_0, %c0_i32_1 : i32, i32, i32
  }
  func.func @transform_8(%arg0: i32) -> (i32, i32, i32) {
    %c0_i32 = arith.constant 0 : i32
    %c0_i32_0 = arith.constant 0 : i32
    %c0_i32_1 = arith.constant 0 : i32
    %c0_i32_2 = arith.constant 0 : i32
    return %c0_i32, %c0_i32_0, %c0_i32_1 : i32, i32, i32
  }
  func.func @transform_9(%arg0: i32) -> (i32, i32) {
    %c0_i32 = arith.constant 0 : i32
    %c0_i32_0 = arith.constant 0 : i32
    %c0_i32_1 = arith.constant 0 : i32
    return %c0_i32, %c0_i32_0 : i32, i32
  }
  func.func @transform_10(%arg0: i32) -> (i32, i32) {
    %c0_i32 = arith.constant 0 : i32
    %c0_i32_0 = arith.constant 0 : i32
    %c0_i32_1 = arith.constant 0 : i32
    return %c0_i32, %c0_i32_0 : i32, i32
  }
  func.func @transform_11(%arg0: i32) -> (i32, i32) {
    %c0_i32 = arith.constant 0 : i32
    %c0_i32_0 = arith.constant 0 : i32
    %c0_i32_1 = arith.constant 0 : i32
    return %c0_i32, %c0_i32_0 : i32, i32
  }
  func.func @transform_12(%arg0: i32) -> (i32, i32) {
    %c0_i32 = arith.constant 0 : i32
    %c0_i32_0 = arith.constant 0 : i32
    %c0_i32_1 = arith.constant 0 : i32
    return %c0_i32, %c0_i32_0 : i32, i32
  }
  func.func @transform_13(%arg0: i32) -> (i32, i32) {
    %c0_i32 = arith.constant 0 : i32
    %c0_i32_0 = arith.constant 0 : i32
    return %arg0, %c0_i32 : i32, i32
  }
}

</mosaic_0001>

<llo_original>
// kernel: model_forward.1
$region0: #{model_forward.1}
  #allocation0 [shape = 'u32[]', space=smem, size = 0x4, offset = 0x4, fixed_abs, tag = 'smem constant byte address 0x4 - core index']
  #allocation1 [shape = 'u32[144,128]{1,0:T(1,128)}', space=vmem, size = 0x12000, scoped, tag = 'internal scratch']
  %s0 = inlined_call_operand.vmem [shape: f32[8,30], index: 0, kind: input, shape index: {}]
  %s1 = inlined_call_operand.vmem [shape: f32[5,8,16], index: 1, kind: input, shape index: {}]
  %s2 = inlined_call_operand.vmem [shape: f32[5,8,16], index: 2, kind: input, shape index: {}]
  %s3 = inlined_call_operand.vmem [shape: f32[30,156], index: 3, kind: input, shape index: {}]
  %s4 = inlined_call_operand.hbm [shape: f32[156,384], index: 4, kind: input, shape index: {}]
  %s5 = inlined_call_operand.vmem [shape: f32[1,384], index: 5, kind: input, shape index: {}]
  %s6 = inlined_call_operand.vmem [shape: f32[4,16,64], index: 6, kind: input, shape index: {}]
  %s7 = inlined_call_operand.vmem [shape: f32[4,1,64], index: 7, kind: input, shape index: {}]
  %s8 = inlined_call_operand.vmem [shape: f32[5,16,64], index: 8, kind: input, shape index: {}]
  %s9 = inlined_call_operand.vmem [shape: f32[96,20], index: 9, kind: input, shape index: {}]
  %s10 = inlined_call_operand.vmem [shape: f32[1,20], index: 10, kind: input, shape index: {}]
  %s11 = inlined_call_operand.vmem [shape: f32[20,5], index: 11, kind: input, shape index: {}]
  %s12 = inlined_call_operand.vmem [shape: f32[1,5], index: 12, kind: input, shape index: {}]
  %s13 = inlined_call_operand.vmem [shape: f32[8,5], index: 13, kind: output, shape index: {}]
  %s14 = sld [smem:[#allocation0]]
  $region66: #{model_forward.1} parent=0
    _
  %s16 = ssub.s32 1, %s14
  %s17 = scalar_select 0, %s16, %s14
  $region1: #{model_forward.1} parent=0
    #allocation2 [shape = 'u8[245760]{0}', space=vmem, size = 0x3c000, scoped, tag = 'input window, operand 4, single buffered']
    #allocation3 [shape = 's32[1]{0}', space=sflag, size = 0x4, scoped, tag = 'scoped memory for model_forward.1']
    %18 = vsyncpa [#allocation3], 0
    // Predicated region
    $region2: #{model_forward.1} parent=1 // pred_check
      _
    $region3: #{model_forward.1} parent=1 // pred_check_branch
      %20 = sbr.rel (0) target = $region5
    $region4: #{model_forward.1} parent=1 // pred_region
      _
    $region5: #{model_forward.1} parent=1 // pred_fallthru
      _
    // Predicated region
    $region6: #{model_forward.1} parent=1 // pred_check
      _
    $region7: #{model_forward.1} parent=1 // pred_check_branch
      %22 = sbr.rel (0) target = $region9
    $region8: #{model_forward.1} parent=1 // pred_region
      _
    $region9: #{model_forward.1} parent=1 // pred_fallthru
      _
    // Predicated region
    $region10: #{model_forward.1} parent=1 // pred_check
      _
    $region11: #{model_forward.1} parent=1 // pred_check_branch
      %24 = sbr.rel (0) target = $region13
    $region12: #{model_forward.1} parent=1 // pred_region
      _
    $region13: #{model_forward.1} parent=1 // pred_fallthru
      _
    // Predicated region
    $region14: #{model_forward.1} parent=1 // pred_check
      _
    $region15: #{model_forward.1} parent=1 // pred_check_branch
      %26 = sbr.rel (0) target = $region17
    $region16: #{model_forward.1} parent=1 // pred_region
      _
    $region17: #{model_forward.1} parent=1 // pred_fallthru
      _
    // Predicated region
    $region18: #{model_forward.1} parent=1 // pred_check
      _
    $region19: #{model_forward.1} parent=1 // pred_check_branch
      %28 = sbr.rel (0) target = $region21
    $region20: #{model_forward.1} parent=1 // pred_region
      %s30 = ssub.s32 7680, 7680
      %31 = vsyncadd [#allocation3], %s30
      %s32 = sshll.u32 [#allocation2], 4
      %s33 = int_to_ptr.vmem [resolvable:$true] %s32
      %38 = dma.hbm_to_vmem [thread:$0]  %s4, 7680, %s33, [#allocation3], 384, 384, 24
    $region21: #{model_forward.1} parent=1 // pred_fallthru
      _
    // Predicated region
    $region22: #{model_forward.1} parent=1 // pred_check
      _
    $region23: #{model_forward.1} parent=1 // pred_check_branch
      %40 = sbr.rel (0) target = $region25
    $region24: #{model_forward.1} parent=1 // pred_region
      _
    $region25: #{model_forward.1} parent=1 // pred_fallthru
      _
    // Predicated region
    $region26: #{model_forward.1} parent=1 // pred_check
      _
    $region27: #{model_forward.1} parent=1 // pred_check_branch
      %42 = sbr.rel (0) target = $region29
    $region28: #{model_forward.1} parent=1 // pred_region
      _
    $region29: #{model_forward.1} parent=1 // pred_fallthru
      _
    // Predicated region
    $region30: #{model_forward.1} parent=1 // pred_check
      _
    $region31: #{model_forward.1} parent=1 // pred_check_branch
      %44 = sbr.rel (0) target = $region33
    $region32: #{model_forward.1} parent=1 // pred_region
      _
    $region33: #{model_forward.1} parent=1 // pred_fallthru
      _
    // Predicated region
    $region34: #{model_forward.1} parent=1 // pred_check
      _
    $region35: #{model_forward.1} parent=1 // pred_check_branch
      %46 = sbr.rel (0) target = $region37
    $region36: #{model_forward.1} parent=1 // pred_region
      _
    $region37: #{model_forward.1} parent=1 // pred_fallthru
      _
    // Predicated region
    $region38: #{model_forward.1} parent=1 // pred_check
      _
    $region39: #{model_forward.1} parent=1 // pred_check_branch
      %48 = sbr.rel (0) target = $region41
    $region40: #{model_forward.1} parent=1 // pred_region
      _
    $region41: #{model_forward.1} parent=1 // pred_fallthru
      _
    // Predicated region
    $region42: #{model_forward.1} parent=1 // pred_check
      _
    $region43: #{model_forward.1} parent=1 // pred_check_branch
      %50 = sbr.rel (0) target = $region45
    $region44: #{model_forward.1} parent=1 // pred_region
      _
    $region45: #{model_forward.1} parent=1 // pred_fallthru
      _
    // Predicated region
    $region46: #{model_forward.1} parent=1 // pred_check
      _
    $region47: #{model_forward.1} parent=1 // pred_check_branch
      %52 = sbr.rel (0) target = $region49
    $region48: #{model_forward.1} parent=1 // pred_region
      _
    $region49: #{model_forward.1} parent=1 // pred_fallthru
      _
    // Predicated region
    $region50: #{model_forward.1} parent=1 // pred_check
      _
    $region51: #{model_forward.1} parent=1 // pred_check_branch
      %54 = sbr.rel (0) target = $region53
    $region52: #{model_forward.1} parent=1 // pred_region
      _
    $region53: #{model_forward.1} parent=1 // pred_fallthru
      _
    // Predicated region
    $region54: #{model_forward.1} parent=1 // pred_check
      _
    $region55: #{model_forward.1} parent=1 // pred_check_branch
      %56 = sbr.rel (0) target = $region57
    $region56: #{model_forward.1} parent=1 // pred_region
      %57 = dma.done [#allocation3], 7680
    $region57: #{model_forward.1} parent=1 // pred_fallthru
      _
    %v58 = vld [vmem:[%s0] sm:$0xff]
    %v59 = vld [vmem:[%s3] sm:$0xff]
    %v60 = vld [vmem:[%s3 + $0x8] sm:$0xff]
    %v61 = vld [vmem:[%s3 + $0x10] sm:$0xff]
    %v62 = vld [vmem:[%s3 + $0x18] sm:$0xff]
    %v63 = vld [vmem:[%s3 + $0x20] sm:$0xff]
    %v64 = vld [vmem:[%s3 + $0x28] sm:$0xff]
    %v65 = vld [vmem:[%s3 + $0x30] sm:$0x3f]
    %v66 = vld [vmem:[%s3 + $0x38] sm:$0x3f]
    %vm67 = vcmask 244736
    %v69 = vsel %vm67, %v58, 0
    %vm71 = vcmask 1045504
    %v73 = vsel %vm71, %v65, 0
    %v76 = vsel %vm71, %v66, 0
    %78 = vmatprep.subr.mxu0 %v60
    %79 = vmatpush1.msra.mxu0 %v59
    %80 = vmatprep.subr.mxu0 %v62
    %81 = vmatpush1.msra.mxu0 %v61
    %82 = vmatprep.subr.mxu0 %v64
    %83 = vmatpush1.msra.mxu0 %v63
    %84 = vmatprep.subr.mxu0 %v76
    %85 = vmatpush1.msra.mxu0 %v73
    %86 = vmatprep.subr.mxu0 0.0
    %87 = vmatpush1.msra.mxu0 0.0
    %88 = vmatprep.subr.mxu0 0.0
    %89 = vmatpush1.msra.mxu0 0.0
    %90 = vmatprep.subr.mxu0 0.0
    %91 = vmatpush1.msra.mxu0 0.0
    %92 = vmatprep.subr.mxu0 0.0
    %93 = vmatpush1.msra.mxu0 0.0
    %94 = vmatprep.subr.mxu0 0.0
    %95 = vmatpush1.msra.mxu0 0.0
    %96 = vmatprep.subr.mxu0 0.0
    %97 = vmatpush1.msra.mxu0 0.0
    %98 = vmatprep.subr.mxu0 0.0
    %99 = vmatpush1.msra.mxu0 0.0
    %100 = vmatprep.subr.mxu0 0.0
    %101 = vmatpush1.msra.mxu0 0.0
    %102 = vmatprep.subr.mxu0 0.0
    %103 = vmatpush1.msra.mxu0 0.0
    %104 = vmatprep.subr.mxu0 0.0
    %105 = vmatpush1.msra.mxu0 0.0
    %106 = vmatprep.subr.mxu0 0.0
    %107 = vmatpush1.msra.mxu0 0.0
    %108 = vmatprep.subr.mxu0 0.0
    %109 = vmatpush1.msra.mxu0 0.0
    %110 = vmatprep.subr.mxu0 0.0
    %111 = vmatpush1.msra.mxu0 0.0
    %112 = vmatprep.subr.mxu0 0.0
    %113 = vmatpush1.msra.mxu0 0.0
    %114 = vmatprep.subr.mxu0 0.0
    %115 = vmatpush1.msra.mxu0 0.0
    %116 = vmatprep.subr.mxu0 0.0
    %117 = vmatpush1.msra.mxu0 0.0
    %118 = vmatprep.subr.mxu0 0.0
    %119 = vmatpush1.msra.mxu0 0.0
    %120 = vmatprep.subr.mxu0 0.0
    %121 = vmatpush1.msra.mxu0 0.0
    %122 = vmatprep.subr.mxu0 0.0
    %123 = vmatpush1.msra.mxu0 0.0
    %124 = vmatprep.subr.mxu0 0.0
    %125 = vmatpush1.msra.mxu0 0.0
    %126 = vmatprep.subr.mxu0 0.0
    %127 = vmatpush1.msra.mxu0 0.0
    %128 = vmatprep.subr.mxu0 0.0
    %129 = vmatpush1.msra.mxu0 0.0
    %130 = vmatprep.subr.mxu0 0.0
    %131 = vmatpush1.msra.mxu0 0.0
    %132 = vmatprep.subr.mxu0 0.0
    %133 = vmatpush1.msra.mxu0 0.0
    %134 = vmatprep.subr.mxu0 0.0
    %135 = vmatpush1.msra.mxu0 0.0
    %136 = vmatprep.subr.mxu0 0.0
    %137 = vmatpush1.msra.mxu0 0.0
    %138 = vmatprep.subr.mxu0 0.0
    %139 = vmatpush1.msra.mxu0 0.0
    %140 = vmatprep.subr.mxu0 0.0
    %141 = vmatpush1.msra.mxu0 0.0
    %142 = vmatprep.mubr.f32.mxu0 0.0
    %143 = vmatmul.mubr.f32.gmra.mrb[0].mxu0 %v69
    %v144 = vpop.f32.mrb[0].mxu0
    %v145 = vadd.f32 0.0, %v144
    %v146 = vpop.f32.mrb[0].mxu0
    %v147 = vadd.f32 0.0, %v146
    %148 = vdwg.mxu0
    %v149 = vmax.f32 %v145, 0.0
    %v150 = vmax.f32 %v147, 0.0
    %v151 = vld [vmem:[#allocation2] sm:$0xff]
    %v152 = vld [vmem:[#allocation2 + $0x8] sm:$0xff]
    %v153 = vld [vmem:[#allocation2 + $0x10] sm:$0xff]
    %v154 = vld [vmem:[#allocation2 + $0x18] sm:$0xff]
    %v155 = vld [vmem:[#allocation2 + $0x20] sm:$0xff]
    %v156 = vld [vmem:[#allocation2 + $0x28] sm:$0xff]
    %v157 = vld [vmem:[#allocation2 + $0x30] sm:$0xff]
    %v158 = vld [vmem:[#allocation2 + $0x38] sm:$0xff]
    %v159 = vld [vmem:[#allocation2 + $0x40] sm:$0xff]
    %v160 = vld [vmem:[#allocation2 + $0x48] sm:$0xff]
    %v161 = vld [vmem:[#allocation2 + $0x50] sm:$0xff]
    %v162 = vld [vmem:[#allocation2 + $0x58] sm:$0xff]
    %v163 = vld [vmem:[#allocation2 + $0x60] sm:$0xff]
    %v164 = vld [vmem:[#allocation2 + $0x68] sm:$0xff]
    %v165 = vld [vmem:[#allocation2 + $0x70] sm:$0xff]
    %v166 = vld [vmem:[#allocation2 + $0x78] sm:$0xff]
    %v167 = vld [vmem:[#allocation2 + $0x80] sm:$0xff]
    %v168 = vld [vmem:[#allocation2 + $0x88] sm:$0xff]
    %v169 = vld [vmem:[#allocation2 + $0x90] sm:$0xff]
    %v170 = vld [vmem:[#allocation2 + $0x98] sm:$0xff]
    %v171 = vld [vmem:[#allocation2 + $0xa0] sm:$0xff]
    %v172 = vld [vmem:[#allocation2 + $0xa8] sm:$0xff]
    %v173 = vld [vmem:[#allocation2 + $0xb0] sm:$0xff]
    %v174 = vld [vmem:[#allocation2 + $0xb8] sm:$0xff]
    %v175 = vld [vmem:[#allocation2 + $0xc0] sm:$0xff]
    %v176 = vld [vmem:[#allocation2 + $0xc8] sm:$0xff]
    %v177 = vld [vmem:[#allocation2 + $0xd0] sm:$0xff]
    %v178 = vld [vmem:[#allocation2 + $0xd8] sm:$0xff]
    %v179 = vld [vmem:[#allocation2 + $0xe0] sm:$0xff]
    %v180 = vld [vmem:[#allocation2 + $0xe8] sm:$0xff]
    %v181 = vld [vmem:[#allocation2 + $0xf0] sm:$0xff]
    %v182 = vld [vmem:[#allocation2 + $0xf8] sm:$0xff]
    %v183 = vld [vmem:[#allocation2 + $0x100] sm:$0xff]
    %v184 = vld [vmem:[#allocation2 + $0x108] sm:$0xff]
    %v185 = vld [vmem:[#allocation2 + $0x110] sm:$0xff]
    %v186 = vld [vmem:[#allocation2 + $0x118] sm:$0xff]
    %v187 = vld [vmem:[#allocation2 + $0x120] sm:$0xff]
    %v188 = vld [vmem:[#allocation2 + $0x128] sm:$0xff]
    %v189 = vld [vmem:[#allocation2 + $0x130] sm:$0xff]
    %v190 = vld [vmem:[#allocation2 + $0x138] sm:$0xff]
    %v191 = vld [vmem:[#allocation2 + $0x140] sm:$0xff]
    %v192 = vld [vmem:[#allocation2 + $0x148] sm:$0xff]
    %v193 = vld [vmem:[#allocation2 + $0x150] sm:$0xff]
    %v194 = vld [vmem:[#allocation2 + $0x158] sm:$0xff]
    %v195 = vld [vmem:[#allocation2 + $0x160] sm:$0xff]
    %v196 = vld [vmem:[#allocation2 + $0x168] sm:$0xff]
    %v197 = vld [vmem:[#allocation2 + $0x170] sm:$0xff]
    %v198 = vld [vmem:[#allocation2 + $0x178] sm:$0xff]
    %v199 = vld [vmem:[#allocation2 + $0x180] sm:$0xff]
    %v200 = vld [vmem:[#allocation2 + $0x188] sm:$0xff]
    %v201 = vld [vmem:[#allocation2 + $0x190] sm:$0xff]
    %v202 = vld [vmem:[#allocation2 + $0x198] sm:$0xff]
    %v203 = vld [vmem:[#allocation2 + $0x1a0] sm:$0xff]
    %v204 = vld [vmem:[#allocation2 + $0x1a8] sm:$0xff]
    %v205 = vld [vmem:[#allocation2 + $0x1b0] sm:$0xff]
    %v206 = vld [vmem:[#allocation2 + $0x1b8] sm:$0xff]
    %v207 = vld [vmem:[#allocation2 + $0x1c0] sm:$0xff]
    %v208 = vld [vmem:[#allocation2 + $0x1c8] sm:$0xf]
    %v209 = vld [vmem:[#allocation2 + $0x1d0] sm:$0xf]
    %v210 = vld [vmem:[#allocation2 + $0x1d8] sm:$0xf]
    %v211 = vld [vmem:[%s5] sm:$0x7]
    %v213 = vlaneseq
    %v214 = vshrl.u32 %v213, 7
    %v215 = vsub.s32 0, %v214
    %v216 = vrot.slane %v211, %v215
    %v217 = vlaneseq
    %v218 = vshrl.u32 %v217, 7
    %v219 = vsub.s32 1, %v218
    %v220 = vrot.slane %v211, %v219
    %v221 = vlaneseq
    %v222 = vshrl.u32 %v221, 7
    %v223 = vsub.s32 2, %v222
    %v224 = vrot.slane %v211, %v223
    %vm228 = vcmask 228352
    %v230 = vsel %vm228, %v150, 0
    %vm232 = vcmask 1043456
    %v234 = vsel %vm232, %v208, 0
    %v237 = vsel %vm232, %v209, 0
    %v240 = vsel %vm232, %v210, 0
    %242 = vmatprep.subr.mxu0 %v152
    %243 = vmatpush1.msra.mxu0 %v151
    %244 = vmatprep.subr.mxu0 %v155
    %245 = vmatpush1.msra.mxu0 %v154
    %246 = vmatprep.subr.mxu0 %v158
    %247 = vmatpush1.msra.mxu0 %v157
    %248 = vmatprep.subr.mxu0 %v161
    %249 = vmatpush1.msra.mxu0 %v160
    %250 = vmatprep.subr.mxu0 %v164
    %251 = vmatpush1.msra.mxu0 %v163
    %252 = vmatprep.subr.mxu0 %v167
    %253 = vmatpush1.msra.mxu0 %v166
    %254 = vmatprep.subr.mxu0 %v170
    %255 = vmatpush1.msra.mxu0 %v169
    %256 = vmatprep.subr.mxu0 %v173
    %257 = vmatpush1.msra.mxu0 %v172
    %258 = vmatprep.subr.mxu0 %v176
    %259 = vmatpush1.msra.mxu0 %v175
    %260 = vmatprep.subr.mxu0 %v179
    %261 = vmatpush1.msra.mxu0 %v178
    %262 = vmatprep.subr.mxu0 %v182
    %263 = vmatpush1.msra.mxu0 %v181
    %264 = vmatprep.subr.mxu0 %v185
    %265 = vmatpush1.msra.mxu0 %v184
    %266 = vmatprep.subr.mxu0 %v188
    %267 = vmatpush1.msra.mxu0 %v187
    %268 = vmatprep.subr.mxu0 %v191
    %269 = vmatpush1.msra.mxu0 %v190
    %270 = vmatprep.subr.mxu0 %v194
    %271 = vmatpush1.msra.mxu0 %v193
    %272 = vmatprep.subr.mxu0 %v197
    %273 = vmatpush1.msra.mxu0 %v196
    %274 = vmatprep.subr.mxu0 %v200
    %275 = vmatpush1.msra.mxu0 %v199
    %276 = vmatprep.subr.mxu0 %v203
    %277 = vmatpush1.msra.mxu0 %v202
    %278 = vmatprep.subr.mxu0 %v206
    %279 = vmatpush1.msra.mxu0 %v205
    %280 = vmatprep.subr.mxu0 %v237
    %281 = vmatpush1.msra.mxu0 %v234
    %282 = vmatprep.subr.mxu0 0.0
    %283 = vmatpush1.msra.mxu0 0.0
    %284 = vmatprep.subr.mxu0 0.0
    %285 = vmatpush1.msra.mxu0 0.0
    %286 = vmatprep.subr.mxu0 0.0
    %287 = vmatpush1.msra.mxu0 0.0
    %288 = vmatprep.subr.mxu0 0.0
    %289 = vmatpush1.msra.mxu0 0.0
    %290 = vmatprep.subr.mxu0 0.0
    %291 = vmatpush1.msra.mxu0 0.0
    %292 = vmatprep.subr.mxu0 0.0
    %293 = vmatpush1.msra.mxu0 0.0
    %294 = vmatprep.subr.mxu0 0.0
    %295 = vmatpush1.msra.mxu0 0.0
    %296 = vmatprep.subr.mxu0 0.0
    %297 = vmatpush1.msra.mxu0 0.0
    %298 = vmatprep.subr.mxu0 0.0
    %299 = vmatpush1.msra.mxu0 0.0
    %300 = vmatprep.subr.mxu0 0.0
    %301 = vmatpush1.msra.mxu0 0.0
    %302 = vmatprep.subr.mxu0 0.0
    %303 = vmatpush1.msra.mxu0 0.0
    %304 = vmatprep.subr.mxu0 0.0
    %305 = vmatpush1.msra.mxu0 0.0
    %306 = vmatprep.mubr.f32.mxu0 %v230
    %307 = vmatmul.mubr.f32.gmra.mrb[0].mxu0 %v149
    %v308 = vpop.f32.mrb[0].mxu0
    %v309 = vadd.f32 %v216, %v308
    %v310 = vpop.f32.mrb[0].mxu0
    %v311 = vadd.f32 %v220, %v310
    %312 = vdwg.mxu0
    %313 = vmatprep.subr.mxu0 0.0
    %314 = vmatpush1.msra.mxu0 %v153
    %315 = vmatprep.subr.mxu0 0.0
    %316 = vmatpush1.msra.mxu0 %v156
    %317 = vmatprep.subr.mxu0 0.0
    %318 = vmatpush1.msra.mxu0 %v159
    %319 = vmatprep.subr.mxu0 0.0
    %320 = vmatpush1.msra.mxu0 %v162
    %321 = vmatprep.subr.mxu0 0.0
    %322 = vmatpush1.msra.mxu0 %v165
    %323 = vmatprep.subr.mxu0 0.0
    %324 = vmatpush1.msra.mxu0 %v168
    %325 = vmatprep.subr.mxu0 0.0
    %326 = vmatpush1.msra.mxu0 %v171
    %327 = vmatprep.subr.mxu0 0.0
    %328 = vmatpush1.msra.mxu0 %v174
    %329 = vmatprep.subr.mxu0 0.0
    %330 = vmatpush1.msra.mxu0 %v177
    %331 = vmatprep.subr.mxu0 0.0
    %332 = vmatpush1.msra.mxu0 %v180
    %333 = vmatprep.subr.mxu0 0.0
    %334 = vmatpush1.msra.mxu0 %v183
    %335 = vmatprep.subr.mxu0 0.0
    %336 = vmatpush1.msra.mxu0 %v186
    %337 = vmatprep.subr.mxu0 0.0
    %338 = vmatpush1.msra.mxu0 %v189
    %339 = vmatprep.subr.mxu0 0.0
    %340 = vmatpush1.msra.mxu0 %v192
    %341 = vmatprep.subr.mxu0 0.0
    %342 = vmatpush1.msra.mxu0 %v195
    %343 = vmatprep.subr.mxu0 0.0
    %344 = vmatpush1.msra.mxu0 %v198
    %345 = vmatprep.subr.mxu0 0.0
    %346 = vmatpush1.msra.mxu0 %v201
    %347 = vmatprep.subr.mxu0 0.0
    %348 = vmatpush1.msra.mxu0 %v204
    %349 = vmatprep.subr.mxu0 0.0
    %350 = vmatpush1.msra.mxu0 %v207
    %351 = vmatprep.subr.mxu0 0.0
    %352 = vmatpush1.msra.mxu0 %v240
    %353 = vmatprep.subr.mxu0 0.0
    %354 = vmatpush1.msra.mxu0 0.0
    %355 = vmatprep.subr.mxu0 0.0
    %356 = vmatpush1.msra.mxu0 0.0
    %357 = vmatprep.subr.mxu0 0.0
    %358 = vmatpush1.msra.mxu0 0.0
    %359 = vmatprep.subr.mxu0 0.0
    %360 = vmatpush1.msra.mxu0 0.0
    %361 = vmatprep.subr.mxu0 0.0
    %362 = vmatpush1.msra.mxu0 0.0
    %363 = vmatprep.subr.mxu0 0.0
    %364 = vmatpush1.msra.mxu0 0.0
    %365 = vmatprep.subr.mxu0 0.0
    %366 = vmatpush1.msra.mxu0 0.0
    %367 = vmatprep.subr.mxu0 0.0
    %368 = vmatpush1.msra.mxu0 0.0
    %369 = vmatprep.subr.mxu0 0.0
    %370 = vmatpush1.msra.mxu0 0.0
    %371 = vmatprep.subr.mxu0 0.0
    %372 = vmatpush1.msra.mxu0 0.0
    %373 = vmatprep.subr.mxu0 0.0
    %374 = vmatpush1.msra.mxu0 0.0
    %375 = vmatprep.subr.mxu0 0.0
    %376 = vmatpush1.msra.mxu0 0.0
    %377 = vmatprep.mubr.f32.mxu0 %v230
    %378 = vmatmul.mubr.f32.gmra.mrb[0].mxu0 %v149
    %v379 = vpop.f32.mrb[0].mxu0
    %v380 = vadd.f32 %v224, %v379
    %v381 = vpop.f32.mrb[0].mxu0
    %382 = vdwg.mxu0
    %v383 = vld [vmem:[%s1] sm:$0xff]
    %v384 = vld [vmem:[%s2] sm:$0xff]
    %v385 = vld [vmem:[%s8] sm:$0xff]
    %v386 = vld [vmem:[%s8 + $0x8] sm:$0xff]
    %vm387 = vcmask 130048
    %v389 = vsel %vm387, %v383, 0
    %391 = vmatprep.subr.mxu0 0.0
    %392 = vmatpush1.msra.mxu0 %v385
    %393 = vmatprep.subr.mxu0 0.0
    %394 = vmatpush1.msra.mxu0 %v386
    %395 = vmatprep.subr.mxu0 0.0
    %396 = vmatpush1.msra.mxu0 0.0
    %397 = vmatprep.subr.mxu0 0.0
    %398 = vmatpush1.msra.mxu0 0.0
    %399 = vmatprep.subr.mxu0 0.0
    %400 = vmatpush1.msra.mxu0 0.0
    %401 = vmatprep.subr.mxu0 0.0
    %402 = vmatpush1.msra.mxu0 0.0
    %403 = vmatprep.subr.mxu0 0.0
    %404 = vmatpush1.msra.mxu0 0.0
    %405 = vmatprep.subr.mxu0 0.0
    %406 = vmatpush1.msra.mxu0 0.0
    %407 = vmatprep.subr.mxu0 0.0
    %408 = vmatpush1.msra.mxu0 0.0
    %409 = vmatprep.subr.mxu0 0.0
    %410 = vmatpush1.msra.mxu0 0.0
    %411 = vmatprep.subr.mxu0 0.0
    %412 = vmatpush1.msra.mxu0 0.0
    %413 = vmatprep.subr.mxu0 0.0
    %414 = vmatpush1.msra.mxu0 0.0
    %415 = vmatprep.subr.mxu0 0.0
    %416 = vmatpush1.msra.mxu0 0.0
    %417 = vmatprep.subr.mxu0 0.0
    %418 = vmatpush1.msra.mxu0 0.0
    %419 = vmatprep.subr.mxu0 0.0
    %420 = vmatpush1.msra.mxu0 0.0
    %421 = vmatprep.subr.mxu0 0.0
    %422 = vmatpush1.msra.mxu0 0.0
    %423 = vmatprep.subr.mxu0 0.0
    %424 = vmatpush1.msra.mxu0 0.0
    %425 = vmatprep.subr.mxu0 0.0
    %426 = vmatpush1.msra.mxu0 0.0
    %427 = vmatprep.subr.mxu0 0.0
    %428 = vmatpush1.msra.mxu0 0.0
    %429 = vmatprep.subr.mxu0 0.0
    %430 = vmatpush1.msra.mxu0 0.0
    %431 = vmatprep.subr.mxu0 0.0
    %432 = vmatpush1.msra.mxu0 0.0
    %433 = vmatprep.subr.mxu0 0.0
    %434 = vmatpush1.msra.mxu0 0.0
    %435 = vmatprep.subr.mxu0 0.0
    %436 = vmatpush1.msra.mxu0 0.0
    %437 = vmatprep.subr.mxu0 0.0
    %438 = vmatpush1.msra.mxu0 0.0
    %439 = vmatprep.subr.mxu0 0.0
    %440 = vmatpush1.msra.mxu0 0.0
    %441 = vmatprep.subr.mxu0 0.0
    %442 = vmatpush1.msra.mxu0 0.0
    %443 = vmatprep.subr.mxu0 0.0
    %444 = vmatpush1.msra.mxu0 0.0
    %445 = vmatprep.subr.mxu0 0.0
    %446 = vmatpush1.msra.mxu0 0.0
    %447 = vmatprep.subr.mxu0 0.0
    %448 = vmatpush1.msra.mxu0 0.0
    %449 = vmatprep.subr.mxu0 0.0
    %450 = vmatpush1.msra.mxu0 0.0
    %451 = vmatprep.subr.mxu0 0.0
    %452 = vmatpush1.msra.mxu0 0.0
    %453 = vmatprep.subr.mxu0 0.0
    %454 = vmatpush1.msra.mxu0 0.0
    %455 = vmatprep.mubr.f32.mxu0 0.0
    %456 = vmatmul.mubr.f32.gmra.mrb[0].mxu0 %v389
    %v457 = vpop.f32.mrb[0].mxu0
    %v458 = vadd.f32 0.0, %v457
    %v459 = vpop.f32.mrb[0].mxu0
    %460 = vdwg.mxu0
    %v461 = vadd.f32 %v309, %v458
    %v462 = vxor.u32 %v461, 2147483648
    %v463 = vmul.f32 %v462, 1.442695
    %v464 = vpow.pop %v463
    %v465 = vadd.f32 %v464, 1.0
    %v466 = vrcp.pop %v465
    %v467 = vmul.f32 1.0, %v466
    %v468 = vtanh.pop %v461
    %470 = vrot.lane.b32.xlu0 %v384, 16
    %v471 = vpop.permute.xlu0 %470
    %v473 = vmul.f32 %v467, %v471
    %475 = vrot.lane.b32.xlu0 %v468, 80
    %v476 = vpop.permute.xlu0 %475
    %v478 = vmul.f32 %v467, %v476
    %480 = vrot.lane.b32.xlu0 %v478, 16
    %v481 = vpop.permute.xlu0 %480
    %v483 = vadd.f32 %v473, %v481
    %v484 = vtanh.pop %v483
    %486 = vrot.lane.b32.xlu0 %v484, 16
    %v487 = vpop.permute.xlu0 %486
    %v489 = vmul.f32 %v467, %v487
    %491 = vrot.lane.b32.xlu0 %v489, 96
    %v492 = vpop.permute.xlu0 %491
    %v493 = vsel %vm387, %v492, 0
    %495 = vmatprep.subr.mxu0 0.0
    %496 = vmatpush1.msra.mxu0 %v385
    %497 = vmatprep.subr.mxu0 0.0
    %498 = vmatpush1.msra.mxu0 %v386
    %499 = vmatprep.subr.mxu0 0.0
    %500 = vmatpush1.msra.mxu0 0.0
    %501 = vmatprep.subr.mxu0 0.0
    %502 = vmatpush1.msra.mxu0 0.0
    %503 = vmatprep.subr.mxu0 0.0
    %504 = vmatpush1.msra.mxu0 0.0
    %505 = vmatprep.subr.mxu0 0.0
    %506 = vmatpush1.msra.mxu0 0.0
    %507 = vmatprep.subr.mxu0 0.0
    %508 = vmatpush1.msra.mxu0 0.0
    %509 = vmatprep.subr.mxu0 0.0
    %510 = vmatpush1.msra.mxu0 0.0
    %511 = vmatprep.subr.mxu0 0.0
    %512 = vmatpush1.msra.mxu0 0.0
    %513 = vmatprep.subr.mxu0 0.0
    %514 = vmatpush1.msra.mxu0 0.0
    %515 = vmatprep.subr.mxu0 0.0
    %516 = vmatpush1.msra.mxu0 0.0
    %517 = vmatprep.subr.mxu0 0.0
    %518 = vmatpush1.msra.mxu0 0.0
    %519 = vmatprep.subr.mxu0 0.0
    %520 = vmatpush1.msra.mxu0 0.0
    %521 = vmatprep.subr.mxu0 0.0
    %522 = vmatpush1.msra.mxu0 0.0
    %523 = vmatprep.subr.mxu0 0.0
    %524 = vmatpush1.msra.mxu0 0.0
    %525 = vmatprep.subr.mxu0 0.0
    %526 = vmatpush1.msra.mxu0 0.0
    %527 = vmatprep.subr.mxu0 0.0
    %528 = vmatpush1.msra.mxu0 0.0
    %529 = vmatprep.subr.mxu0 0.0
    %530 = vmatpush1.msra.mxu0 0.0
    %531 = vmatprep.subr.mxu0 0.0
    %532 = vmatpush1.msra.mxu0 0.0
    %533 = vmatprep.subr.mxu0 0.0
    %534 = vmatpush1.msra.mxu0 0.0
    %535 = vmatprep.subr.mxu0 0.0
    %536 = vmatpush1.msra.mxu0 0.0
    %537 = vmatprep.subr.mxu0 0.0
    %538 = vmatpush1.msra.mxu0 0.0
    %539 = vmatprep.subr.mxu0 0.0
    %540 = vmatpush1.msra.mxu0 0.0
    %541 = vmatprep.subr.mxu0 0.0
    %542 = vmatpush1.msra.mxu0 0.0
    %543 = vmatprep.subr.mxu0 0.0
    %544 = vmatpush1.msra.mxu0 0.0
    %545 = vmatprep.subr.mxu0 0.0
    %546 = vmatpush1.msra.mxu0 0.0
    %547 = vmatprep.subr.mxu0 0.0
    %548 = vmatpush1.msra.mxu0 0.0
    %549 = vmatprep.subr.mxu0 0.0
    %550 = vmatpush1.msra.mxu0 0.0
    %551 = vmatprep.subr.mxu0 0.0
    %552 = vmatpush1.msra.mxu0 0.0
    %553 = vmatprep.subr.mxu0 0.0
    %554 = vmatpush1.msra.mxu0 0.0
    %555 = vmatprep.subr.mxu0 0.0
    %556 = vmatpush1.msra.mxu0 0.0
    %557 = vmatprep.subr.mxu0 0.0
    %558 = vmatpush1.msra.mxu0 0.0
    %559 = vmatprep.mubr.f32.mxu0 0.0
    %560 = vmatmul.mubr.f32.gmra.mrb[0].mxu0 %v493
    %v561 = vpop.f32.mrb[0].mxu0
    %v562 = vadd.f32 0.0, %v561
    %v563 = vpop.f32.mrb[0].mxu0
    %564 = vdwg.mxu0
    %566 = vrot.lane.b32.xlu0 %v562, 64
    %v567 = vpop.permute.xlu0 %566
    %v569 = vadd.f32 %v309, %v567
    %v570 = vxor.u32 %v569, 2147483648
    %v571 = vmul.f32 %v570, 1.442695
    %v572 = vpow.pop %v571
    %v573 = vadd.f32 %v572, 1.0
    %v574 = vrcp.pop %v573
    %v575 = vmul.f32 1.0, %v574
    %v576 = vtanh.pop %v569
    %578 = vrot.lane.b32.xlu0 %v483, 64
    %v579 = vpop.permute.xlu0 %578
    %v581 = vmul.f32 %v575, %v579
    %583 = vrot.lane.b32.xlu0 %v576, 80
    %v584 = vpop.permute.xlu0 %583
    %v586 = vmul.f32 %v575, %v584
    %588 = vrot.lane.b32.xlu0 %v586, 16
    %v589 = vpop.permute.xlu0 %588
    %v591 = vadd.f32 %v581, %v589
    %v592 = vtanh.pop %v591
    %594 = vrot.lane.b32.xlu0 %v592, 16
    %v595 = vpop.permute.xlu0 %594
    %v597 = vmul.f32 %v575, %v595
    %599 = vrot.lane.b32.xlu0 %v597, 32
    %v600 = vpop.permute.xlu0 %599
    %v601 = vsel %vm387, %v600, 0
    %603 = vmatprep.subr.mxu0 0.0
    %604 = vmatpush1.msra.mxu0 %v385
    %605 = vmatprep.subr.mxu0 0.0
    %606 = vmatpush1.msra.mxu0 %v386
    %607 = vmatprep.subr.mxu0 0.0
    %608 = vmatpush1.msra.mxu0 0.0
    %609 = vmatprep.subr.mxu0 0.0
    %610 = vmatpush1.msra.mxu0 0.0
    %611 = vmatprep.subr.mxu0 0.0
    %612 = vmatpush1.msra.mxu0 0.0
    %613 = vmatprep.subr.mxu0 0.0
    %614 = vmatpush1.msra.mxu0 0.0
    %615 = vmatprep.subr.mxu0 0.0
    %616 = vmatpush1.msra.mxu0 0.0
    %617 = vmatprep.subr.mxu0 0.0
    %618 = vmatpush1.msra.mxu0 0.0
    %619 = vmatprep.subr.mxu0 0.0
    %620 = vmatpush1.msra.mxu0 0.0
    %621 = vmatprep.subr.mxu0 0.0
    %622 = vmatpush1.msra.mxu0 0.0
    %623 = vmatprep.subr.mxu0 0.0
    %624 = vmatpush1.msra.mxu0 0.0
    %625 = vmatprep.subr.mxu0 0.0
    %626 = vmatpush1.msra.mxu0 0.0
    %627 = vmatprep.subr.mxu0 0.0
    %628 = vmatpush1.msra.mxu0 0.0
    %629 = vmatprep.subr.mxu0 0.0
    %630 = vmatpush1.msra.mxu0 0.0
    %631 = vmatprep.subr.mxu0 0.0
    %632 = vmatpush1.msra.mxu0 0.0
    %633 = vmatprep.subr.mxu0 0.0
    %634 = vmatpush1.msra.mxu0 0.0
    %635 = vmatprep.subr.mxu0 0.0
    %636 = vmatpush1.msra.mxu0 0.0
    %637 = vmatprep.subr.mxu0 0.0
    %638 = vmatpush1.msra.mxu0 0.0
    %639 = vmatprep.subr.mxu0 0.0
    %640 = vmatpush1.msra.mxu0 0.0
    %641 = vmatprep.subr.mxu0 0.0
    %642 = vmatpush1.msra.mxu0 0.0
    %643 = vmatprep.subr.mxu0 0.0
    %644 = vmatpush1.msra.mxu0 0.0
    %645 = vmatprep.subr.mxu0 0.0
    %646 = vmatpush1.msra.mxu0 0.0
    %647 = vmatprep.subr.mxu0 0.0
    %648 = vmatpush1.msra.mxu0 0.0
    %649 = vmatprep.subr.mxu0 0.0
    %650 = vmatpush1.msra.mxu0 0.0
    %651 = vmatprep.subr.mxu0 0.0
    %652 = vmatpush1.msra.mxu0 0.0
    %653 = vmatprep.subr.mxu0 0.0
    %654 = vmatpush1.msra.mxu0 0.0
    %655 = vmatprep.subr.mxu0 0.0
    %656 = vmatpush1.msra.mxu0 0.0
    %657 = vmatprep.subr.mxu0 0.0
    %658 = vmatpush1.msra.mxu0 0.0
    %659 = vmatprep.subr.mxu0 0.0
    %660 = vmatpush1.msra.mxu0 0.0
    %661 = vmatprep.subr.mxu0 0.0
    %662 = vmatpush1.msra.mxu0 0.0
    %663 = vmatprep.subr.mxu0 0.0
    %664 = vmatpush1.msra.mxu0 0.0
    %665 = vmatprep.subr.mxu0 0.0
    %666 = vmatpush1.msra.mxu0 0.0
    %667 = vmatprep.mubr.f32.mxu0 0.0
    %668 = vmatmul.mubr.f32.gmra.mrb[0].mxu0 %v601
    %v669 = vpop.f32.mrb[0].mxu0
    %v670 = vadd.f32 0.0, %v669
    %v671 = vpop.f32.mrb[0].mxu0
    %672 = vdwg.mxu0
    %v673 = vadd.f32 %v311, %v670
    %v674 = vxor.u32 %v673, 2147483648
    %v675 = vmul.f32 %v674, 1.442695
    %v676 = vpow.pop %v675
    %v677 = vadd.f32 %v676, 1.0
    %v678 = vrcp.pop %v677
    %v679 = vmul.f32 1.0, %v678
    %v680 = vtanh.pop %v673
    %682 = vrot.lane.b32.xlu0 %v591, 64
    %v683 = vpop.permute.xlu0 %682
    %v685 = vmul.f32 %v679, %v683
    %687 = vrot.lane.b32.xlu0 %v680, 80
    %v688 = vpop.permute.xlu0 %687
    %v690 = vmul.f32 %v679, %v688
    %692 = vrot.lane.b32.xlu0 %v690, 16
    %v693 = vpop.permute.xlu0 %692
    %v695 = vadd.f32 %v685, %v693
    %v696 = vtanh.pop %v695
    %698 = vrot.lane.b32.xlu0 %v696, 16
    %v699 = vpop.permute.xlu0 %698
    %v701 = vmul.f32 %v679, %v699
    %703 = vrot.lane.b32.xlu0 %v701, 96
    %v704 = vpop.permute.xlu0 %703
    %v705 = vsel %vm387, %v704, 0
    %707 = vmatprep.subr.mxu0 0.0
    %708 = vmatpush1.msra.mxu0 %v385
    %709 = vmatprep.subr.mxu0 0.0
    %710 = vmatpush1.msra.mxu0 %v386
    %711 = vmatprep.subr.mxu0 0.0
    %712 = vmatpush1.msra.mxu0 0.0
    %713 = vmatprep.subr.mxu0 0.0
    %714 = vmatpush1.msra.mxu0 0.0
    %715 = vmatprep.subr.mxu0 0.0
    %716 = vmatpush1.msra.mxu0 0.0
    %717 = vmatprep.subr.mxu0 0.0
    %718 = vmatpush1.msra.mxu0 0.0
    %719 = vmatprep.subr.mxu0 0.0
    %720 = vmatpush1.msra.mxu0 0.0
    %721 = vmatprep.subr.mxu0 0.0
    %722 = vmatpush1.msra.mxu0 0.0
    %723 = vmatprep.subr.mxu0 0.0
    %724 = vmatpush1.msra.mxu0 0.0
    %725 = vmatprep.subr.mxu0 0.0
    %726 = vmatpush1.msra.mxu0 0.0
    %727 = vmatprep.subr.mxu0 0.0
    %728 = vmatpush1.msra.mxu0 0.0
    %729 = vmatprep.subr.mxu0 0.0
    %730 = vmatpush1.msra.mxu0 0.0
    %731 = vmatprep.subr.mxu0 0.0
    %732 = vmatpush1.msra.mxu0 0.0
    %733 = vmatprep.subr.mxu0 0.0
    %734 = vmatpush1.msra.mxu0 0.0
    %735 = vmatprep.subr.mxu0 0.0
    %736 = vmatpush1.msra.mxu0 0.0
    %737 = vmatprep.subr.mxu0 0.0
    %738 = vmatpush1.msra.mxu0 0.0
    %739 = vmatprep.subr.mxu0 0.0
    %740 = vmatpush1.msra.mxu0 0.0
    %741 = vmatprep.subr.mxu0 0.0
    %742 = vmatpush1.msra.mxu0 0.0
    %743 = vmatprep.subr.mxu0 0.0
    %744 = vmatpush1.msra.mxu0 0.0
    %745 = vmatprep.subr.mxu0 0.0
    %746 = vmatpush1.msra.mxu0 0.0
    %747 = vmatprep.subr.mxu0 0.0
    %748 = vmatpush1.msra.mxu0 0.0
    %749 = vmatprep.subr.mxu0 0.0
    %750 = vmatpush1.msra.mxu0 0.0
    %751 = vmatprep.subr.mxu0 0.0
    %752 = vmatpush1.msra.mxu0 0.0
    %753 = vmatprep.subr.mxu0 0.0
    %754 = vmatpush1.msra.mxu0 0.0
    %755 = vmatprep.subr.mxu0 0.0
    %756 = vmatpush1.msra.mxu0 0.0
    %757 = vmatprep.subr.mxu0 0.0
    %758 = vmatpush1.msra.mxu0 0.0
    %759 = vmatprep.subr.mxu0 0.0
    %760 = vmatpush1.msra.mxu0 0.0
    %761 = vmatprep.subr.mxu0 0.0
    %762 = vmatpush1.msra.mxu0 0.0
    %763 = vmatprep.subr.mxu0 0.0
    %764 = vmatpush1.msra.mxu0 0.0
    %765 = vmatprep.subr.mxu0 0.0
    %766 = vmatpush1.msra.mxu0 0.0
    %767 = vmatprep.subr.mxu0 0.0
    %768 = vmatpush1.msra.mxu0 0.0
    %769 = vmatprep.subr.mxu0 0.0
    %770 = vmatpush1.msra.mxu0 0.0
    %771 = vmatprep.mubr.f32.mxu0 0.0
    %772 = vmatmul.mubr.f32.gmra.mrb[0].mxu0 %v705
    %v773 = vpop.f32.mrb[0].mxu0
    %v774 = vadd.f32 0.0, %v773
    %v775 = vpop.f32.mrb[0].mxu0
    %776 = vdwg.mxu0
    %778 = vrot.lane.b32.xlu0 %v774, 64
    %v779 = vpop.permute.xlu0 %778
    %v781 = vadd.f32 %v311, %v779
    %v782 = vxor.u32 %v781, 2147483648
    %v783 = vmul.f32 %v782, 1.442695
    %v784 = vpow.pop %v783
    %v785 = vadd.f32 %v784, 1.0
    %v786 = vrcp.pop %v785
    %v787 = vmul.f32 1.0, %v786
    %v788 = vtanh.pop %v781
    %790 = vrot.lane.b32.xlu0 %v695, 64
    %v791 = vpop.permute.xlu0 %790
    %v793 = vmul.f32 %v787, %v791
    %795 = vrot.lane.b32.xlu0 %v788, 80
    %v796 = vpop.permute.xlu0 %795
    %v798 = vmul.f32 %v787, %v796
    %800 = vrot.lane.b32.xlu0 %v798, 16
    %v801 = vpop.permute.xlu0 %800
    %v803 = vadd.f32 %v793, %v801
    %v804 = vtanh.pop %v803
    %806 = vrot.lane.b32.xlu0 %v804, 16
    %v807 = vpop.permute.xlu0 %806
    %v809 = vmul.f32 %v787, %v807
    %811 = vrot.lane.b32.xlu0 %v809, 32
    %v812 = vpop.permute.xlu0 %811
    %v813 = vsel %vm387, %v812, 0
    %815 = vmatprep.subr.mxu0 0.0
    %816 = vmatpush1.msra.mxu0 %v385
    %817 = vmatprep.subr.mxu0 0.0
    %818 = vmatpush1.msra.mxu0 %v386
    %819 = vmatprep.subr.mxu0 0.0
    %820 = vmatpush1.msra.mxu0 0.0
    %821 = vmatprep.subr.mxu0 0.0
    %822 = vmatpush1.msra.mxu0 0.0
    %823 = vmatprep.subr.mxu0 0.0
    %824 = vmatpush1.msra.mxu0 0.0
    %825 = vmatprep.subr.mxu0 0.0
    %826 = vmatpush1.msra.mxu0 0.0
    %827 = vmatprep.subr.mxu0 0.0
    %828 = vmatpush1.msra.mxu0 0.0
    %829 = vmatprep.subr.mxu0 0.0
    %830 = vmatpush1.msra.mxu0 0.0
    %831 = vmatprep.subr.mxu0 0.0
    %832 = vmatpush1.msra.mxu0 0.0
    %833 = vmatprep.subr.mxu0 0.0
    %834 = vmatpush1.msra.mxu0 0.0
    %835 = vmatprep.subr.mxu0 0.0
    %836 = vmatpush1.msra.mxu0 0.0
    %837 = vmatprep.subr.mxu0 0.0
    %838 = vmatpush1.msra.mxu0 0.0
    %839 = vmatprep.subr.mxu0 0.0
    %840 = vmatpush1.msra.mxu0 0.0
    %841 = vmatprep.subr.mxu0 0.0
    %842 = vmatpush1.msra.mxu0 0.0
    %843 = vmatprep.subr.mxu0 0.0
    %844 = vmatpush1.msra.mxu0 0.0
    %845 = vmatprep.subr.mxu0 0.0
    %846 = vmatpush1.msra.mxu0 0.0
    %847 = vmatprep.subr.mxu0 0.0
    %848 = vmatpush1.msra.mxu0 0.0
    %849 = vmatprep.subr.mxu0 0.0
    %850 = vmatpush1.msra.mxu0 0.0
    %851 = vmatprep.subr.mxu0 0.0
    %852 = vmatpush1.msra.mxu0 0.0
    %853 = vmatprep.subr.mxu0 0.0
    %854 = vmatpush1.msra.mxu0 0.0
    %855 = vmatprep.subr.mxu0 0.0
    %856 = vmatpush1.msra.mxu0 0.0
    %857 = vmatprep.subr.mxu0 0.0
    %858 = vmatpush1.msra.mxu0 0.0
    %859 = vmatprep.subr.mxu0 0.0
    %860 = vmatpush1.msra.mxu0 0.0
    %861 = vmatprep.subr.mxu0 0.0
    %862 = vmatpush1.msra.mxu0 0.0
    %863 = vmatprep.subr.mxu0 0.0
    %864 = vmatpush1.msra.mxu0 0.0
    %865 = vmatprep.subr.mxu0 0.0
    %866 = vmatpush1.msra.mxu0 0.0
    %867 = vmatprep.subr.mxu0 0.0
    %868 = vmatpush1.msra.mxu0 0.0
    %869 = vmatprep.subr.mxu0 0.0
    %870 = vmatpush1.msra.mxu0 0.0
    %871 = vmatprep.subr.mxu0 0.0
    %872 = vmatpush1.msra.mxu0 0.0
    %873 = vmatprep.subr.mxu0 0.0
    %874 = vmatpush1.msra.mxu0 0.0
    %875 = vmatprep.subr.mxu0 0.0
    %876 = vmatpush1.msra.mxu0 0.0
    %877 = vmatprep.subr.mxu0 0.0
    %878 = vmatpush1.msra.mxu0 0.0
    %879 = vmatprep.mubr.f32.mxu0 0.0
    %880 = vmatmul.mubr.f32.gmra.mrb[0].mxu0 %v813
    %v881 = vpop.f32.mrb[0].mxu0
    %v882 = vadd.f32 0.0, %v881
    %v883 = vpop.f32.mrb[0].mxu0
    %884 = vdwg.mxu0
    %v885 = vadd.f32 %v380, %v882
    %v886 = vxor.u32 %v885, 2147483648
    %v887 = vmul.f32 %v886, 1.442695
    %v888 = vpow.pop %v887
    %v889 = vadd.f32 %v888, 1.0
    %v890 = vrcp.pop %v889
    %v891 = vmul.f32 1.0, %v890
    %v892 = vtanh.pop %v885
    %894 = vrot.lane.b32.xlu0 %v803, 64
    %v895 = vpop.permute.xlu0 %894
    %v897 = vmul.f32 %v891, %v895
    %899 = vrot.lane.b32.xlu0 %v892, 80
    %v900 = vpop.permute.xlu0 %899
    %v902 = vmul.f32 %v891, %v900
    %904 = vrot.lane.b32.xlu0 %v902, 16
    %v905 = vpop.permute.xlu0 %904
    %v907 = vadd.f32 %v897, %v905
    %v908 = vtanh.pop %v907
    %910 = vrot.lane.b32.xlu0 %v908, 16
    %v911 = vpop.permute.xlu0 %910
    %v913 = vmul.f32 %v891, %v911
    %915 = vrot.lane.b32.xlu0 %v913, 96
    %v916 = vpop.permute.xlu0 %915
    %v917 = vsel %vm387, %v916, 0
    %919 = vmatprep.subr.mxu0 0.0
    %920 = vmatpush1.msra.mxu0 %v385
    %921 = vmatprep.subr.mxu0 0.0
    %922 = vmatpush1.msra.mxu0 %v386
    %923 = vmatprep.subr.mxu0 0.0
    %924 = vmatpush1.msra.mxu0 0.0
    %925 = vmatprep.subr.mxu0 0.0
    %926 = vmatpush1.msra.mxu0 0.0
    %927 = vmatprep.subr.mxu0 0.0
    %928 = vmatpush1.msra.mxu0 0.0
    %929 = vmatprep.subr.mxu0 0.0
    %930 = vmatpush1.msra.mxu0 0.0
    %931 = vmatprep.subr.mxu0 0.0
    %932 = vmatpush1.msra.mxu0 0.0
    %933 = vmatprep.subr.mxu0 0.0
    %934 = vmatpush1.msra.mxu0 0.0
    %935 = vmatprep.subr.mxu0 0.0
    %936 = vmatpush1.msra.mxu0 0.0
    %937 = vmatprep.subr.mxu0 0.0
    %938 = vmatpush1.msra.mxu0 0.0
    %939 = vmatprep.subr.mxu0 0.0
    %940 = vmatpush1.msra.mxu0 0.0
    %941 = vmatprep.subr.mxu0 0.0
    %942 = vmatpush1.msra.mxu0 0.0
    %943 = vmatprep.subr.mxu0 0.0
    %944 = vmatpush1.msra.mxu0 0.0
    %945 = vmatprep.subr.mxu0 0.0
    %946 = vmatpush1.msra.mxu0 0.0
    %947 = vmatprep.subr.mxu0 0.0
    %948 = vmatpush1.msra.mxu0 0.0
    %949 = vmatprep.subr.mxu0 0.0
    %950 = vmatpush1.msra.mxu0 0.0
    %951 = vmatprep.subr.mxu0 0.0
    %952 = vmatpush1.msra.mxu0 0.0
    %953 = vmatprep.subr.mxu0 0.0
    %954 = vmatpush1.msra.mxu0 0.0
    %955 = vmatprep.subr.mxu0 0.0
    %956 = vmatpush1.msra.mxu0 0.0
    %957 = vmatprep.subr.mxu0 0.0
    %958 = vmatpush1.msra.mxu0 0.0
    %959 = vmatprep.subr.mxu0 0.0
    %960 = vmatpush1.msra.mxu0 0.0
    %961 = vmatprep.subr.mxu0 0.0
    %962 = vmatpush1.msra.mxu0 0.0
    %963 = vmatprep.subr.mxu0 0.0
    %964 = vmatpush1.msra.mxu0 0.0
    %965 = vmatprep.subr.mxu0 0.0
    %966 = vmatpush1.msra.mxu0 0.0
    %967 = vmatprep.subr.mxu0 0.0
    %968 = vmatpush1.msra.mxu0 0.0
    %969 = vmatprep.subr.mxu0 0.0
    %970 = vmatpush1.msra.mxu0 0.0
    %971 = vmatprep.subr.mxu0 0.0
    %972 = vmatpush1.msra.mxu0 0.0
    %973 = vmatprep.subr.mxu0 0.0
    %974 = vmatpush1.msra.mxu0 0.0
    %975 = vmatprep.subr.mxu0 0.0
    %976 = vmatpush1.msra.mxu0 0.0
    %977 = vmatprep.subr.mxu0 0.0
    %978 = vmatpush1.msra.mxu0 0.0
    %979 = vmatprep.subr.mxu0 0.0
    %980 = vmatpush1.msra.mxu0 0.0
    %981 = vmatprep.subr.mxu0 0.0
    %982 = vmatpush1.msra.mxu0 0.0
    %983 = vmatprep.mubr.f32.mxu0 0.0
    %984 = vmatmul.mubr.f32.gmra.mrb[0].mxu0 %v917
    %v985 = vpop.f32.mrb[0].mxu0
    %v986 = vadd.f32 0.0, %v985
    %v987 = vpop.f32.mrb[0].mxu0
    %988 = vdwg.mxu0
    %990 = vrot.lane.b32.xlu0 %v986, 64
    %v991 = vpop.permute.xlu0 %990
    %v993 = vadd.f32 %v380, %v991
    %v994 = vxor.u32 %v993, 2147483648
    %v995 = vmul.f32 %v994, 1.442695
    %v996 = vpow.pop %v995
    %v997 = vadd.f32 %v996, 1.0
    %v998 = vrcp.pop %v997
    %v999 = vmul.f32 1.0, %v998
    %v1000 = vtanh.pop %v993
    %1002 = vrot.lane.b32.xlu0 %v907, 64
    %v1003 = vpop.permute.xlu0 %1002
    %v1005 = vmul.f32 %v999, %v1003
    %1007 = vrot.lane.b32.xlu0 %v1000, 80
    %v1008 = vpop.permute.xlu0 %1007
    %v1010 = vmul.f32 %v999, %v1008
    %1012 = vrot.lane.b32.xlu0 %v1010, 16
    %v1013 = vpop.permute.xlu0 %1012
    %v1015 = vadd.f32 %v1005, %v1013
    %v1016 = vtanh.pop %v1015
    %1018 = vrot.lane.b32.xlu0 %v1016, 16
    %v1019 = vpop.permute.xlu0 %1018
    %v1021 = vmul.f32 %v999, %v1019
    %1022 = vrot.lane.b32.xlu0 %v597, 64
    %v1023 = vpop.permute.xlu0 %1022
    %1024 = vrot.lane.b32.xlu0 %v809, 64
    %v1025 = vpop.permute.xlu0 %1024
    %1027 = vrot.lane.b32.xlu0 %v1021, 64
    %v1028 = vpop.permute.xlu0 %1027
    %v1029 = vld [vmem:[%s6] sm:$0xff]
    %v1030 = vld [vmem:[%s6 + $0x8] sm:$0xff]
    %v1031 = vld [vmem:[%s7] sm:$0x1]
    %v1033 = vlaneseq
    %v1034 = vshrl.u32 %v1033, 7
    %v1035 = vsub.s32 0, %v1034
    %v1036 = vrot.slane %v1031, %v1035
    %1038 = vrot.lane.b32.xlu0 %v1023, 96
    %v1039 = vpop.permute.xlu0 %1038
    %1040 = vrot.lane.b32.xlu0 %v1025, 96
    %v1041 = vpop.permute.xlu0 %1040
    %1042 = vrot.lane.b32.xlu0 %v1028, 96
    %v1043 = vpop.permute.xlu0 %1042
    %v1044 = vsel %vm387, %v1039, 0
    %v1046 = vsel %vm387, %v1041, 0
    %v1048 = vsel %vm387, %v1043, 0
    %1050 = vmatprep.subr.mxu0 0.0
    %1051 = vmatpush1.msra.mxu0 %v1029
    %1052 = vmatprep.subr.mxu0 0.0
    %1053 = vmatpush1.msra.mxu0 %v1030
    %1054 = vmatprep.subr.mxu0 0.0
    %1055 = vmatpush1.msra.mxu0 0.0
    %1056 = vmatprep.subr.mxu0 0.0
    %1057 = vmatpush1.msra.mxu0 0.0
    %1058 = vmatprep.subr.mxu0 0.0
    %1059 = vmatpush1.msra.mxu0 0.0
    %1060 = vmatprep.subr.mxu0 0.0
    %1061 = vmatpush1.msra.mxu0 0.0
    %1062 = vmatprep.subr.mxu0 0.0
    %1063 = vmatpush1.msra.mxu0 0.0
    %1064 = vmatprep.subr.mxu0 0.0
    %1065 = vmatpush1.msra.mxu0 0.0
    %1066 = vmatprep.subr.mxu0 0.0
    %1067 = vmatpush1.msra.mxu0 0.0
    %1068 = vmatprep.subr.mxu0 0.0
    %1069 = vmatpush1.msra.mxu0 0.0
    %1070 = vmatprep.subr.mxu0 0.0
    %1071 = vmatpush1.msra.mxu0 0.0
    %1072 = vmatprep.subr.mxu0 0.0
    %1073 = vmatpush1.msra.mxu0 0.0
    %1074 = vmatprep.subr.mxu0 0.0
    %1075 = vmatpush1.msra.mxu0 0.0
    %1076 = vmatprep.subr.mxu0 0.0
    %1077 = vmatpush1.msra.mxu0 0.0
    %1078 = vmatprep.subr.mxu0 0.0
    %1079 = vmatpush1.msra.mxu0 0.0
    %1080 = vmatprep.subr.mxu0 0.0
    %1081 = vmatpush1.msra.mxu0 0.0
    %1082 = vmatprep.subr.mxu0 0.0
    %1083 = vmatpush1.msra.mxu0 0.0
    %1084 = vmatprep.subr.mxu0 0.0
    %1085 = vmatpush1.msra.mxu0 0.0
    %1086 = vmatprep.subr.mxu0 0.0
    %1087 = vmatpush1.msra.mxu0 0.0
    %1088 = vmatprep.subr.mxu0 0.0
    %1089 = vmatpush1.msra.mxu0 0.0
    %1090 = vmatprep.subr.mxu0 0.0
    %1091 = vmatpush1.msra.mxu0 0.0
    %1092 = vmatprep.subr.mxu0 0.0
    %1093 = vmatpush1.msra.mxu0 0.0
    %1094 = vmatprep.subr.mxu0 0.0
    %1095 = vmatpush1.msra.mxu0 0.0
    %1096 = vmatprep.subr.mxu0 0.0
    %1097 = vmatpush1.msra.mxu0 0.0
    %1098 = vmatprep.subr.mxu0 0.0
    %1099 = vmatpush1.msra.mxu0 0.0
    %1100 = vmatprep.subr.mxu0 0.0
    %1101 = vmatpush1.msra.mxu0 0.0
    %1102 = vmatprep.subr.mxu0 0.0
    %1103 = vmatpush1.msra.mxu0 0.0
    %1104 = vmatprep.subr.mxu0 0.0
    %1105 = vmatpush1.msra.mxu0 0.0
    %1106 = vmatprep.subr.mxu0 0.0
    %1107 = vmatpush1.msra.mxu0 0.0
    %1108 = vmatprep.subr.mxu0 0.0
    %1109 = vmatpush1.msra.mxu0 0.0
    %1110 = vmatprep.subr.mxu0 0.0
    %1111 = vmatpush1.msra.mxu0 0.0
    %1112 = vmatprep.subr.mxu0 0.0
    %1113 = vmatpush1.msra.mxu0 0.0
    %1114 = vmatprep.mubr.f32.mxu0 0.0
    %1115 = vmatmul.mubr.f32.gmra.mrb[0].mxu0 %v493
    %v1116 = vpop.f32.mrb[0].mxu0
    %v1117 = vadd.f32 %v1036, %v1116
    %v1118 = vpop.f32.mrb[0].mxu0
    %1119 = vmatprep.mubr.f32.mxu0 0.0
    %1120 = vmatmul.mubr.f32.gmra.mrb[0].mxu0 %v1044
    %v1121 = vpop.f32.mrb[0].mxu0
    %v1122 = vadd.f32 %v1036, %v1121
    %v1123 = vpop.f32.mrb[0].mxu0
    %1124 = vmatprep.mubr.f32.mxu0 0.0
    %1125 = vmatmul.mubr.f32.gmra.mrb[0].mxu0 %v705
    %v1126 = vpop.f32.mrb[0].mxu0
    %v1127 = vadd.f32 %v1036, %v1126
    %v1128 = vpop.f32.mrb[0].mxu0
    %1129 = vmatprep.mubr.f32.mxu0 0.0
    %1130 = vmatmul.mubr.f32.gmra.mrb[0].mxu0 %v1046
    %v1131 = vpop.f32.mrb[0].mxu0
    %v1132 = vadd.f32 %v1036, %v1131
    %v1133 = vpop.f32.mrb[0].mxu0
    %1134 = vmatprep.mubr.f32.mxu0 0.0
    %1135 = vmatmul.mubr.f32.gmra.mrb[0].mxu0 %v917
    %v1136 = vpop.f32.mrb[0].mxu0
    %v1137 = vadd.f32 %v1036, %v1136
    %v1138 = vpop.f32.mrb[0].mxu0
    %1139 = vmatprep.mubr.f32.mxu0 0.0
    %1140 = vmatmul.mubr.f32.gmra.mrb[0].mxu0 %v1048
    %v1141 = vpop.f32.mrb[0].mxu0
    %v1142 = vadd.f32 %v1036, %v1141
    %v1143 = vpop.f32.mrb[0].mxu0
    %1144 = vdwg.mxu0
    %s1145 = scalar_lea.vmem %s1, 8
    %v1146 = vld [vmem:[%s1145] sm:$0xff]
    %s1147 = scalar_lea.vmem %s2, 8
    %v1148 = vld [vmem:[%s1147] sm:$0xff]
    %s1149 = scalar_lea.vmem %s8, 16
    %v1150 = vld [vmem:[%s1149] sm:$0xff]
    %v1151 = vld [vmem:[%s1149 + $0x8] sm:$0xff]
    %v1153 = vsel %vm387, %v1146, 0
    %1155 = vmatprep.subr.mxu0 0.0
    %1156 = vmatpush1.msra.mxu0 %v1150
    %1157 = vmatprep.subr.mxu0 0.0
    %1158 = vmatpush1.msra.mxu0 %v1151
    %1159 = vmatprep.subr.mxu0 0.0
    %1160 = vmatpush1.msra.mxu0 0.0
    %1161 = vmatprep.subr.mxu0 0.0
    %1162 = vmatpush1.msra.mxu0 0.0
    %1163 = vmatprep.subr.mxu0 0.0
    %1164 = vmatpush1.msra.mxu0 0.0
    %1165 = vmatprep.subr.mxu0 0.0
    %1166 = vmatpush1.msra.mxu0 0.0
    %1167 = vmatprep.subr.mxu0 0.0
    %1168 = vmatpush1.msra.mxu0 0.0
    %1169 = vmatprep.subr.mxu0 0.0
    %1170 = vmatpush1.msra.mxu0 0.0
    %1171 = vmatprep.subr.mxu0 0.0
    %1172 = vmatpush1.msra.mxu0 0.0
    %1173 = vmatprep.subr.mxu0 0.0
    %1174 = vmatpush1.msra.mxu0 0.0
    %1175 = vmatprep.subr.mxu0 0.0
    %1176 = vmatpush1.msra.mxu0 0.0
    %1177 = vmatprep.subr.mxu0 0.0
    %1178 = vmatpush1.msra.mxu0 0.0
    %1179 = vmatprep.subr.mxu0 0.0
    %1180 = vmatpush1.msra.mxu0 0.0
    %1181 = vmatprep.subr.mxu0 0.0
    %1182 = vmatpush1.msra.mxu0 0.0
    %1183 = vmatprep.subr.mxu0 0.0
    %1184 = vmatpush1.msra.mxu0 0.0
    %1185 = vmatprep.subr.mxu0 0.0
    %1186 = vmatpush1.msra.mxu0 0.0
    %1187 = vmatprep.subr.mxu0 0.0
    %1188 = vmatpush1.msra.mxu0 0.0
    %1189 = vmatprep.subr.mxu0 0.0
    %1190 = vmatpush1.msra.mxu0 0.0
    %1191 = vmatprep.subr.mxu0 0.0
    %1192 = vmatpush1.msra.mxu0 0.0
    %1193 = vmatprep.subr.mxu0 0.0
    %1194 = vmatpush1.msra.mxu0 0.0
    %1195 = vmatprep.subr.mxu0 0.0
    %1196 = vmatpush1.msra.mxu0 0.0
    %1197 = vmatprep.subr.mxu0 0.0
    %1198 = vmatpush1.msra.mxu0 0.0
    %1199 = vmatprep.subr.mxu0 0.0
    %1200 = vmatpush1.msra.mxu0 0.0
    %1201 = vmatprep.subr.mxu0 0.0
    %1202 = vmatpush1.msra.mxu0 0.0
    %1203 = vmatprep.subr.mxu0 0.0
    %1204 = vmatpush1.msra.mxu0 0.0
    %1205 = vmatprep.subr.mxu0 0.0
    %1206 = vmatpush1.msra.mxu0 0.0
    %1207 = vmatprep.subr.mxu0 0.0
    %1208 = vmatpush1.msra.mxu0 0.0
    %1209 = vmatprep.subr.mxu0 0.0
    %1210 = vmatpush1.msra.mxu0 0.0
    %1211 = vmatprep.subr.mxu0 0.0
    %1212 = vmatpush1.msra.mxu0 0.0
    %1213 = vmatprep.subr.mxu0 0.0
    %1214 = vmatpush1.msra.mxu0 0.0
    %1215 = vmatprep.subr.mxu0 0.0
    %1216 = vmatpush1.msra.mxu0 0.0
    %1217 = vmatprep.subr.mxu0 0.0
    %1218 = vmatpush1.msra.mxu0 0.0
    %1219 = vmatprep.mubr.f32.mxu0 0.0
    %1220 = vmatmul.mubr.f32.gmra.mrb[0].mxu0 %v1153
    %v1221 = vpop.f32.mrb[0].mxu0
    %v1222 = vadd.f32 0.0, %v1221
    %v1223 = vpop.f32.mrb[0].mxu0
    %1224 = vdwg.mxu0
    %v1225 = vadd.f32 %v1117, %v1222
    %v1226 = vxor.u32 %v1225, 2147483648
    %v1227 = vmul.f32 %v1226, 1.442695
    %v1228 = vpow.pop %v1227
    %v1229 = vadd.f32 %v1228, 1.0
    %v1230 = vrcp.pop %v1229
    %v1231 = vmul.f32 1.0, %v1230
    %v1232 = vtanh.pop %v1225
    %1234 = vrot.lane.b32.xlu0 %v1148, 16
    %v1235 = vpop.permute.xlu0 %1234
    %v1237 = vmul.f32 %v1231, %v1235
    %1239 = vrot.lane.b32.xlu0 %v1232, 80
    %v1240 = vpop.permute.xlu0 %1239
    %v1242 = vmul.f32 %v1231, %v1240
    %1244 = vrot.lane.b32.xlu0 %v1242, 16
    %v1245 = vpop.permute.xlu0 %1244
    %v1247 = vadd.f32 %v1237, %v1245
    %v1248 = vtanh.pop %v1247
    %1250 = vrot.lane.b32.xlu0 %v1248, 16
    %v1251 = vpop.permute.xlu0 %1250
    %v1253 = vmul.f32 %v1231, %v1251
    %1255 = vrot.lane.b32.xlu0 %v1253, 96
    %v1256 = vpop.permute.xlu0 %1255
    %v1257 = vsel %vm387, %v1256, 0
    %1259 = vmatprep.subr.mxu0 0.0
    %1260 = vmatpush1.msra.mxu0 %v1150
    %1261 = vmatprep.subr.mxu0 0.0
    %1262 = vmatpush1.msra.mxu0 %v1151
    %1263 = vmatprep.subr.mxu0 0.0
    %1264 = vmatpush1.msra.mxu0 0.0
    %1265 = vmatprep.subr.mxu0 0.0
    %1266 = vmatpush1.msra.mxu0 0.0
    %1267 = vmatprep.subr.mxu0 0.0
    %1268 = vmatpush1.msra.mxu0 0.0
    %1269 = vmatprep.subr.mxu0 0.0
    %1270 = vmatpush1.msra.mxu0 0.0
    %1271 = vmatprep.subr.mxu0 0.0
    %1272 = vmatpush1.msra.mxu0 0.0
    %1273 = vmatprep.subr.mxu0 0.0
    %1274 = vmatpush1.msra.mxu0 0.0
    %1275 = vmatprep.subr.mxu0 0.0
    %1276 = vmatpush1.msra.mxu0 0.0
    %1277 = vmatprep.subr.mxu0 0.0
    %1278 = vmatpush1.msra.mxu0 0.0
    %1279 = vmatprep.subr.mxu0 0.0
    %1280 = vmatpush1.msra.mxu0 0.0
    %1281 = vmatprep.subr.mxu0 0.0
    %1282 = vmatpush1.msra.mxu0 0.0
    %1283 = vmatprep.subr.mxu0 0.0
    %1284 = vmatpush1.msra.mxu0 0.0
    %1285 = vmatprep.subr.mxu0 0.0
    %1286 = vmatpush1.msra.mxu0 0.0
    %1287 = vmatprep.subr.mxu0 0.0
    %1288 = vmatpush1.msra.mxu0 0.0
    %1289 = vmatprep.subr.mxu0 0.0
    %1290 = vmatpush1.msra.mxu0 0.0
    %1291 = vmatprep.subr.mxu0 0.0
    %1292 = vmatpush1.msra.mxu0 0.0
    %1293 = vmatprep.subr.mxu0 0.0
    %1294 = vmatpush1.msra.mxu0 0.0
    %1295 = vmatprep.subr.mxu0 0.0
    %1296 = vmatpush1.msra.mxu0 0.0
    %1297 = vmatprep.subr.mxu0 0.0
    %1298 = vmatpush1.msra.mxu0 0.0
    %1299 = vmatprep.subr.mxu0 0.0
    %1300 = vmatpush1.msra.mxu0 0.0
    %1301 = vmatprep.subr.mxu0 0.0
    %1302 = vmatpush1.msra.mxu0 0.0
    %1303 = vmatprep.subr.mxu0 0.0
    %1304 = vmatpush1.msra.mxu0 0.0
    %1305 = vmatprep.subr.mxu0 0.0
    %1306 = vmatpush1.msra.mxu0 0.0
    %1307 = vmatprep.subr.mxu0 0.0
    %1308 = vmatpush1.msra.mxu0 0.0
    %1309 = vmatprep.subr.mxu0 0.0
    %1310 = vmatpush1.msra.mxu0 0.0
    %1311 = vmatprep.subr.mxu0 0.0
    %1312 = vmatpush1.msra.mxu0 0.0
    %1313 = vmatprep.subr.mxu0 0.0
    %1314 = vmatpush1.msra.mxu0 0.0
    %1315 = vmatprep.subr.mxu0 0.0
    %1316 = vmatpush1.msra.mxu0 0.0
    %1317 = vmatprep.subr.mxu0 0.0
    %1318 = vmatpush1.msra.mxu0 0.0
    %1319 = vmatprep.subr.mxu0 0.0
    %1320 = vmatpush1.msra.mxu0 0.0
    %1321 = vmatprep.subr.mxu0 0.0
    %1322 = vmatpush1.msra.mxu0 0.0
    %1323 = vmatprep.mubr.f32.mxu0 0.0
    %1324 = vmatmul.mubr.f32.gmra.mrb[0].mxu0 %v1257
    %v1325 = vpop.f32.mrb[0].mxu0
    %v1326 = vadd.f32 0.0, %v1325
    %v1327 = vpop.f32.mrb[0].mxu0
    %1328 = vdwg.mxu0
    %v1329 = vadd.f32 %v1122, %v1326
    %v1330 = vxor.u32 %v1329, 2147483648
    %v1331 = vmul.f32 %v1330, 1.442695
    %v1332 = vpow.pop %v1331
    %v1333 = vadd.f32 %v1332, 1.0
    %v1334 = vrcp.pop %v1333
    %v1335 = vmul.f32 1.0, %v1334
    %v1336 = vtanh.pop %v1329
    %v1337 = vmul.f32 %v1335, %v1247
    %1339 = vrot.lane.b32.xlu0 %v1336, 80
    %v1340 = vpop.permute.xlu0 %1339
    %v1342 = vmul.f32 %v1335, %v1340
    %1344 = vrot.lane.b32.xlu0 %v1342, 16
    %v1345 = vpop.permute.xlu0 %1344
    %v1347 = vadd.f32 %v1337, %v1345
    %v1348 = vtanh.pop %v1347
    %1350 = vrot.lane.b32.xlu0 %v1348, 16
    %v1351 = vpop.permute.xlu0 %1350
    %v1353 = vmul.f32 %v1335, %v1351
    %1355 = vrot.lane.b32.xlu0 %v1353, 96
    %v1356 = vpop.permute.xlu0 %1355
    %v1357 = vsel %vm387, %v1356, 0
    %1359 = vmatprep.subr.mxu0 0.0
    %1360 = vmatpush1.msra.mxu0 %v1150
    %1361 = vmatprep.subr.mxu0 0.0
    %1362 = vmatpush1.msra.mxu0 %v1151
    %1363 = vmatprep.subr.mxu0 0.0
    %1364 = vmatpush1.msra.mxu0 0.0
    %1365 = vmatprep.subr.mxu0 0.0
    %1366 = vmatpush1.msra.mxu0 0.0
    %1367 = vmatprep.subr.mxu0 0.0
    %1368 = vmatpush1.msra.mxu0 0.0
    %1369 = vmatprep.subr.mxu0 0.0
    %1370 = vmatpush1.msra.mxu0 0.0
    %1371 = vmatprep.subr.mxu0 0.0
    %1372 = vmatpush1.msra.mxu0 0.0
    %1373 = vmatprep.subr.mxu0 0.0
    %1374 = vmatpush1.msra.mxu0 0.0
    %1375 = vmatprep.subr.mxu0 0.0
    %1376 = vmatpush1.msra.mxu0 0.0
    %1377 = vmatprep.subr.mxu0 0.0
    %1378 = vmatpush1.msra.mxu0 0.0
    %1379 = vmatprep.subr.mxu0 0.0
    %1380 = vmatpush1.msra.mxu0 0.0
    %1381 = vmatprep.subr.mxu0 0.0
    %1382 = vmatpush1.msra.mxu0 0.0
    %1383 = vmatprep.subr.mxu0 0.0
    %1384 = vmatpush1.msra.mxu0 0.0
    %1385 = vmatprep.subr.mxu0 0.0
    %1386 = vmatpush1.msra.mxu0 0.0
    %1387 = vmatprep.subr.mxu0 0.0
    %1388 = vmatpush1.msra.mxu0 0.0
    %1389 = vmatprep.subr.mxu0 0.0
    %1390 = vmatpush1.msra.mxu0 0.0
    %1391 = vmatprep.subr.mxu0 0.0
    %1392 = vmatpush1.msra.mxu0 0.0
    %1393 = vmatprep.subr.mxu0 0.0
    %1394 = vmatpush1.msra.mxu0 0.0
    %1395 = vmatprep.subr.mxu0 0.0
    %1396 = vmatpush1.msra.mxu0 0.0
    %1397 = vmatprep.subr.mxu0 0.0
    %1398 = vmatpush1.msra.mxu0 0.0
    %1399 = vmatprep.subr.mxu0 0.0
    %1400 = vmatpush1.msra.mxu0 0.0
    %1401 = vmatprep.subr.mxu0 0.0
    %1402 = vmatpush1.msra.mxu0 0.0
    %1403 = vmatprep.subr.mxu0 0.0
    %1404 = vmatpush1.msra.mxu0 0.0
    %1405 = vmatprep.subr.mxu0 0.0
    %1406 = vmatpush1.msra.mxu0 0.0
    %1407 = vmatprep.subr.mxu0 0.0
    %1408 = vmatpush1.msra.mxu0 0.0
    %1409 = vmatprep.subr.mxu0 0.0
    %1410 = vmatpush1.msra.mxu0 0.0
    %1411 = vmatprep.subr.mxu0 0.0
    %1412 = vmatpush1.msra.mxu0 0.0
    %1413 = vmatprep.subr.mxu0 0.0
    %1414 = vmatpush1.msra.mxu0 0.0
    %1415 = vmatprep.subr.mxu0 0.0
    %1416 = vmatpush1.msra.mxu0 0.0
    %1417 = vmatprep.subr.mxu0 0.0
    %1418 = vmatpush1.msra.mxu0 0.0
    %1419 = vmatprep.subr.mxu0 0.0
    %1420 = vmatpush1.msra.mxu0 0.0
    %1421 = vmatprep.subr.mxu0 0.0
    %1422 = vmatpush1.msra.mxu0 0.0
    %1423 = vmatprep.mubr.f32.mxu0 0.0
    %1424 = vmatmul.mubr.f32.gmra.mrb[0].mxu0 %v1357
    %v1425 = vpop.f32.mrb[0].mxu0
    %v1426 = vadd.f32 0.0, %v1425
    %v1427 = vpop.f32.mrb[0].mxu0
    %1428 = vdwg.mxu0
    %v1429 = vadd.f32 %v1127, %v1426
    %v1430 = vxor.u32 %v1429, 2147483648
    %v1431 = vmul.f32 %v1430, 1.442695
    %v1432 = vpow.pop %v1431
    %v1433 = vadd.f32 %v1432, 1.0
    %v1434 = vrcp.pop %v1433
    %v1435 = vmul.f32 1.0, %v1434
    %v1436 = vtanh.pop %v1429
    %v1437 = vmul.f32 %v1435, %v1347
    %1439 = vrot.lane.b32.xlu0 %v1436, 80
    %v1440 = vpop.permute.xlu0 %1439
    %v1442 = vmul.f32 %v1435, %v1440
    %1444 = vrot.lane.b32.xlu0 %v1442, 16
    %v1445 = vpop.permute.xlu0 %1444
    %v1447 = vadd.f32 %v1437, %v1445
    %v1448 = vtanh.pop %v1447
    %1450 = vrot.lane.b32.xlu0 %v1448, 16
    %v1451 = vpop.permute.xlu0 %1450
    %v1453 = vmul.f32 %v1435, %v1451
    %1455 = vrot.lane.b32.xlu0 %v1453, 96
    %v1456 = vpop.permute.xlu0 %1455
    %v1457 = vsel %vm387, %v1456, 0
    %1459 = vmatprep.subr.mxu0 0.0
    %1460 = vmatpush1.msra.mxu0 %v1150
    %1461 = vmatprep.subr.mxu0 0.0
    %1462 = vmatpush1.msra.mxu0 %v1151
    %1463 = vmatprep.subr.mxu0 0.0
    %1464 = vmatpush1.msra.mxu0 0.0
    %1465 = vmatprep.subr.mxu0 0.0
    %1466 = vmatpush1.msra.mxu0 0.0
    %1467 = vmatprep.subr.mxu0 0.0
    %1468 = vmatpush1.msra.mxu0 0.0
    %1469 = vmatprep.subr.mxu0 0.0
    %1470 = vmatpush1.msra.mxu0 0.0
    %1471 = vmatprep.subr.mxu0 0.0
    %1472 = vmatpush1.msra.mxu0 0.0
    %1473 = vmatprep.subr.mxu0 0.0
    %1474 = vmatpush1.msra.mxu0 0.0
    %1475 = vmatprep.subr.mxu0 0.0
    %1476 = vmatpush1.msra.mxu0 0.0
    %1477 = vmatprep.subr.mxu0 0.0
    %1478 = vmatpush1.msra.mxu0 0.0
    %1479 = vmatprep.subr.mxu0 0.0
    %1480 = vmatpush1.msra.mxu0 0.0
    %1481 = vmatprep.subr.mxu0 0.0
    %1482 = vmatpush1.msra.mxu0 0.0
    %1483 = vmatprep.subr.mxu0 0.0
    %1484 = vmatpush1.msra.mxu0 0.0
    %1485 = vmatprep.subr.mxu0 0.0
    %1486 = vmatpush1.msra.mxu0 0.0
    %1487 = vmatprep.subr.mxu0 0.0
    %1488 = vmatpush1.msra.mxu0 0.0
    %1489 = vmatprep.subr.mxu0 0.0
    %1490 = vmatpush1.msra.mxu0 0.0
    %1491 = vmatprep.subr.mxu0 0.0
    %1492 = vmatpush1.msra.mxu0 0.0
    %1493 = vmatprep.subr.mxu0 0.0
    %1494 = vmatpush1.msra.mxu0 0.0
    %1495 = vmatprep.subr.mxu0 0.0
    %1496 = vmatpush1.msra.mxu0 0.0
    %1497 = vmatprep.subr.mxu0 0.0
    %1498 = vmatpush1.msra.mxu0 0.0
    %1499 = vmatprep.subr.mxu0 0.0
    %1500 = vmatpush1.msra.mxu0 0.0
    %1501 = vmatprep.subr.mxu0 0.0
    %1502 = vmatpush1.msra.mxu0 0.0
    %1503 = vmatprep.subr.mxu0 0.0
    %1504 = vmatpush1.msra.mxu0 0.0
    %1505 = vmatprep.subr.mxu0 0.0
    %1506 = vmatpush1.msra.mxu0 0.0
    %1507 = vmatprep.subr.mxu0 0.0
    %1508 = vmatpush1.msra.mxu0 0.0
    %1509 = vmatprep.subr.mxu0 0.0
    %1510 = vmatpush1.msra.mxu0 0.0
    %1511 = vmatprep.subr.mxu0 0.0
    %1512 = vmatpush1.msra.mxu0 0.0
    %1513 = vmatprep.subr.mxu0 0.0
    %1514 = vmatpush1.msra.mxu0 0.0
    %1515 = vmatprep.subr.mxu0 0.0
    %1516 = vmatpush1.msra.mxu0 0.0
    %1517 = vmatprep.subr.mxu0 0.0
    %1518 = vmatpush1.msra.mxu0 0.0
    %1519 = vmatprep.subr.mxu0 0.0
    %1520 = vmatpush1.msra.mxu0 0.0
    %1521 = vmatprep.subr.mxu0 0.0
    %1522 = vmatpush1.msra.mxu0 0.0
    %1523 = vmatprep.mubr.f32.mxu0 0.0
    %1524 = vmatmul.mubr.f32.gmra.mrb[0].mxu0 %v1457
    %v1525 = vpop.f32.mrb[0].mxu0
    %v1526 = vadd.f32 0.0, %v1525
    %v1527 = vpop.f32.mrb[0].mxu0
    %1528 = vdwg.mxu0
    %v1529 = vadd.f32 %v1132, %v1526
    %v1530 = vxor.u32 %v1529, 2147483648
    %v1531 = vmul.f32 %v1530, 1.442695
    %v1532 = vpow.pop %v1531
    %v1533 = vadd.f32 %v1532, 1.0
    %v1534 = vrcp.pop %v1533
    %v1535 = vmul.f32 1.0, %v1534
    %v1536 = vtanh.pop %v1529
    %v1537 = vmul.f32 %v1535, %v1447
    %1539 = vrot.lane.b32.xlu0 %v1536, 80
    %v1540 = vpop.permute.xlu0 %1539
    %v1542 = vmul.f32 %v1535, %v1540
    %1544 = vrot.lane.b32.xlu0 %v1542, 16
    %v1545 = vpop.permute.xlu0 %1544
    %v1547 = vadd.f32 %v1537, %v1545
    %v1548 = vtanh.pop %v1547
    %1550 = vrot.lane.b32.xlu0 %v1548, 16
    %v1551 = vpop.permute.xlu0 %1550
    %v1553 = vmul.f32 %v1535, %v1551
    %1555 = vrot.lane.b32.xlu0 %v1553, 96
    %v1556 = vpop.permute.xlu0 %1555
    %v1557 = vsel %vm387, %v1556, 0
    %1559 = vmatprep.subr.mxu0 0.0
    %1560 = vmatpush1.msra.mxu0 %v1150
    %1561 = vmatprep.subr.mxu0 0.0
    %1562 = vmatpush1.msra.mxu0 %v1151
    %1563 = vmatprep.subr.mxu0 0.0
    %1564 = vmatpush1.msra.mxu0 0.0
    %1565 = vmatprep.subr.mxu0 0.0
    %1566 = vmatpush1.msra.mxu0 0.0
    %1567 = vmatprep.subr.mxu0 0.0
    %1568 = vmatpush1.msra.mxu0 0.0
    %1569 = vmatprep.subr.mxu0 0.0
    %1570 = vmatpush1.msra.mxu0 0.0
    %1571 = vmatprep.subr.mxu0 0.0
    %1572 = vmatpush1.msra.mxu0 0.0
    %1573 = vmatprep.subr.mxu0 0.0
    %1574 = vmatpush1.msra.mxu0 0.0
    %1575 = vmatprep.subr.mxu0 0.0
    %1576 = vmatpush1.msra.mxu0 0.0
    %1577 = vmatprep.subr.mxu0 0.0
    %1578 = vmatpush1.msra.mxu0 0.0
    %1579 = vmatprep.subr.mxu0 0.0
    %1580 = vmatpush1.msra.mxu0 0.0
    %1581 = vmatprep.subr.mxu0 0.0
    %1582 = vmatpush1.msra.mxu0 0.0
    %1583 = vmatprep.subr.mxu0 0.0
    %1584 = vmatpush1.msra.mxu0 0.0
    %1585 = vmatprep.subr.mxu0 0.0
    %1586 = vmatpush1.msra.mxu0 0.0
    %1587 = vmatprep.subr.mxu0 0.0
    %1588 = vmatpush1.msra.mxu0 0.0
    %1589 = vmatprep.subr.mxu0 0.0
    %1590 = vmatpush1.msra.mxu0 0.0
    %1591 = vmatprep.subr.mxu0 0.0
    %1592 = vmatpush1.msra.mxu0 0.0
    %1593 = vmatprep.subr.mxu0 0.0
    %1594 = vmatpush1.msra.mxu0 0.0
    %1595 = vmatprep.subr.mxu0 0.0
    %1596 = vmatpush1.msra.mxu0 0.0
    %1597 = vmatprep.subr.mxu0 0.0
    %1598 = vmatpush1.msra.mxu0 0.0
    %1599 = vmatprep.subr.mxu0 0.0
    %1600 = vmatpush1.msra.mxu0 0.0
    %1601 = vmatprep.subr.mxu0 0.0
    %1602 = vmatpush1.msra.mxu0 0.0
    %1603 = vmatprep.subr.mxu0 0.0
    %1604 = vmatpush1.msra.mxu0 0.0
    %1605 = vmatprep.subr.mxu0 0.0
    %1606 = vmatpush1.msra.mxu0 0.0
    %1607 = vmatprep.subr.mxu0 0.0
    %1608 = vmatpush1.msra.mxu0 0.0
    %1609 = vmatprep.subr.mxu0 0.0
    %1610 = vmatpush1.msra.mxu0 0.0
    %1611 = vmatprep.subr.mxu0 0.0
    %1612 = vmatpush1.msra.mxu0 0.0
    %1613 = vmatprep.subr.mxu0 0.0
    %1614 = vmatpush1.msra.mxu0 0.0
    %1615 = vmatprep.subr.mxu0 0.0
    %1616 = vmatpush1.msra.mxu0 0.0
    %1617 = vmatprep.subr.mxu0 0.0
    %1618 = vmatpush1.msra.mxu0 0.0
    %1619 = vmatprep.subr.mxu0 0.0
    %1620 = vmatpush1.msra.mxu0 0.0
    %1621 = vmatprep.subr.mxu0 0.0
    %1622 = vmatpush1.msra.mxu0 0.0
    %1623 = vmatprep.mubr.f32.mxu0 0.0
    %1624 = vmatmul.mubr.f32.gmra.mrb[0].mxu0 %v1557
    %v1625 = vpop.f32.mrb[0].mxu0
    %v1626 = vadd.f32 0.0, %v1625
    %v1627 = vpop.f32.mrb[0].mxu0
    %1628 = vdwg.mxu0
    %v1629 = vadd.f32 %v1137, %v1626
    %v1630 = vxor.u32 %v1629, 2147483648
    %v1631 = vmul.f32 %v1630, 1.442695
    %v1632 = vpow.pop %v1631
    %v1633 = vadd.f32 %v1632, 1.0
    %v1634 = vrcp.pop %v1633
    %v1635 = vmul.f32 1.0, %v1634
    %v1636 = vtanh.pop %v1629
    %v1637 = vmul.f32 %v1635, %v1547
    %1639 = vrot.lane.b32.xlu0 %v1636, 80
    %v1640 = vpop.permute.xlu0 %1639
    %v1642 = vmul.f32 %v1635, %v1640
    %1644 = vrot.lane.b32.xlu0 %v1642, 16
    %v1645 = vpop.permute.xlu0 %1644
    %v1647 = vadd.f32 %v1637, %v1645
    %v1648 = vtanh.pop %v1647
    %1650 = vrot.lane.b32.xlu0 %v1648, 16
    %v1651 = vpop.permute.xlu0 %1650
    %v1653 = vmul.f32 %v1635, %v1651
    %1655 = vrot.lane.b32.xlu0 %v1653, 96
    %v1656 = vpop.permute.xlu0 %1655
    %v1657 = vsel %vm387, %v1656, 0
    %1659 = vmatprep.subr.mxu0 0.0
    %1660 = vmatpush1.msra.mxu0 %v1150
    %1661 = vmatprep.subr.mxu0 0.0
    %1662 = vmatpush1.msra.mxu0 %v1151
    %1663 = vmatprep.subr.mxu0 0.0
    %1664 = vmatpush1.msra.mxu0 0.0
    %1665 = vmatprep.subr.mxu0 0.0
    %1666 = vmatpush1.msra.mxu0 0.0
    %1667 = vmatprep.subr.mxu0 0.0
    %1668 = vmatpush1.msra.mxu0 0.0
    %1669 = vmatprep.subr.mxu0 0.0
    %1670 = vmatpush1.msra.mxu0 0.0
    %1671 = vmatprep.subr.mxu0 0.0
    %1672 = vmatpush1.msra.mxu0 0.0
    %1673 = vmatprep.subr.mxu0 0.0
    %1674 = vmatpush1.msra.mxu0 0.0
    %1675 = vmatprep.subr.mxu0 0.0
    %1676 = vmatpush1.msra.mxu0 0.0
    %1677 = vmatprep.subr.mxu0 0.0
    %1678 = vmatpush1.msra.mxu0 0.0
    %1679 = vmatprep.subr.mxu0 0.0
    %1680 = vmatpush1.msra.mxu0 0.0
    %1681 = vmatprep.subr.mxu0 0.0
    %1682 = vmatpush1.msra.mxu0 0.0
    %1683 = vmatprep.subr.mxu0 0.0
    %1684 = vmatpush1.msra.mxu0 0.0
    %1685 = vmatprep.subr.mxu0 0.0
    %1686 = vmatpush1.msra.mxu0 0.0
    %1687 = vmatprep.subr.mxu0 0.0
    %1688 = vmatpush1.msra.mxu0 0.0
    %1689 = vmatprep.subr.mxu0 0.0
    %1690 = vmatpush1.msra.mxu0 0.0
    %1691 = vmatprep.subr.mxu0 0.0
    %1692 = vmatpush1.msra.mxu0 0.0
    %1693 = vmatprep.subr.mxu0 0.0
    %1694 = vmatpush1.msra.mxu0 0.0
    %1695 = vmatprep.subr.mxu0 0.0
    %1696 = vmatpush1.msra.mxu0 0.0
    %1697 = vmatprep.subr.mxu0 0.0
    %1698 = vmatpush1.msra.mxu0 0.0
    %1699 = vmatprep.subr.mxu0 0.0
    %1700 = vmatpush1.msra.mxu0 0.0
    %1701 = vmatprep.subr.mxu0 0.0
    %1702 = vmatpush1.msra.mxu0 0.0
    %1703 = vmatprep.subr.mxu0 0.0
    %1704 = vmatpush1.msra.mxu0 0.0
    %1705 = vmatprep.subr.mxu0 0.0
    %1706 = vmatpush1.msra.mxu0 0.0
    %1707 = vmatprep.subr.mxu0 0.0
    %1708 = vmatpush1.msra.mxu0 0.0
    %1709 = vmatprep.subr.mxu0 0.0
    %1710 = vmatpush1.msra.mxu0 0.0
    %1711 = vmatprep.subr.mxu0 0.0
    %1712 = vmatpush1.msra.mxu0 0.0
    %1713 = vmatprep.subr.mxu0 0.0
    %1714 = vmatpush1.msra.mxu0 0.0
    %1715 = vmatprep.subr.mxu0 0.0
    %1716 = vmatpush1.msra.mxu0 0.0
    %1717 = vmatprep.subr.mxu0 0.0
    %1718 = vmatpush1.msra.mxu0 0.0
    %1719 = vmatprep.subr.mxu0 0.0
    %1720 = vmatpush1.msra.mxu0 0.0
    %1721 = vmatprep.subr.mxu0 0.0
    %1722 = vmatpush1.msra.mxu0 0.0
    %1723 = vmatprep.mubr.f32.mxu0 0.0
    %1724 = vmatmul.mubr.f32.gmra.mrb[0].mxu0 %v1657
    %v1725 = vpop.f32.mrb[0].mxu0
    %v1726 = vadd.f32 0.0, %v1725
    %v1727 = vpop.f32.mrb[0].mxu0
    %1728 = vdwg.mxu0
    %v1729 = vadd.f32 %v1142, %v1726
    %v1730 = vxor.u32 %v1729, 2147483648
    %v1731 = vmul.f32 %v1730, 1.442695
    %v1732 = vpow.pop %v1731
    %v1733 = vadd.f32 %v1732, 1.0
    %v1734 = vrcp.pop %v1733
    %v1735 = vmul.f32 1.0, %v1734
    %v1736 = vtanh.pop %v1729
    %v1737 = vmul.f32 %v1735, %v1647
    %1739 = vrot.lane.b32.xlu0 %v1736, 80
    %v1740 = vpop.permute.xlu0 %1739
    %v1742 = vmul.f32 %v1735, %v1740
    %1744 = vrot.lane.b32.xlu0 %v1742, 16
    %v1745 = vpop.permute.xlu0 %1744
    %v1747 = vadd.f32 %v1737, %v1745
    %v1748 = vtanh.pop %v1747
    %1750 = vrot.lane.b32.xlu0 %v1748, 16
    %v1751 = vpop.permute.xlu0 %1750
    %v1753 = vmul.f32 %v1735, %v1751
    %s1754 = scalar_lea.vmem %s6, 16
    %v1755 = vld [vmem:[%s1754] sm:$0xff]
    %v1756 = vld [vmem:[%s1754 + $0x8] sm:$0xff]
    %s1757 = scalar_lea.vmem %s7, 1
    %v1758 = vld [vmem:[%s1757] sm:$0x1]
    %v1760 = vlaneseq
    %v1761 = vshrl.u32 %v1760, 7
    %v1762 = vsub.s32 0, %v1761
    %v1763 = vrot.slane %v1758, %v1762
    %1766 = vrot.lane.b32.xlu0 %v1753, 96
    %v1767 = vpop.permute.xlu0 %1766
    %v1768 = vsel %vm387, %v1767, 0
    %1770 = vmatprep.subr.mxu0 0.0
    %1771 = vmatpush1.msra.mxu0 %v1755
    %1772 = vmatprep.subr.mxu0 0.0
    %1773 = vmatpush1.msra.mxu0 %v1756
    %1774 = vmatprep.subr.mxu0 0.0
    %1775 = vmatpush1.msra.mxu0 0.0
    %1776 = vmatprep.subr.mxu0 0.0
    %1777 = vmatpush1.msra.mxu0 0.0
    %1778 = vmatprep.subr.mxu0 0.0
    %1779 = vmatpush1.msra.mxu0 0.0
    %1780 = vmatprep.subr.mxu0 0.0
    %1781 = vmatpush1.msra.mxu0 0.0
    %1782 = vmatprep.subr.mxu0 0.0
    %1783 = vmatpush1.msra.mxu0 0.0
    %1784 = vmatprep.subr.mxu0 0.0
    %1785 = vmatpush1.msra.mxu0 0.0
    %1786 = vmatprep.subr.mxu0 0.0
    %1787 = vmatpush1.msra.mxu0 0.0
    %1788 = vmatprep.subr.mxu0 0.0
    %1789 = vmatpush1.msra.mxu0 0.0
    %1790 = vmatprep.subr.mxu0 0.0
    %1791 = vmatpush1.msra.mxu0 0.0
    %1792 = vmatprep.subr.mxu0 0.0
    %1793 = vmatpush1.msra.mxu0 0.0
    %1794 = vmatprep.subr.mxu0 0.0
    %1795 = vmatpush1.msra.mxu0 0.0
    %1796 = vmatprep.subr.mxu0 0.0
    %1797 = vmatpush1.msra.mxu0 0.0
    %1798 = vmatprep.subr.mxu0 0.0
    %1799 = vmatpush1.msra.mxu0 0.0
    %1800 = vmatprep.subr.mxu0 0.0
    %1801 = vmatpush1.msra.mxu0 0.0
    %1802 = vmatprep.subr.mxu0 0.0
    %1803 = vmatpush1.msra.mxu0 0.0
    %1804 = vmatprep.subr.mxu0 0.0
    %1805 = vmatpush1.msra.mxu0 0.0
    %1806 = vmatprep.subr.mxu0 0.0
    %1807 = vmatpush1.msra.mxu0 0.0
    %1808 = vmatprep.subr.mxu0 0.0
    %1809 = vmatpush1.msra.mxu0 0.0
    %1810 = vmatprep.subr.mxu0 0.0
    %1811 = vmatpush1.msra.mxu0 0.0
    %1812 = vmatprep.subr.mxu0 0.0
    %1813 = vmatpush1.msra.mxu0 0.0
    %1814 = vmatprep.subr.mxu0 0.0
    %1815 = vmatpush1.msra.mxu0 0.0
    %1816 = vmatprep.subr.mxu0 0.0
    %1817 = vmatpush1.msra.mxu0 0.0
    %1818 = vmatprep.subr.mxu0 0.0
    %1819 = vmatpush1.msra.mxu0 0.0
    %1820 = vmatprep.subr.mxu0 0.0
    %1821 = vmatpush1.msra.mxu0 0.0
    %1822 = vmatprep.subr.mxu0 0.0
    %1823 = vmatpush1.msra.mxu0 0.0
    %1824 = vmatprep.subr.mxu0 0.0
    %1825 = vmatpush1.msra.mxu0 0.0
    %1826 = vmatprep.subr.mxu0 0.0
    %1827 = vmatpush1.msra.mxu0 0.0
    %1828 = vmatprep.subr.mxu0 0.0
    %1829 = vmatpush1.msra.mxu0 0.0
    %1830 = vmatprep.subr.mxu0 0.0
    %1831 = vmatpush1.msra.mxu0 0.0
    %1832 = vmatprep.subr.mxu0 0.0
    %1833 = vmatpush1.msra.mxu0 0.0
    %1834 = vmatprep.mubr.f32.mxu0 0.0
    %1835 = vmatmul.mubr.f32.gmra.mrb[0].mxu0 %v1257
    %v1836 = vpop.f32.mrb[0].mxu0
    %v1837 = vadd.f32 %v1763, %v1836
    %v1838 = vpop.f32.mrb[0].mxu0
    %1839 = vmatprep.mubr.f32.mxu0 0.0
    %1840 = vmatmul.mubr.f32.gmra.mrb[0].mxu0 %v1357
    %v1841 = vpop.f32.mrb[0].mxu0
    %v1842 = vadd.f32 %v1763, %v1841
    %v1843 = vpop.f32.mrb[0].mxu0
    %1844 = vmatprep.mubr.f32.mxu0 0.0
    %1845 = vmatmul.mubr.f32.gmra.mrb[0].mxu0 %v1457
    %v1846 = vpop.f32.mrb[0].mxu0
    %v1847 = vadd.f32 %v1763, %v1846
    %v1848 = vpop.f32.mrb[0].mxu0
    %1849 = vmatprep.mubr.f32.mxu0 0.0
    %1850 = vmatmul.mubr.f32.gmra.mrb[0].mxu0 %v1557
    %v1851 = vpop.f32.mrb[0].mxu0
    %v1852 = vadd.f32 %v1763, %v1851
    %v1853 = vpop.f32.mrb[0].mxu0
    %1854 = vmatprep.mubr.f32.mxu0 0.0
    %1855 = vmatmul.mubr.f32.gmra.mrb[0].mxu0 %v1657
    %v1856 = vpop.f32.mrb[0].mxu0
    %v1857 = vadd.f32 %v1763, %v1856
    %v1858 = vpop.f32.mrb[0].mxu0
    %1859 = vmatprep.mubr.f32.mxu0 0.0
    %1860 = vmatmul.mubr.f32.gmra.mrb[0].mxu0 %v1768
    %v1861 = vpop.f32.mrb[0].mxu0
    %v1862 = vadd.f32 %v1763, %v1861
    %v1863 = vpop.f32.mrb[0].mxu0
    %1864 = vdwg.mxu0
    %s1865 = scalar_lea.vmem %s1, 16
    %v1866 = vld [vmem:[%s1865] sm:$0xff]
    %s1867 = scalar_lea.vmem %s2, 16
    %v1868 = vld [vmem:[%s1867] sm:$0xff]
    %s1869 = scalar_lea.vmem %s8, 32
    %v1870 = vld [vmem:[%s1869] sm:$0xff]
    %v1871 = vld [vmem:[%s1869 + $0x8] sm:$0xff]
    %v1873 = vsel %vm387, %v1866, 0
    %1875 = vmatprep.subr.mxu0 0.0
    %1876 = vmatpush1.msra.mxu0 %v1870
    %1877 = vmatprep.subr.mxu0 0.0
    %1878 = vmatpush1.msra.mxu0 %v1871
    %1879 = vmatprep.subr.mxu0 0.0
    %1880 = vmatpush1.msra.mxu0 0.0
    %1881 = vmatprep.subr.mxu0 0.0
    %1882 = vmatpush1.msra.mxu0 0.0
    %1883 = vmatprep.subr.mxu0 0.0
    %1884 = vmatpush1.msra.mxu0 0.0
    %1885 = vmatprep.subr.mxu0 0.0
    %1886 = vmatpush1.msra.mxu0 0.0
    %1887 = vmatprep.subr.mxu0 0.0
    %1888 = vmatpush1.msra.mxu0 0.0
    %1889 = vmatprep.subr.mxu0 0.0
    %1890 = vmatpush1.msra.mxu0 0.0
    %1891 = vmatprep.subr.mxu0 0.0
    %1892 = vmatpush1.msra.mxu0 0.0
    %1893 = vmatprep.subr.mxu0 0.0
    %1894 = vmatpush1.msra.mxu0 0.0
    %1895 = vmatprep.subr.mxu0 0.0
    %1896 = vmatpush1.msra.mxu0 0.0
    %1897 = vmatprep.subr.mxu0 0.0
    %1898 = vmatpush1.msra.mxu0 0.0
    %1899 = vmatprep.subr.mxu0 0.0
    %1900 = vmatpush1.msra.mxu0 0.0
    %1901 = vmatprep.subr.mxu0 0.0
    %1902 = vmatpush1.msra.mxu0 0.0
    %1903 = vmatprep.subr.mxu0 0.0
    %1904 = vmatpush1.msra.mxu0 0.0
    %1905 = vmatprep.subr.mxu0 0.0
    %1906 = vmatpush1.msra.mxu0 0.0
    %1907 = vmatprep.subr.mxu0 0.0
    %1908 = vmatpush1.msra.mxu0 0.0
    %1909 = vmatprep.subr.mxu0 0.0
    %1910 = vmatpush1.msra.mxu0 0.0
    %1911 = vmatprep.subr.mxu0 0.0
    %1912 = vmatpush1.msra.mxu0 0.0
    %1913 = vmatprep.subr.mxu0 0.0
    %1914 = vmatpush1.msra.mxu0 0.0
    %1915 = vmatprep.subr.mxu0 0.0
    %1916 = vmatpush1.msra.mxu0 0.0
    %1917 = vmatprep.subr.mxu0 0.0
    %1918 = vmatpush1.msra.mxu0 0.0
    %1919 = vmatprep.subr.mxu0 0.0
    %1920 = vmatpush1.msra.mxu0 0.0
    %1921 = vmatprep.subr.mxu0 0.0
    %1922 = vmatpush1.msra.mxu0 0.0
    %1923 = vmatprep.subr.mxu0 0.0
    %1924 = vmatpush1.msra.mxu0 0.0
    %1925 = vmatprep.subr.mxu0 0.0
    %1926 = vmatpush1.msra.mxu0 0.0
    %1927 = vmatprep.subr.mxu0 0.0
    %1928 = vmatpush1.msra.mxu0 0.0
    %1929 = vmatprep.subr.mxu0 0.0
    %1930 = vmatpush1.msra.mxu0 0.0
    %1931 = vmatprep.subr.mxu0 0.0
    %1932 = vmatpush1.msra.mxu0 0.0
    %1933 = vmatprep.subr.mxu0 0.0
    %1934 = vmatpush1.msra.mxu0 0.0
    %1935 = vmatprep.subr.mxu0 0.0
    %1936 = vmatpush1.msra.mxu0 0.0
    %1937 = vmatprep.subr.mxu0 0.0
    %1938 = vmatpush1.msra.mxu0 0.0
    %1939 = vmatprep.mubr.f32.mxu0 0.0
    %1940 = vmatmul.mubr.f32.gmra.mrb[0].mxu0 %v1873
    %v1941 = vpop.f32.mrb[0].mxu0
    %v1942 = vadd.f32 0.0, %v1941
    %v1943 = vpop.f32.mrb[0].mxu0
    %1944 = vdwg.mxu0
    %v1945 = vadd.f32 %v1837, %v1942
    %v1946 = vxor.u32 %v1945, 2147483648
    %v1947 = vmul.f32 %v1946, 1.442695
    %v1948 = vpow.pop %v1947
    %v1949 = vadd.f32 %v1948, 1.0
    %v1950 = vrcp.pop %v1949
    %v1951 = vmul.f32 1.0, %v1950
    %v1952 = vtanh.pop %v1945
    %1954 = vrot.lane.b32.xlu0 %v1868, 16
    %v1955 = vpop.permute.xlu0 %1954
    %v1957 = vmul.f32 %v1951, %v1955
    %1959 = vrot.lane.b32.xlu0 %v1952, 80
    %v1960 = vpop.permute.xlu0 %1959
    %v1962 = vmul.f32 %v1951, %v1960
    %1964 = vrot.lane.b32.xlu0 %v1962, 16
    %v1965 = vpop.permute.xlu0 %1964
    %v1967 = vadd.f32 %v1957, %v1965
    %v1968 = vtanh.pop %v1967
    %1970 = vrot.lane.b32.xlu0 %v1968, 16
    %v1971 = vpop.permute.xlu0 %1970
    %v1973 = vmul.f32 %v1951, %v1971
    %1975 = vrot.lane.b32.xlu0 %v1973, 96
    %v1976 = vpop.permute.xlu0 %1975
    %v1977 = vsel %vm387, %v1976, 0
    %1979 = vmatprep.subr.mxu0 0.0
    %1980 = vmatpush1.msra.mxu0 %v1870
    %1981 = vmatprep.subr.mxu0 0.0
    %1982 = vmatpush1.msra.mxu0 %v1871
    %1983 = vmatprep.subr.mxu0 0.0
    %1984 = vmatpush1.msra.mxu0 0.0
    %1985 = vmatprep.subr.mxu0 0.0
    %1986 = vmatpush1.msra.mxu0 0.0
    %1987 = vmatprep.subr.mxu0 0.0
    %1988 = vmatpush1.msra.mxu0 0.0
    %1989 = vmatprep.subr.mxu0 0.0
    %1990 = vmatpush1.msra.mxu0 0.0
    %1991 = vmatprep.subr.mxu0 0.0
    %1992 = vmatpush1.msra.mxu0 0.0
    %1993 = vmatprep.subr.mxu0 0.0
    %1994 = vmatpush1.msra.mxu0 0.0
    %1995 = vmatprep.subr.mxu0 0.0
    %1996 = vmatpush1.msra.mxu0 0.0
    %1997 = vmatprep.subr.mxu0 0.0
    %1998 = vmatpush1.msra.mxu0 0.0
    %1999 = vmatprep.subr.mxu0 0.0
    %2000 = vmatpush1.msra.mxu0 0.0
    %2001 = vmatprep.subr.mxu0 0.0
    %2002 = vmatpush1.msra.mxu0 0.0
    %2003 = vmatprep.subr.mxu0 0.0
    %2004 = vmatpush1.msra.mxu0 0.0
    %2005 = vmatprep.subr.mxu0 0.0
    %2006 = vmatpush1.msra.mxu0 0.0
    %2007 = vmatprep.subr.mxu0 0.0
    %2008 = vmatpush1.msra.mxu0 0.0
    %2009 = vmatprep.subr.mxu0 0.0
    %2010 = vmatpush1.msra.mxu0 0.0
    %2011 = vmatprep.subr.mxu0 0.0
    %2012 = vmatpush1.msra.mxu0 0.0
    %2013 = vmatprep.subr.mxu0 0.0
    %2014 = vmatpush1.msra.mxu0 0.0
    %2015 = vmatprep.subr.mxu0 0.0
    %2016 = vmatpush1.msra.mxu0 0.0
    %2017 = vmatprep.subr.mxu0 0.0
    %2018 = vmatpush1.msra.mxu0 0.0
    %2019 = vmatprep.subr.mxu0 0.0
    %2020 = vmatpush1.msra.mxu0 0.0
    %2021 = vmatprep.subr.mxu0 0.0
    %2022 = vmatpush1.msra.mxu0 0.0
    %2023 = vmatprep.subr.mxu0 0.0
    %2024 = vmatpush1.msra.mxu0 0.0
    %2025 = vmatprep.subr.mxu0 0.0
    %2026 = vmatpush1.msra.mxu0 0.0
    %2027 = vmatprep.subr.mxu0 0.0
    %2028 = vmatpush1.msra.mxu0 0.0
    %2029 = vmatprep.subr.mxu0 0.0
    %2030 = vmatpush1.msra.mxu0 0.0
    %2031 = vmatprep.subr.mxu0 0.0
    %2032 = vmatpush1.msra.mxu0 0.0
    %2033 = vmatprep.subr.mxu0 0.0
    %2034 = vmatpush1.msra.mxu0 0.0
    %2035 = vmatprep.subr.mxu0 0.0
    %2036 = vmatpush1.msra.mxu0 0.0
    %2037 = vmatprep.subr.mxu0 0.0
    %2038 = vmatpush1.msra.mxu0 0.0
    %2039 = vmatprep.subr.mxu0 0.0
    %2040 = vmatpush1.msra.mxu0 0.0
    %2041 = vmatprep.subr.mxu0 0.0
    %2042 = vmatpush1.msra.mxu0 0.0
    %2043 = vmatprep.mubr.f32.mxu0 0.0
    %2044 = vmatmul.mubr.f32.gmra.mrb[0].mxu0 %v1977
    %v2045 = vpop.f32.mrb[0].mxu0
    %v2046 = vadd.f32 0.0, %v2045
    %v2047 = vpop.f32.mrb[0].mxu0
    %2048 = vdwg.mxu0
    %v2049 = vadd.f32 %v1842, %v2046
    %v2050 = vxor.u32 %v2049, 2147483648
    %v2051 = vmul.f32 %v2050, 1.442695
    %v2052 = vpow.pop %v2051
    %v2053 = vadd.f32 %v2052, 1.0
    %v2054 = vrcp.pop %v2053
    %v2055 = vmul.f32 1.0, %v2054
    %v2056 = vtanh.pop %v2049
    %v2057 = vmul.f32 %v2055, %v1967
    %2059 = vrot.lane.b32.xlu0 %v2056, 80
    %v2060 = vpop.permute.xlu0 %2059
    %v2062 = vmul.f32 %v2055, %v2060
    %2064 = vrot.lane.b32.xlu0 %v2062, 16
    %v2065 = vpop.permute.xlu0 %2064
    %v2067 = vadd.f32 %v2057, %v2065
    %v2068 = vtanh.pop %v2067
    %2070 = vrot.lane.b32.xlu0 %v2068, 16
    %v2071 = vpop.permute.xlu0 %2070
    %v2073 = vmul.f32 %v2055, %v2071
    %2075 = vrot.lane.b32.xlu0 %v2073, 96
    %v2076 = vpop.permute.xlu0 %2075
    %v2077 = vsel %vm387, %v2076, 0
    %2079 = vmatprep.subr.mxu0 0.0
    %2080 = vmatpush1.msra.mxu0 %v1870
    %2081 = vmatprep.subr.mxu0 0.0
    %2082 = vmatpush1.msra.mxu0 %v1871
    %2083 = vmatprep.subr.mxu0 0.0
    %2084 = vmatpush1.msra.mxu0 0.0
    %2085 = vmatprep.subr.mxu0 0.0
    %2086 = vmatpush1.msra.mxu0 0.0
    %2087 = vmatprep.subr.mxu0 0.0
    %2088 = vmatpush1.msra.mxu0 0.0
    %2089 = vmatprep.subr.mxu0 0.0
    %2090 = vmatpush1.msra.mxu0 0.0
    %2091 = vmatprep.subr.mxu0 0.0
    %2092 = vmatpush1.msra.mxu0 0.0
    %2093 = vmatprep.subr.mxu0 0.0
    %2094 = vmatpush1.msra.mxu0 0.0
    %2095 = vmatprep.subr.mxu0 0.0
    %2096 = vmatpush1.msra.mxu0 0.0
    %2097 = vmatprep.subr.mxu0 0.0
    %2098 = vmatpush1.msra.mxu0 0.0
    %2099 = vmatprep.subr.mxu0 0.0
    %2100 = vmatpush1.msra.mxu0 0.0
    %2101 = vmatprep.subr.mxu0 0.0
    %2102 = vmatpush1.msra.mxu0 0.0
    %2103 = vmatprep.subr.mxu0 0.0
    %2104 = vmatpush1.msra.mxu0 0.0
    %2105 = vmatprep.subr.mxu0 0.0
    %2106 = vmatpush1.msra.mxu0 0.0
    %2107 = vmatprep.subr.mxu0 0.0
    %2108 = vmatpush1.msra.mxu0 0.0
    %2109 = vmatprep.subr.mxu0 0.0
    %2110 = vmatpush1.msra.mxu0 0.0
    %2111 = vmatprep.subr.mxu0 0.0
    %2112 = vmatpush1.msra.mxu0 0.0
    %2113 = vmatprep.subr.mxu0 0.0
    %2114 = vmatpush1.msra.mxu0 0.0
    %2115 = vmatprep.subr.mxu0 0.0
    %2116 = vmatpush1.msra.mxu0 0.0
    %2117 = vmatprep.subr.mxu0 0.0
    %2118 = vmatpush1.msra.mxu0 0.0
    %2119 = vmatprep.subr.mxu0 0.0
    %2120 = vmatpush1.msra.mxu0 0.0
    %2121 = vmatprep.subr.mxu0 0.0
    %2122 = vmatpush1.msra.mxu0 0.0
    %2123 = vmatprep.subr.mxu0 0.0
    %2124 = vmatpush1.msra.mxu0 0.0
    %2125 = vmatprep.subr.mxu0 0.0
    %2126 = vmatpush1.msra.mxu0 0.0
    %2127 = vmatprep.subr.mxu0 0.0
    %2128 = vmatpush1.msra.mxu0 0.0
    %2129 = vmatprep.subr.mxu0 0.0
    %2130 = vmatpush1.msra.mxu0 0.0
    %2131 = vmatprep.subr.mxu0 0.0
    %2132 = vmatpush1.msra.mxu0 0.0
    %2133 = vmatprep.subr.mxu0 0.0
    %2134 = vmatpush1.msra.mxu0 0.0
    %2135 = vmatprep.subr.mxu0 0.0
    %2136 = vmatpush1.msra.mxu0 0.0
    %2137 = vmatprep.subr.mxu0 0.0
    %2138 = vmatpush1.msra.mxu0 0.0
    %2139 = vmatprep.subr.mxu0 0.0
    %2140 = vmatpush1.msra.mxu0 0.0
    %2141 = vmatprep.subr.mxu0 0.0
    %2142 = vmatpush1.msra.mxu0 0.0
    %2143 = vmatprep.mubr.f32.mxu0 0.0
    %2144 = vmatmul.mubr.f32.gmra.mrb[0].mxu0 %v2077
    %v2145 = vpop.f32.mrb[0].mxu0
    %v2146 = vadd.f32 0.0, %v2145
    %v2147 = vpop.f32.mrb[0].mxu0
    %2148 = vdwg.mxu0
    %v2149 = vadd.f32 %v1847, %v2146
    %v2150 = vxor.u32 %v2149, 2147483648
    %v2151 = vmul.f32 %v2150, 1.442695
    %v2152 = vpow.pop %v2151
    %v2153 = vadd.f32 %v2152, 1.0
    %v2154 = vrcp.pop %v2153
    %v2155 = vmul.f32 1.0, %v2154
    %v2156 = vtanh.pop %v2149
    %v2157 = vmul.f32 %v2155, %v2067
    %2159 = vrot.lane.b32.xlu0 %v2156, 80
    %v2160 = vpop.permute.xlu0 %2159
    %v2162 = vmul.f32 %v2155, %v2160
    %2164 = vrot.lane.b32.xlu0 %v2162, 16
    %v2165 = vpop.permute.xlu0 %2164
    %v2167 = vadd.f32 %v2157, %v2165
    %v2168 = vtanh.pop %v2167
    %2170 = vrot.lane.b32.xlu0 %v2168, 16
    %v2171 = vpop.permute.xlu0 %2170
    %v2173 = vmul.f32 %v2155, %v2171
    %2175 = vrot.lane.b32.xlu0 %v2173, 96
    %v2176 = vpop.permute.xlu0 %2175
    %v2177 = vsel %vm387, %v2176, 0
    %2179 = vmatprep.subr.mxu0 0.0
    %2180 = vmatpush1.msra.mxu0 %v1870
    %2181 = vmatprep.subr.mxu0 0.0
    %2182 = vmatpush1.msra.mxu0 %v1871
    %2183 = vmatprep.subr.mxu0 0.0
    %2184 = vmatpush1.msra.mxu0 0.0
    %2185 = vmatprep.subr.mxu0 0.0
    %2186 = vmatpush1.msra.mxu0 0.0
    %2187 = vmatprep.subr.mxu0 0.0
    %2188 = vmatpush1.msra.mxu0 0.0
    %2189 = vmatprep.subr.mxu0 0.0
    %2190 = vmatpush1.msra.mxu0 0.0
    %2191 = vmatprep.subr.mxu0 0.0
    %2192 = vmatpush1.msra.mxu0 0.0
    %2193 = vmatprep.subr.mxu0 0.0
    %2194 = vmatpush1.msra.mxu0 0.0
    %2195 = vmatprep.subr.mxu0 0.0
    %2196 = vmatpush1.msra.mxu0 0.0
    %2197 = vmatprep.subr.mxu0 0.0
    %2198 = vmatpush1.msra.mxu0 0.0
    %2199 = vmatprep.subr.mxu0 0.0
    %2200 = vmatpush1.msra.mxu0 0.0
    %2201 = vmatprep.subr.mxu0 0.0
    %2202 = vmatpush1.msra.mxu0 0.0
    %2203 = vmatprep.subr.mxu0 0.0
    %2204 = vmatpush1.msra.mxu0 0.0
    %2205 = vmatprep.subr.mxu0 0.0
    %2206 = vmatpush1.msra.mxu0 0.0
    %2207 = vmatprep.subr.mxu0 0.0
    %2208 = vmatpush1.msra.mxu0 0.0
    %2209 = vmatprep.subr.mxu0 0.0
    %2210 = vmatpush1.msra.mxu0 0.0
    %2211 = vmatprep.subr.mxu0 0.0
    %2212 = vmatpush1.msra.mxu0 0.0
    %2213 = vmatprep.subr.mxu0 0.0
    %2214 = vmatpush1.msra.mxu0 0.0
    %2215 = vmatprep.subr.mxu0 0.0
    %2216 = vmatpush1.msra.mxu0 0.0
    %2217 = vmatprep.subr.mxu0 0.0
    %2218 = vmatpush1.msra.mxu0 0.0
    %2219 = vmatprep.subr.mxu0 0.0
    %2220 = vmatpush1.msra.mxu0 0.0
    %2221 = vmatprep.subr.mxu0 0.0
    %2222 = vmatpush1.msra.mxu0 0.0
    %2223 = vmatprep.subr.mxu0 0.0
    %2224 = vmatpush1.msra.mxu0 0.0
    %2225 = vmatprep.subr.mxu0 0.0
    %2226 = vmatpush1.msra.mxu0 0.0
    %2227 = vmatprep.subr.mxu0 0.0
    %2228 = vmatpush1.msra.mxu0 0.0
    %2229 = vmatprep.subr.mxu0 0.0
    %2230 = vmatpush1.msra.mxu0 0.0
    %2231 = vmatprep.subr.mxu0 0.0
    %2232 = vmatpush1.msra.mxu0 0.0
    %2233 = vmatprep.subr.mxu0 0.0
    %2234 = vmatpush1.msra.mxu0 0.0
    %2235 = vmatprep.subr.mxu0 0.0
    %2236 = vmatpush1.msra.mxu0 0.0
    %2237 = vmatprep.subr.mxu0 0.0
    %2238 = vmatpush1.msra.mxu0 0.0
    %2239 = vmatprep.subr.mxu0 0.0
    %2240 = vmatpush1.msra.mxu0 0.0
    %2241 = vmatprep.subr.mxu0 0.0
    %2242 = vmatpush1.msra.mxu0 0.0
    %2243 = vmatprep.mubr.f32.mxu0 0.0
    %2244 = vmatmul.mubr.f32.gmra.mrb[0].mxu0 %v2177
    %v2245 = vpop.f32.mrb[0].mxu0
    %v2246 = vadd.f32 0.0, %v2245
    %v2247 = vpop.f32.mrb[0].mxu0
    %2248 = vdwg.mxu0
    %v2249 = vadd.f32 %v1852, %v2246
    %v2250 = vxor.u32 %v2249, 2147483648
    %v2251 = vmul.f32 %v2250, 1.442695
    %v2252 = vpow.pop %v2251
    %v2253 = vadd.f32 %v2252, 1.0
    %v2254 = vrcp.pop %v2253
    %v2255 = vmul.f32 1.0, %v2254
    %v2256 = vtanh.pop %v2249
    %v2257 = vmul.f32 %v2255, %v2167
    %2259 = vrot.lane.b32.xlu0 %v2256, 80
    %v2260 = vpop.permute.xlu0 %2259
    %v2262 = vmul.f32 %v2255, %v2260
    %2264 = vrot.lane.b32.xlu0 %v2262, 16
    %v2265 = vpop.permute.xlu0 %2264
    %v2267 = vadd.f32 %v2257, %v2265
    %v2268 = vtanh.pop %v2267
    %2270 = vrot.lane.b32.xlu0 %v2268, 16
    %v2271 = vpop.permute.xlu0 %2270
    %v2273 = vmul.f32 %v2255, %v2271
    %2275 = vrot.lane.b32.xlu0 %v2273, 96
    %v2276 = vpop.permute.xlu0 %2275
    %v2277 = vsel %vm387, %v2276, 0
    %2279 = vmatprep.subr.mxu0 0.0
    %2280 = vmatpush1.msra.mxu0 %v1870
    %2281 = vmatprep.subr.mxu0 0.0
    %2282 = vmatpush1.msra.mxu0 %v1871
    %2283 = vmatprep.subr.mxu0 0.0
    %2284 = vmatpush1.msra.mxu0 0.0
    %2285 = vmatprep.subr.mxu0 0.0
    %2286 = vmatpush1.msra.mxu0 0.0
    %2287 = vmatprep.subr.mxu0 0.0
    %2288 = vmatpush1.msra.mxu0 0.0
    %2289 = vmatprep.subr.mxu0 0.0
    %2290 = vmatpush1.msra.mxu0 0.0
    %2291 = vmatprep.subr.mxu0 0.0
    %2292 = vmatpush1.msra.mxu0 0.0
    %2293 = vmatprep.subr.mxu0 0.0
    %2294 = vmatpush1.msra.mxu0 0.0
    %2295 = vmatprep.subr.mxu0 0.0
    %2296 = vmatpush1.msra.mxu0 0.0
    %2297 = vmatprep.subr.mxu0 0.0
    %2298 = vmatpush1.msra.mxu0 0.0
    %2299 = vmatprep.subr.mxu0 0.0
    %2300 = vmatpush1.msra.mxu0 0.0
    %2301 = vmatprep.subr.mxu0 0.0
    %2302 = vmatpush1.msra.mxu0 0.0
    %2303 = vmatprep.subr.mxu0 0.0
    %2304 = vmatpush1.msra.mxu0 0.0
    %2305 = vmatprep.subr.mxu0 0.0
    %2306 = vmatpush1.msra.mxu0 0.0
    %2307 = vmatprep.subr.mxu0 0.0
    %2308 = vmatpush1.msra.mxu0 0.0
    %2309 = vmatprep.subr.mxu0 0.0
    %2310 = vmatpush1.msra.mxu0 0.0
    %2311 = vmatprep.subr.mxu0 0.0
    %2312 = vmatpush1.msra.mxu0 0.0
    %2313 = vmatprep.subr.mxu0 0.0
    %2314 = vmatpush1.msra.mxu0 0.0
    %2315 = vmatprep.subr.mxu0 0.0
    %2316 = vmatpush1.msra.mxu0 0.0
    %2317 = vmatprep.subr.mxu0 0.0
    %2318 = vmatpush1.msra.mxu0 0.0
    %2319 = vmatprep.subr.mxu0 0.0
    %2320 = vmatpush1.msra.mxu0 0.0
    %2321 = vmatprep.subr.mxu0 0.0
    %2322 = vmatpush1.msra.mxu0 0.0
    %2323 = vmatprep.subr.mxu0 0.0
    %2324 = vmatpush1.msra.mxu0 0.0
    %2325 = vmatprep.subr.mxu0 0.0
    %2326 = vmatpush1.msra.mxu0 0.0
    %2327 = vmatprep.subr.mxu0 0.0
    %2328 = vmatpush1.msra.mxu0 0.0
    %2329 = vmatprep.subr.mxu0 0.0
    %2330 = vmatpush1.msra.mxu0 0.0
    %2331 = vmatprep.subr.mxu0 0.0
    %2332 = vmatpush1.msra.mxu0 0.0
    %2333 = vmatprep.subr.mxu0 0.0
    %2334 = vmatpush1.msra.mxu0 0.0
    %2335 = vmatprep.subr.mxu0 0.0
    %2336 = vmatpush1.msra.mxu0 0.0
    %2337 = vmatprep.subr.mxu0 0.0
    %2338 = vmatpush1.msra.mxu0 0.0
    %2339 = vmatprep.subr.mxu0 0.0
    %2340 = vmatpush1.msra.mxu0 0.0
    %2341 = vmatprep.subr.mxu0 0.0
    %2342 = vmatpush1.msra.mxu0 0.0
    %2343 = vmatprep.mubr.f32.mxu0 0.0
    %2344 = vmatmul.mubr.f32.gmra.mrb[0].mxu0 %v2277
    %v2345 = vpop.f32.mrb[0].mxu0
    %v2346 = vadd.f32 0.0, %v2345
    %v2347 = vpop.f32.mrb[0].mxu0
    %2348 = vdwg.mxu0
    %v2349 = vadd.f32 %v1857, %v2346
    %v2350 = vxor.u32 %v2349, 2147483648
    %v2351 = vmul.f32 %v2350, 1.442695
    %v2352 = vpow.pop %v2351
    %v2353 = vadd.f32 %v2352, 1.0
    %v2354 = vrcp.pop %v2353
    %v2355 = vmul.f32 1.0, %v2354
    %v2356 = vtanh.pop %v2349
    %v2357 = vmul.f32 %v2355, %v2267
    %2359 = vrot.lane.b32.xlu0 %v2356, 80
    %v2360 = vpop.permute.xlu0 %2359
    %v2362 = vmul.f32 %v2355, %v2360
    %2364 = vrot.lane.b32.xlu0 %v2362, 16
    %v2365 = vpop.permute.xlu0 %2364
    %v2367 = vadd.f32 %v2357, %v2365
    %v2368 = vtanh.pop %v2367
    %2370 = vrot.lane.b32.xlu0 %v2368, 16
    %v2371 = vpop.permute.xlu0 %2370
    %v2373 = vmul.f32 %v2355, %v2371
    %2375 = vrot.lane.b32.xlu0 %v2373, 96
    %v2376 = vpop.permute.xlu0 %2375
    %v2377 = vsel %vm387, %v2376, 0
    %2379 = vmatprep.subr.mxu0 0.0
    %2380 = vmatpush1.msra.mxu0 %v1870
    %2381 = vmatprep.subr.mxu0 0.0
    %2382 = vmatpush1.msra.mxu0 %v1871
    %2383 = vmatprep.subr.mxu0 0.0
    %2384 = vmatpush1.msra.mxu0 0.0
    %2385 = vmatprep.subr.mxu0 0.0
    %2386 = vmatpush1.msra.mxu0 0.0
    %2387 = vmatprep.subr.mxu0 0.0
    %2388 = vmatpush1.msra.mxu0 0.0
    %2389 = vmatprep.subr.mxu0 0.0
    %2390 = vmatpush1.msra.mxu0 0.0
    %2391 = vmatprep.subr.mxu0 0.0
    %2392 = vmatpush1.msra.mxu0 0.0
    %2393 = vmatprep.subr.mxu0 0.0
    %2394 = vmatpush1.msra.mxu0 0.0
    %2395 = vmatprep.subr.mxu0 0.0
    %2396 = vmatpush1.msra.mxu0 0.0
    %2397 = vmatprep.subr.mxu0 0.0
    %2398 = vmatpush1.msra.mxu0 0.0
    %2399 = vmatprep.subr.mxu0 0.0
    %2400 = vmatpush1.msra.mxu0 0.0
    %2401 = vmatprep.subr.mxu0 0.0
    %2402 = vmatpush1.msra.mxu0 0.0
    %2403 = vmatprep.subr.mxu0 0.0
    %2404 = vmatpush1.msra.mxu0 0.0
    %2405 = vmatprep.subr.mxu0 0.0
    %2406 = vmatpush1.msra.mxu0 0.0
    %2407 = vmatprep.subr.mxu0 0.0
    %2408 = vmatpush1.msra.mxu0 0.0
    %2409 = vmatprep.subr.mxu0 0.0
    %2410 = vmatpush1.msra.mxu0 0.0
    %2411 = vmatprep.subr.mxu0 0.0
    %2412 = vmatpush1.msra.mxu0 0.0
    %2413 = vmatprep.subr.mxu0 0.0
    %2414 = vmatpush1.msra.mxu0 0.0
    %2415 = vmatprep.subr.mxu0 0.0
    %2416 = vmatpush1.msra.mxu0 0.0
    %2417 = vmatprep.subr.mxu0 0.0
    %2418 = vmatpush1.msra.mxu0 0.0
    %2419 = vmatprep.subr.mxu0 0.0
    %2420 = vmatpush1.msra.mxu0 0.0
    %2421 = vmatprep.subr.mxu0 0.0
    %2422 = vmatpush1.msra.mxu0 0.0
    %2423 = vmatprep.subr.mxu0 0.0
    %2424 = vmatpush1.msra.mxu0 0.0
    %2425 = vmatprep.subr.mxu0 0.0
    %2426 = vmatpush1.msra.mxu0 0.0
    %2427 = vmatprep.subr.mxu0 0.0
    %2428 = vmatpush1.msra.mxu0 0.0
    %2429 = vmatprep.subr.mxu0 0.0
    %2430 = vmatpush1.msra.mxu0 0.0
    %2431 = vmatprep.subr.mxu0 0.0
    %2432 = vmatpush1.msra.mxu0 0.0
    %2433 = vmatprep.subr.mxu0 0.0
    %2434 = vmatpush1.msra.mxu0 0.0
    %2435 = vmatprep.subr.mxu0 0.0
    %2436 = vmatpush1.msra.mxu0 0.0
    %2437 = vmatprep.subr.mxu0 0.0
    %2438 = vmatpush1.msra.mxu0 0.0
    %2439 = vmatprep.subr.mxu0 0.0
    %2440 = vmatpush1.msra.mxu0 0.0
    %2441 = vmatprep.subr.mxu0 0.0
    %2442 = vmatpush1.msra.mxu0 0.0
    %2443 = vmatprep.mubr.f32.mxu0 0.0
    %2444 = vmatmul.mubr.f32.gmra.mrb[0].mxu0 %v2377
    %v2445 = vpop.f32.mrb[0].mxu0
    %v2446 = vadd.f32 0.0, %v2445
    %v2447 = vpop.f32.mrb[0].mxu0
    %2448 = vdwg.mxu0
    %v2449 = vadd.f32 %v1862, %v2446
    %v2450 = vxor.u32 %v2449, 2147483648
    %v2451 = vmul.f32 %v2450, 1.442695
    %v2452 = vpow.pop %v2451
    %v2453 = vadd.f32 %v2452, 1.0
    %v2454 = vrcp.pop %v2453
    %v2455 = vmul.f32 1.0, %v2454
    %v2456 = vtanh.pop %v2449
    %v2457 = vmul.f32 %v2455, %v2367
    %2459 = vrot.lane.b32.xlu0 %v2456, 80
    %v2460 = vpop.permute.xlu0 %2459
    %v2462 = vmul.f32 %v2455, %v2460
    %2464 = vrot.lane.b32.xlu0 %v2462, 16
    %v2465 = vpop.permute.xlu0 %2464
    %v2467 = vadd.f32 %v2457, %v2465
    %v2468 = vtanh.pop %v2467
    %2470 = vrot.lane.b32.xlu0 %v2468, 16
    %v2471 = vpop.permute.xlu0 %2470
    %v2473 = vmul.f32 %v2455, %v2471
    %s2474 = scalar_lea.vmem %s6, 32
    %v2475 = vld [vmem:[%s2474] sm:$0xff]
    %v2476 = vld [vmem:[%s2474 + $0x8] sm:$0xff]
    %s2477 = scalar_lea.vmem %s7, 2
    %v2478 = vld [vmem:[%s2477] sm:$0x1]
    %v2480 = vlaneseq
    %v2481 = vshrl.u32 %v2480, 7
    %v2482 = vsub.s32 0, %v2481
    %v2483 = vrot.slane %v2478, %v2482
    %2486 = vrot.lane.b32.xlu0 %v2473, 96
    %v2487 = vpop.permute.xlu0 %2486
    %v2488 = vsel %vm387, %v2487, 0
    %2490 = vmatprep.subr.mxu0 0.0
    %2491 = vmatpush1.msra.mxu0 %v2475
    %2492 = vmatprep.subr.mxu0 0.0
    %2493 = vmatpush1.msra.mxu0 %v2476
    %2494 = vmatprep.subr.mxu0 0.0
    %2495 = vmatpush1.msra.mxu0 0.0
    %2496 = vmatprep.subr.mxu0 0.0
    %2497 = vmatpush1.msra.mxu0 0.0
    %2498 = vmatprep.subr.mxu0 0.0
    %2499 = vmatpush1.msra.mxu0 0.0
    %2500 = vmatprep.subr.mxu0 0.0
    %2501 = vmatpush1.msra.mxu0 0.0
    %2502 = vmatprep.subr.mxu0 0.0
    %2503 = vmatpush1.msra.mxu0 0.0
    %2504 = vmatprep.subr.mxu0 0.0
    %2505 = vmatpush1.msra.mxu0 0.0
    %2506 = vmatprep.subr.mxu0 0.0
    %2507 = vmatpush1.msra.mxu0 0.0
    %2508 = vmatprep.subr.mxu0 0.0
    %2509 = vmatpush1.msra.mxu0 0.0
    %2510 = vmatprep.subr.mxu0 0.0
    %2511 = vmatpush1.msra.mxu0 0.0
    %2512 = vmatprep.subr.mxu0 0.0
    %2513 = vmatpush1.msra.mxu0 0.0
    %2514 = vmatprep.subr.mxu0 0.0
    %2515 = vmatpush1.msra.mxu0 0.0
    %2516 = vmatprep.subr.mxu0 0.0
    %2517 = vmatpush1.msra.mxu0 0.0
    %2518 = vmatprep.subr.mxu0 0.0
    %2519 = vmatpush1.msra.mxu0 0.0
    %2520 = vmatprep.subr.mxu0 0.0
    %2521 = vmatpush1.msra.mxu0 0.0
    %2522 = vmatprep.subr.mxu0 0.0
    %2523 = vmatpush1.msra.mxu0 0.0
    %2524 = vmatprep.subr.mxu0 0.0
    %2525 = vmatpush1.msra.mxu0 0.0
    %2526 = vmatprep.subr.mxu0 0.0
    %2527 = vmatpush1.msra.mxu0 0.0
    %2528 = vmatprep.subr.mxu0 0.0
    %2529 = vmatpush1.msra.mxu0 0.0
    %2530 = vmatprep.subr.mxu0 0.0
    %2531 = vmatpush1.msra.mxu0 0.0
    %2532 = vmatprep.subr.mxu0 0.0
    %2533 = vmatpush1.msra.mxu0 0.0
    %2534 = vmatprep.subr.mxu0 0.0
    %2535 = vmatpush1.msra.mxu0 0.0
    %2536 = vmatprep.subr.mxu0 0.0
    %2537 = vmatpush1.msra.mxu0 0.0
    %2538 = vmatprep.subr.mxu0 0.0
    %2539 = vmatpush1.msra.mxu0 0.0
    %2540 = vmatprep.subr.mxu0 0.0
    %2541 = vmatpush1.msra.mxu0 0.0
    %2542 = vmatprep.subr.mxu0 0.0
    %2543 = vmatpush1.msra.mxu0 0.0
    %2544 = vmatprep.subr.mxu0 0.0
    %2545 = vmatpush1.msra.mxu0 0.0
    %2546 = vmatprep.subr.mxu0 0.0
    %2547 = vmatpush1.msra.mxu0 0.0
    %2548 = vmatprep.subr.mxu0 0.0
    %2549 = vmatpush1.msra.mxu0 0.0
    %2550 = vmatprep.subr.mxu0 0.0
    %2551 = vmatpush1.msra.mxu0 0.0
    %2552 = vmatprep.subr.mxu0 0.0
    %2553 = vmatpush1.msra.mxu0 0.0
    %2554 = vmatprep.mubr.f32.mxu0 0.0
    %2555 = vmatmul.mubr.f32.gmra.mrb[0].mxu0 %v1977
    %v2556 = vpop.f32.mrb[0].mxu0
    %v2557 = vadd.f32 %v2483, %v2556
    %v2558 = vpop.f32.mrb[0].mxu0
    %2559 = vmatprep.mubr.f32.mxu0 0.0
    %2560 = vmatmul.mubr.f32.gmra.mrb[0].mxu0 %v2077
    %v2561 = vpop.f32.mrb[0].mxu0
    %v2562 = vadd.f32 %v2483, %v2561
    %v2563 = vpop.f32.mrb[0].mxu0
    %2564 = vmatprep.mubr.f32.mxu0 0.0
    %2565 = vmatmul.mubr.f32.gmra.mrb[0].mxu0 %v2177
    %v2566 = vpop.f32.mrb[0].mxu0
    %v2567 = vadd.f32 %v2483, %v2566
    %v2568 = vpop.f32.mrb[0].mxu0
    %2569 = vmatprep.mubr.f32.mxu0 0.0
    %2570 = vmatmul.mubr.f32.gmra.mrb[0].mxu0 %v2277
    %v2571 = vpop.f32.mrb[0].mxu0
    %v2572 = vadd.f32 %v2483, %v2571
    %v2573 = vpop.f32.mrb[0].mxu0
    %2574 = vmatprep.mubr.f32.mxu0 0.0
    %2575 = vmatmul.mubr.f32.gmra.mrb[0].mxu0 %v2377
    %v2576 = vpop.f32.mrb[0].mxu0
    %v2577 = vadd.f32 %v2483, %v2576
    %v2578 = vpop.f32.mrb[0].mxu0
    %2579 = vmatprep.mubr.f32.mxu0 0.0
    %2580 = vmatmul.mubr.f32.gmra.mrb[0].mxu0 %v2488
    %v2581 = vpop.f32.mrb[0].mxu0
    %v2582 = vadd.f32 %v2483, %v2581
    %v2583 = vpop.f32.mrb[0].mxu0
    %2584 = vdwg.mxu0
    %s2585 = scalar_lea.vmem %s1, 24
    %v2586 = vld [vmem:[%s2585] sm:$0xff]
    %s2587 = scalar_lea.vmem %s2, 24
    %v2588 = vld [vmem:[%s2587] sm:$0xff]
    %s2589 = scalar_lea.vmem %s8, 48
    %v2590 = vld [vmem:[%s2589] sm:$0xff]
    %v2591 = vld [vmem:[%s2589 + $0x8] sm:$0xff]
    %v2593 = vsel %vm387, %v2586, 0
    %2595 = vmatprep.subr.mxu0 0.0
    %2596 = vmatpush1.msra.mxu0 %v2590
    %2597 = vmatprep.subr.mxu0 0.0
    %2598 = vmatpush1.msra.mxu0 %v2591
    %2599 = vmatprep.subr.mxu0 0.0
    %2600 = vmatpush1.msra.mxu0 0.0
    %2601 = vmatprep.subr.mxu0 0.0
    %2602 = vmatpush1.msra.mxu0 0.0
    %2603 = vmatprep.subr.mxu0 0.0
    %2604 = vmatpush1.msra.mxu0 0.0
    %2605 = vmatprep.subr.mxu0 0.0
    %2606 = vmatpush1.msra.mxu0 0.0
    %2607 = vmatprep.subr.mxu0 0.0
    %2608 = vmatpush1.msra.mxu0 0.0
    %2609 = vmatprep.subr.mxu0 0.0
    %2610 = vmatpush1.msra.mxu0 0.0
    %2611 = vmatprep.subr.mxu0 0.0
    %2612 = vmatpush1.msra.mxu0 0.0
    %2613 = vmatprep.subr.mxu0 0.0
    %2614 = vmatpush1.msra.mxu0 0.0
    %2615 = vmatprep.subr.mxu0 0.0
    %2616 = vmatpush1.msra.mxu0 0.0
    %2617 = vmatprep.subr.mxu0 0.0
    %2618 = vmatpush1.msra.mxu0 0.0
    %2619 = vmatprep.subr.mxu0 0.0
    %2620 = vmatpush1.msra.mxu0 0.0
    %2621 = vmatprep.subr.mxu0 0.0
    %2622 = vmatpush1.msra.mxu0 0.0
    %2623 = vmatprep.subr.mxu0 0.0
    %2624 = vmatpush1.msra.mxu0 0.0
    %2625 = vmatprep.subr.mxu0 0.0
    %2626 = vmatpush1.msra.mxu0 0.0
    %2627 = vmatprep.subr.mxu0 0.0
    %2628 = vmatpush1.msra.mxu0 0.0
    %2629 = vmatprep.subr.mxu0 0.0
    %2630 = vmatpush1.msra.mxu0 0.0
    %2631 = vmatprep.subr.mxu0 0.0
    %2632 = vmatpush1.msra.mxu0 0.0
    %2633 = vmatprep.subr.mxu0 0.0
    %2634 = vmatpush1.msra.mxu0 0.0
    %2635 = vmatprep.subr.mxu0 0.0
    %2636 = vmatpush1.msra.mxu0 0.0
    %2637 = vmatprep.subr.mxu0 0.0
    %2638 = vmatpush1.msra.mxu0 0.0
    %2639 = vmatprep.subr.mxu0 0.0
    %2640 = vmatpush1.msra.mxu0 0.0
    %2641 = vmatprep.subr.mxu0 0.0
    %2642 = vmatpush1.msra.mxu0 0.0
    %2643 = vmatprep.subr.mxu0 0.0
    %2644 = vmatpush1.msra.mxu0 0.0
    %2645 = vmatprep.subr.mxu0 0.0
    %2646 = vmatpush1.msra.mxu0 0.0
    %2647 = vmatprep.subr.mxu0 0.0
    %2648 = vmatpush1.msra.mxu0 0.0
    %2649 = vmatprep.subr.mxu0 0.0
    %2650 = vmatpush1.msra.mxu0 0.0
    %2651 = vmatprep.subr.mxu0 0.0
    %2652 = vmatpush1.msra.mxu0 0.0
    %2653 = vmatprep.subr.mxu0 0.0
    %2654 = vmatpush1.msra.mxu0 0.0
    %2655 = vmatprep.subr.mxu0 0.0
    %2656 = vmatpush1.msra.mxu0 0.0
    %2657 = vmatprep.subr.mxu0 0.0
    %2658 = vmatpush1.msra.mxu0 0.0
    %2659 = vmatprep.mubr.f32.mxu0 0.0
    %2660 = vmatmul.mubr.f32.gmra.mrb[0].mxu0 %v2593
    %v2661 = vpop.f32.mrb[0].mxu0
    %v2662 = vadd.f32 0.0, %v2661
    %v2663 = vpop.f32.mrb[0].mxu0
    %2664 = vdwg.mxu0
    %v2665 = vadd.f32 %v2557, %v2662
    %v2666 = vxor.u32 %v2665, 2147483648
    %v2667 = vmul.f32 %v2666, 1.442695
    %v2668 = vpow.pop %v2667
    %v2669 = vadd.f32 %v2668, 1.0
    %v2670 = vrcp.pop %v2669
    %v2671 = vmul.f32 1.0, %v2670
    %v2672 = vtanh.pop %v2665
    %2674 = vrot.lane.b32.xlu0 %v2588, 16
    %v2675 = vpop.permute.xlu0 %2674
    %v2677 = vmul.f32 %v2671, %v2675
    %2679 = vrot.lane.b32.xlu0 %v2672, 80
    %v2680 = vpop.permute.xlu0 %2679
    %v2682 = vmul.f32 %v2671, %v2680
    %2684 = vrot.lane.b32.xlu0 %v2682, 16
    %v2685 = vpop.permute.xlu0 %2684
    %v2687 = vadd.f32 %v2677, %v2685
    %v2688 = vtanh.pop %v2687
    %2690 = vrot.lane.b32.xlu0 %v2688, 16
    %v2691 = vpop.permute.xlu0 %2690
    %v2693 = vmul.f32 %v2671, %v2691
    %2695 = vrot.lane.b32.xlu0 %v2693, 96
    %v2696 = vpop.permute.xlu0 %2695
    %v2697 = vsel %vm387, %v2696, 0
    %2699 = vmatprep.subr.mxu0 0.0
    %2700 = vmatpush1.msra.mxu0 %v2590
    %2701 = vmatprep.subr.mxu0 0.0
    %2702 = vmatpush1.msra.mxu0 %v2591
    %2703 = vmatprep.subr.mxu0 0.0
    %2704 = vmatpush1.msra.mxu0 0.0
    %2705 = vmatprep.subr.mxu0 0.0
    %2706 = vmatpush1.msra.mxu0 0.0
    %2707 = vmatprep.subr.mxu0 0.0
    %2708 = vmatpush1.msra.mxu0 0.0
    %2709 = vmatprep.subr.mxu0 0.0
    %2710 = vmatpush1.msra.mxu0 0.0
    %2711 = vmatprep.subr.mxu0 0.0
    %2712 = vmatpush1.msra.mxu0 0.0
    %2713 = vmatprep.subr.mxu0 0.0
    %2714 = vmatpush1.msra.mxu0 0.0
    %2715 = vmatprep.subr.mxu0 0.0
    %2716 = vmatpush1.msra.mxu0 0.0
    %2717 = vmatprep.subr.mxu0 0.0
    %2718 = vmatpush1.msra.mxu0 0.0
    %2719 = vmatprep.subr.mxu0 0.0
    %2720 = vmatpush1.msra.mxu0 0.0
    %2721 = vmatprep.subr.mxu0 0.0
    %2722 = vmatpush1.msra.mxu0 0.0
    %2723 = vmatprep.subr.mxu0 0.0
    %2724 = vmatpush1.msra.mxu0 0.0
    %2725 = vmatprep.subr.mxu0 0.0
    %2726 = vmatpush1.msra.mxu0 0.0
    %2727 = vmatprep.subr.mxu0 0.0
    %2728 = vmatpush1.msra.mxu0 0.0
    %2729 = vmatprep.subr.mxu0 0.0
    %2730 = vmatpush1.msra.mxu0 0.0
    %2731 = vmatprep.subr.mxu0 0.0
    %2732 = vmatpush1.msra.mxu0 0.0
    %2733 = vmatprep.subr.mxu0 0.0
    %2734 = vmatpush1.msra.mxu0 0.0
    %2735 = vmatprep.subr.mxu0 0.0
    %2736 = vmatpush1.msra.mxu0 0.0
    %2737 = vmatprep.subr.mxu0 0.0
    %2738 = vmatpush1.msra.mxu0 0.0
    %2739 = vmatprep.subr.mxu0 0.0
    %2740 = vmatpush1.msra.mxu0 0.0
    %2741 = vmatprep.subr.mxu0 0.0
    %2742 = vmatpush1.msra.mxu0 0.0
    %2743 = vmatprep.subr.mxu0 0.0
    %2744 = vmatpush1.msra.mxu0 0.0
    %2745 = vmatprep.subr.mxu0 0.0
    %2746 = vmatpush1.msra.mxu0 0.0
    %2747 = vmatprep.subr.mxu0 0.0
    %2748 = vmatpush1.msra.mxu0 0.0
    %2749 = vmatprep.subr.mxu0 0.0
    %2750 = vmatpush1.msra.mxu0 0.0
    %2751 = vmatprep.subr.mxu0 0.0
    %2752 = vmatpush1.msra.mxu0 0.0
    %2753 = vmatprep.subr.mxu0 0.0
    %2754 = vmatpush1.msra.mxu0 0.0
    %2755 = vmatprep.subr.mxu0 0.0
    %2756 = vmatpush1.msra.mxu0 0.0
    %2757 = vmatprep.subr.mxu0 0.0
    %2758 = vmatpush1.msra.mxu0 0.0
    %2759 = vmatprep.subr.mxu0 0.0
    %2760 = vmatpush1.msra.mxu0 0.0
    %2761 = vmatprep.subr.mxu0 0.0
    %2762 = vmatpush1.msra.mxu0 0.0
    %2763 = vmatprep.mubr.f32.mxu0 0.0
    %2764 = vmatmul.mubr.f32.gmra.mrb[0].mxu0 %v2697
    %v2765 = vpop.f32.mrb[0].mxu0
    %v2766 = vadd.f32 0.0, %v2765
    %v2767 = vpop.f32.mrb[0].mxu0
    %2768 = vdwg.mxu0
    %v2769 = vadd.f32 %v2562, %v2766
    %v2770 = vxor.u32 %v2769, 2147483648
    %v2771 = vmul.f32 %v2770, 1.442695
    %v2772 = vpow.pop %v2771
    %v2773 = vadd.f32 %v2772, 1.0
    %v2774 = vrcp.pop %v2773
    %v2775 = vmul.f32 1.0, %v2774
    %v2776 = vtanh.pop %v2769
    %v2777 = vmul.f32 %v2775, %v2687
    %2779 = vrot.lane.b32.xlu0 %v2776, 80
    %v2780 = vpop.permute.xlu0 %2779
    %v2782 = vmul.f32 %v2775, %v2780
    %2784 = vrot.lane.b32.xlu0 %v2782, 16
    %v2785 = vpop.permute.xlu0 %2784
    %v2787 = vadd.f32 %v2777, %v2785
    %v2788 = vtanh.pop %v2787
    %2790 = vrot.lane.b32.xlu0 %v2788, 16
    %v2791 = vpop.permute.xlu0 %2790
    %v2793 = vmul.f32 %v2775, %v2791
    %2795 = vrot.lane.b32.xlu0 %v2793, 96
    %v2796 = vpop.permute.xlu0 %2795
    %v2797 = vsel %vm387, %v2796, 0
    %2799 = vmatprep.subr.mxu0 0.0
    %2800 = vmatpush1.msra.mxu0 %v2590
    %2801 = vmatprep.subr.mxu0 0.0
    %2802 = vmatpush1.msra.mxu0 %v2591
    %2803 = vmatprep.subr.mxu0 0.0
    %2804 = vmatpush1.msra.mxu0 0.0
    %2805 = vmatprep.subr.mxu0 0.0
    %2806 = vmatpush1.msra.mxu0 0.0
    %2807 = vmatprep.subr.mxu0 0.0
    %2808 = vmatpush1.msra.mxu0 0.0
    %2809 = vmatprep.subr.mxu0 0.0
    %2810 = vmatpush1.msra.mxu0 0.0
    %2811 = vmatprep.subr.mxu0 0.0
    %2812 = vmatpush1.msra.mxu0 0.0
    %2813 = vmatprep.subr.mxu0 0.0
    %2814 = vmatpush1.msra.mxu0 0.0
    %2815 = vmatprep.subr.mxu0 0.0
    %2816 = vmatpush1.msra.mxu0 0.0
    %2817 = vmatprep.subr.mxu0 0.0
    %2818 = vmatpush1.msra.mxu0 0.0
    %2819 = vmatprep.subr.mxu0 0.0
    %2820 = vmatpush1.msra.mxu0 0.0
    %2821 = vmatprep.subr.mxu0 0.0
    %2822 = vmatpush1.msra.mxu0 0.0
    %2823 = vmatprep.subr.mxu0 0.0
    %2824 = vmatpush1.msra.mxu0 0.0
    %2825 = vmatprep.subr.mxu0 0.0
    %2826 = vmatpush1.msra.mxu0 0.0
    %2827 = vmatprep.subr.mxu0 0.0
    %2828 = vmatpush1.msra.mxu0 0.0
    %2829 = vmatprep.subr.mxu0 0.0
    %2830 = vmatpush1.msra.mxu0 0.0
    %2831 = vmatprep.subr.mxu0 0.0
    %2832 = vmatpush1.msra.mxu0 0.0
    %2833 = vmatprep.subr.mxu0 0.0
    %2834 = vmatpush1.msra.mxu0 0.0
    %2835 = vmatprep.subr.mxu0 0.0
    %2836 = vmatpush1.msra.mxu0 0.0
    %2837 = vmatprep.subr.mxu0 0.0
    %2838 = vmatpush1.msra.mxu0 0.0
    %2839 = vmatprep.subr.mxu0 0.0
    %2840 = vmatpush1.msra.mxu0 0.0
    %2841 = vmatprep.subr.mxu0 0.0
    %2842 = vmatpush1.msra.mxu0 0.0
    %2843 = vmatprep.subr.mxu0 0.0
    %2844 = vmatpush1.msra.mxu0 0.0
    %2845 = vmatprep.subr.mxu0 0.0
    %2846 = vmatpush1.msra.mxu0 0.0
    %2847 = vmatprep.subr.mxu0 0.0
    %2848 = vmatpush1.msra.mxu0 0.0
    %2849 = vmatprep.subr.mxu0 0.0
    %2850 = vmatpush1.msra.mxu0 0.0
    %2851 = vmatprep.subr.mxu0 0.0
    %2852 = vmatpush1.msra.mxu0 0.0
    %2853 = vmatprep.subr.mxu0 0.0
    %2854 = vmatpush1.msra.mxu0 0.0
    %2855 = vmatprep.subr.mxu0 0.0
    %2856 = vmatpush1.msra.mxu0 0.0
    %2857 = vmatprep.subr.mxu0 0.0
    %2858 = vmatpush1.msra.mxu0 0.0
    %2859 = vmatprep.subr.mxu0 0.0
    %2860 = vmatpush1.msra.mxu0 0.0
    %2861 = vmatprep.subr.mxu0 0.0
    %2862 = vmatpush1.msra.mxu0 0.0
    %2863 = vmatprep.mubr.f32.mxu0 0.0
    %2864 = vmatmul.mubr.f32.gmra.mrb[0].mxu0 %v2797
    %v2865 = vpop.f32.mrb[0].mxu0
    %v2866 = vadd.f32 0.0, %v2865
    %v2867 = vpop.f32.mrb[0].mxu0
    %2868 = vdwg.mxu0
    %v2869 = vadd.f32 %v2567, %v2866
    %v2870 = vxor.u32 %v2869, 2147483648
    %v2871 = vmul.f32 %v2870, 1.442695
    %v2872 = vpow.pop %v2871
    %v2873 = vadd.f32 %v2872, 1.0
    %v2874 = vrcp.pop %v2873
    %v2875 = vmul.f32 1.0, %v2874
    %v2876 = vtanh.pop %v2869
    %v2877 = vmul.f32 %v2875, %v2787
    %2879 = vrot.lane.b32.xlu0 %v2876, 80
    %v2880 = vpop.permute.xlu0 %2879
    %v2882 = vmul.f32 %v2875, %v2880
    %2884 = vrot.lane.b32.xlu0 %v2882, 16
    %v2885 = vpop.permute.xlu0 %2884
    %v2887 = vadd.f32 %v2877, %v2885
    %v2888 = vtanh.pop %v2887
    %2890 = vrot.lane.b32.xlu0 %v2888, 16
    %v2891 = vpop.permute.xlu0 %2890
    %v2893 = vmul.f32 %v2875, %v2891
    %2895 = vrot.lane.b32.xlu0 %v2893, 96
    %v2896 = vpop.permute.xlu0 %2895
    %v2897 = vsel %vm387, %v2896, 0
    %2899 = vmatprep.subr.mxu0 0.0
    %2900 = vmatpush1.msra.mxu0 %v2590
    %2901 = vmatprep.subr.mxu0 0.0
    %2902 = vmatpush1.msra.mxu0 %v2591
    %2903 = vmatprep.subr.mxu0 0.0
    %2904 = vmatpush1.msra.mxu0 0.0
    %2905 = vmatprep.subr.mxu0 0.0
    %2906 = vmatpush1.msra.mxu0 0.0
    %2907 = vmatprep.subr.mxu0 0.0
    %2908 = vmatpush1.msra.mxu0 0.0
    %2909 = vmatprep.subr.mxu0 0.0
    %2910 = vmatpush1.msra.mxu0 0.0
    %2911 = vmatprep.subr.mxu0 0.0
    %2912 = vmatpush1.msra.mxu0 0.0
    %2913 = vmatprep.subr.mxu0 0.0
    %2914 = vmatpush1.msra.mxu0 0.0
    %2915 = vmatprep.subr.mxu0 0.0
    %2916 = vmatpush1.msra.mxu0 0.0
    %2917 = vmatprep.subr.mxu0 0.0
    %2918 = vmatpush1.msra.mxu0 0.0
    %2919 = vmatprep.subr.mxu0 0.0
    %2920 = vmatpush1.msra.mxu0 0.0
    %2921 = vmatprep.subr.mxu0 0.0
    %2922 = vmatpush1.msra.mxu0 0.0
    %2923 = vmatprep.subr.mxu0 0.0
    %2924 = vmatpush1.msra.mxu0 0.0
    %2925 = vmatprep.subr.mxu0 0.0
    %2926 = vmatpush1.msra.mxu0 0.0
    %2927 = vmatprep.subr.mxu0 0.0
    %2928 = vmatpush1.msra.mxu0 0.0
    %2929 = vmatprep.subr.mxu0 0.0
    %2930 = vmatpush1.msra.mxu0 0.0
    %2931 = vmatprep.subr.mxu0 0.0
    %2932 = vmatpush1.msra.mxu0 0.0
    %2933 = vmatprep.subr.mxu0 0.0
    %2934 = vmatpush1.msra.mxu0 0.0
    %2935 = vmatprep.subr.mxu0 0.0
    %2936 = vmatpush1.msra.mxu0 0.0
    %2937 = vmatprep.subr.mxu0 0.0
    %2938 = vmatpush1.msra.mxu0 0.0
    %2939 = vmatprep.subr.mxu0 0.0
    %2940 = vmatpush1.msra.mxu0 0.0
    %2941 = vmatprep.subr.mxu0 0.0
    %2942 = vmatpush1.msra.mxu0 0.0
    %2943 = vmatprep.subr.mxu0 0.0
    %2944 = vmatpush1.msra.mxu0 0.0
    %2945 = vmatprep.subr.mxu0 0.0
    %2946 = vmatpush1.msra.mxu0 0.0
    %2947 = vmatprep.subr.mxu0 0.0
    %2948 = vmatpush1.msra.mxu0 0.0
    %2949 = vmatprep.subr.mxu0 0.0
    %2950 = vmatpush1.msra.mxu0 0.0
    %2951 = vmatprep.subr.mxu0 0.0
    %2952 = vmatpush1.msra.mxu0 0.0
    %2953 = vmatprep.subr.mxu0 0.0
    %2954 = vmatpush1.msra.mxu0 0.0
    %2955 = vmatprep.subr.mxu0 0.0
    %2956 = vmatpush1.msra.mxu0 0.0
    %2957 = vmatprep.subr.mxu0 0.0
    %2958 = vmatpush1.msra.mxu0 0.0
    %2959 = vmatprep.subr.mxu0 0.0
    %2960 = vmatpush1.msra.mxu0 0.0
    %2961 = vmatprep.subr.mxu0 0.0
    %2962 = vmatpush1.msra.mxu0 0.0
    %2963 = vmatprep.mubr.f32.mxu0 0.0
    %2964 = vmatmul.mubr.f32.gmra.mrb[0].mxu0 %v2897
    %v2965 = vpop.f32.mrb[0].mxu0
    %v2966 = vadd.f32 0.0, %v2965
    %v2967 = vpop.f32.mrb[0].mxu0
    %2968 = vdwg.mxu0
    %v2969 = vadd.f32 %v2572, %v2966
    %v2970 = vxor.u32 %v2969, 2147483648
    %v2971 = vmul.f32 %v2970, 1.442695
    %v2972 = vpow.pop %v2971
    %v2973 = vadd.f32 %v2972, 1.0
    %v2974 = vrcp.pop %v2973
    %v2975 = vmul.f32 1.0, %v2974
    %v2976 = vtanh.pop %v2969
    %v2977 = vmul.f32 %v2975, %v2887
    %2979 = vrot.lane.b32.xlu0 %v2976, 80
    %v2980 = vpop.permute.xlu0 %2979
    %v2982 = vmul.f32 %v2975, %v2980
    %2984 = vrot.lane.b32.xlu0 %v2982, 16
    %v2985 = vpop.permute.xlu0 %2984
    %v2987 = vadd.f32 %v2977, %v2985
    %v2988 = vtanh.pop %v2987
    %2990 = vrot.lane.b32.xlu0 %v2988, 16
    %v2991 = vpop.permute.xlu0 %2990
    %v2993 = vmul.f32 %v2975, %v2991
    %2995 = vrot.lane.b32.xlu0 %v2993, 96
    %v2996 = vpop.permute.xlu0 %2995
    %v2997 = vsel %vm387, %v2996, 0
    %2999 = vmatprep.subr.mxu0 0.0
    %3000 = vmatpush1.msra.mxu0 %v2590
    %3001 = vmatprep.subr.mxu0 0.0
    %3002 = vmatpush1.msra.mxu0 %v2591
    %3003 = vmatprep.subr.mxu0 0.0
    %3004 = vmatpush1.msra.mxu0 0.0
    %3005 = vmatprep.subr.mxu0 0.0
    %3006 = vmatpush1.msra.mxu0 0.0
    %3007 = vmatprep.subr.mxu0 0.0
    %3008 = vmatpush1.msra.mxu0 0.0
    %3009 = vmatprep.subr.mxu0 0.0
    %3010 = vmatpush1.msra.mxu0 0.0
    %3011 = vmatprep.subr.mxu0 0.0
    %3012 = vmatpush1.msra.mxu0 0.0
    %3013 = vmatprep.subr.mxu0 0.0
    %3014 = vmatpush1.msra.mxu0 0.0
    %3015 = vmatprep.subr.mxu0 0.0
    %3016 = vmatpush1.msra.mxu0 0.0
    %3017 = vmatprep.subr.mxu0 0.0
    %3018 = vmatpush1.msra.mxu0 0.0
    %3019 = vmatprep.subr.mxu0 0.0
    %3020 = vmatpush1.msra.mxu0 0.0
    %3021 = vmatprep.subr.mxu0 0.0
    %3022 = vmatpush1.msra.mxu0 0.0
    %3023 = vmatprep.subr.mxu0 0.0
    %3024 = vmatpush1.msra.mxu0 0.0
    %3025 = vmatprep.subr.mxu0 0.0
    %3026 = vmatpush1.msra.mxu0 0.0
    %3027 = vmatprep.subr.mxu0 0.0
    %3028 = vmatpush1.msra.mxu0 0.0
    %3029 = vmatprep.subr.mxu0 0.0
    %3030 = vmatpush1.msra.mxu0 0.0
    %3031 = vmatprep.subr.mxu0 0.0
    %3032 = vmatpush1.msra.mxu0 0.0
    %3033 = vmatprep.subr.mxu0 0.0
    %3034 = vmatpush1.msra.mxu0 0.0
    %3035 = vmatprep.subr.mxu0 0.0
    %3036 = vmatpush1.msra.mxu0 0.0
    %3037 = vmatprep.subr.mxu0 0.0
    %3038 = vmatpush1.msra.mxu0 0.0
    %3039 = vmatprep.subr.mxu0 0.0
    %3040 = vmatpush1.msra.mxu0 0.0
    %3041 = vmatprep.subr.mxu0 0.0
    %3042 = vmatpush1.msra.mxu0 0.0
    %3043 = vmatprep.subr.mxu0 0.0
    %3044 = vmatpush1.msra.mxu0 0.0
    %3045 = vmatprep.subr.mxu0 0.0
    %3046 = vmatpush1.msra.mxu0 0.0
    %3047 = vmatprep.subr.mxu0 0.0
    %3048 = vmatpush1.msra.mxu0 0.0
    %3049 = vmatprep.subr.mxu0 0.0
    %3050 = vmatpush1.msra.mxu0 0.0
    %3051 = vmatprep.subr.mxu0 0.0
    %3052 = vmatpush1.msra.mxu0 0.0
    %3053 = vmatprep.subr.mxu0 0.0
    %3054 = vmatpush1.msra.mxu0 0.0
    %3055 = vmatprep.subr.mxu0 0.0
    %3056 = vmatpush1.msra.mxu0 0.0
    %3057 = vmatprep.subr.mxu0 0.0
    %3058 = vmatpush1.msra.mxu0 0.0
    %3059 = vmatprep.subr.mxu0 0.0
    %3060 = vmatpush1.msra.mxu0 0.0
    %3061 = vmatprep.subr.mxu0 0.0
    %3062 = vmatpush1.msra.mxu0 0.0
    %3063 = vmatprep.mubr.f32.mxu0 0.0
    %3064 = vmatmul.mubr.f32.gmra.mrb[0].mxu0 %v2997
    %v3065 = vpop.f32.mrb[0].mxu0
    %v3066 = vadd.f32 0.0, %v3065
    %v3067 = vpop.f32.mrb[0].mxu0
    %3068 = vdwg.mxu0
    %v3069 = vadd.f32 %v2577, %v3066
    %v3070 = vxor.u32 %v3069, 2147483648
    %v3071 = vmul.f32 %v3070, 1.442695
    %v3072 = vpow.pop %v3071
    %v3073 = vadd.f32 %v3072, 1.0
    %v3074 = vrcp.pop %v3073
    %v3075 = vmul.f32 1.0, %v3074
    %v3076 = vtanh.pop %v3069
    %v3077 = vmul.f32 %v3075, %v2987
    %3079 = vrot.lane.b32.xlu0 %v3076, 80
    %v3080 = vpop.permute.xlu0 %3079
    %v3082 = vmul.f32 %v3075, %v3080
    %3084 = vrot.lane.b32.xlu0 %v3082, 16
    %v3085 = vpop.permute.xlu0 %3084
    %v3087 = vadd.f32 %v3077, %v3085
    %v3088 = vtanh.pop %v3087
    %3090 = vrot.lane.b32.xlu0 %v3088, 16
    %v3091 = vpop.permute.xlu0 %3090
    %v3093 = vmul.f32 %v3075, %v3091
    %3095 = vrot.lane.b32.xlu0 %v3093, 96
    %v3096 = vpop.permute.xlu0 %3095
    %v3097 = vsel %vm387, %v3096, 0
    %3099 = vmatprep.subr.mxu0 0.0
    %3100 = vmatpush1.msra.mxu0 %v2590
    %3101 = vmatprep.subr.mxu0 0.0
    %3102 = vmatpush1.msra.mxu0 %v2591
    %3103 = vmatprep.subr.mxu0 0.0
    %3104 = vmatpush1.msra.mxu0 0.0
    %3105 = vmatprep.subr.mxu0 0.0
    %3106 = vmatpush1.msra.mxu0 0.0
    %3107 = vmatprep.subr.mxu0 0.0
    %3108 = vmatpush1.msra.mxu0 0.0
    %3109 = vmatprep.subr.mxu0 0.0
    %3110 = vmatpush1.msra.mxu0 0.0
    %3111 = vmatprep.subr.mxu0 0.0
    %3112 = vmatpush1.msra.mxu0 0.0
    %3113 = vmatprep.subr.mxu0 0.0
    %3114 = vmatpush1.msra.mxu0 0.0
    %3115 = vmatprep.subr.mxu0 0.0
    %3116 = vmatpush1.msra.mxu0 0.0
    %3117 = vmatprep.subr.mxu0 0.0
    %3118 = vmatpush1.msra.mxu0 0.0
    %3119 = vmatprep.subr.mxu0 0.0
    %3120 = vmatpush1.msra.mxu0 0.0
    %3121 = vmatprep.subr.mxu0 0.0
    %3122 = vmatpush1.msra.mxu0 0.0
    %3123 = vmatprep.subr.mxu0 0.0
    %3124 = vmatpush1.msra.mxu0 0.0
    %3125 = vmatprep.subr.mxu0 0.0
    %3126 = vmatpush1.msra.mxu0 0.0
    %3127 = vmatprep.subr.mxu0 0.0
    %3128 = vmatpush1.msra.mxu0 0.0
    %3129 = vmatprep.subr.mxu0 0.0
    %3130 = vmatpush1.msra.mxu0 0.0
    %3131 = vmatprep.subr.mxu0 0.0
    %3132 = vmatpush1.msra.mxu0 0.0
    %3133 = vmatprep.subr.mxu0 0.0
    %3134 = vmatpush1.msra.mxu0 0.0
    %3135 = vmatprep.subr.mxu0 0.0
    %3136 = vmatpush1.msra.mxu0 0.0
    %3137 = vmatprep.subr.mxu0 0.0
    %3138 = vmatpush1.msra.mxu0 0.0
    %3139 = vmatprep.subr.mxu0 0.0
    %3140 = vmatpush1.msra.mxu0 0.0
    %3141 = vmatprep.subr.mxu0 0.0
    %3142 = vmatpush1.msra.mxu0 0.0
    %3143 = vmatprep.subr.mxu0 0.0
    %3144 = vmatpush1.msra.mxu0 0.0
    %3145 = vmatprep.subr.mxu0 0.0
    %3146 = vmatpush1.msra.mxu0 0.0
    %3147 = vmatprep.subr.mxu0 0.0
    %3148 = vmatpush1.msra.mxu0 0.0
    %3149 = vmatprep.subr.mxu0 0.0
    %3150 = vmatpush1.msra.mxu0 0.0
    %3151 = vmatprep.subr.mxu0 0.0
    %3152 = vmatpush1.msra.mxu0 0.0
    %3153 = vmatprep.subr.mxu0 0.0
    %3154 = vmatpush1.msra.mxu0 0.0
    %3155 = vmatprep.subr.mxu0 0.0
    %3156 = vmatpush1.msra.mxu0 0.0
    %3157 = vmatprep.subr.mxu0 0.0
    %3158 = vmatpush1.msra.mxu0 0.0
    %3159 = vmatprep.subr.mxu0 0.0
    %3160 = vmatpush1.msra.mxu0 0.0
    %3161 = vmatprep.subr.mxu0 0.0
    %3162 = vmatpush1.msra.mxu0 0.0
    %3163 = vmatprep.mubr.f32.mxu0 0.0
    %3164 = vmatmul.mubr.f32.gmra.mrb[0].mxu0 %v3097
    %v3165 = vpop.f32.mrb[0].mxu0
    %v3166 = vadd.f32 0.0, %v3165
    %v3167 = vpop.f32.mrb[0].mxu0
    %3168 = vdwg.mxu0
    %v3169 = vadd.f32 %v2582, %v3166
    %v3170 = vxor.u32 %v3169, 2147483648
    %v3171 = vmul.f32 %v3170, 1.442695
    %v3172 = vpow.pop %v3171
    %v3173 = vadd.f32 %v3172, 1.0
    %v3174 = vrcp.pop %v3173
    %v3175 = vmul.f32 1.0, %v3174
    %v3176 = vtanh.pop %v3169
    %v3177 = vmul.f32 %v3175, %v3087
    %3179 = vrot.lane.b32.xlu0 %v3176, 80
    %v3180 = vpop.permute.xlu0 %3179
    %v3182 = vmul.f32 %v3175, %v3180
    %3184 = vrot.lane.b32.xlu0 %v3182, 16
    %v3185 = vpop.permute.xlu0 %3184
    %v3187 = vadd.f32 %v3177, %v3185
    %v3188 = vtanh.pop %v3187
    %3190 = vrot.lane.b32.xlu0 %v3188, 16
    %v3191 = vpop.permute.xlu0 %3190
    %v3193 = vmul.f32 %v3175, %v3191
    %s3194 = scalar_lea.vmem %s6, 48
    %v3195 = vld [vmem:[%s3194] sm:$0xff]
    %v3196 = vld [vmem:[%s3194 + $0x8] sm:$0xff]
    %s3197 = scalar_lea.vmem %s7, 3
    %v3198 = vld [vmem:[%s3197] sm:$0x1]
    %v3200 = vlaneseq
    %v3201 = vshrl.u32 %v3200, 7
    %v3202 = vsub.s32 0, %v3201
    %v3203 = vrot.slane %v3198, %v3202
    %3206 = vrot.lane.b32.xlu0 %v3193, 96
    %v3207 = vpop.permute.xlu0 %3206
    %v3208 = vsel %vm387, %v3207, 0
    %3210 = vmatprep.subr.mxu0 0.0
    %3211 = vmatpush1.msra.mxu0 %v3195
    %3212 = vmatprep.subr.mxu0 0.0
    %3213 = vmatpush1.msra.mxu0 %v3196
    %3214 = vmatprep.subr.mxu0 0.0
    %3215 = vmatpush1.msra.mxu0 0.0
    %3216 = vmatprep.subr.mxu0 0.0
    %3217 = vmatpush1.msra.mxu0 0.0
    %3218 = vmatprep.subr.mxu0 0.0
    %3219 = vmatpush1.msra.mxu0 0.0
    %3220 = vmatprep.subr.mxu0 0.0
    %3221 = vmatpush1.msra.mxu0 0.0
    %3222 = vmatprep.subr.mxu0 0.0
    %3223 = vmatpush1.msra.mxu0 0.0
    %3224 = vmatprep.subr.mxu0 0.0
    %3225 = vmatpush1.msra.mxu0 0.0
    %3226 = vmatprep.subr.mxu0 0.0
    %3227 = vmatpush1.msra.mxu0 0.0
    %3228 = vmatprep.subr.mxu0 0.0
    %3229 = vmatpush1.msra.mxu0 0.0
    %3230 = vmatprep.subr.mxu0 0.0
    %3231 = vmatpush1.msra.mxu0 0.0
    %3232 = vmatprep.subr.mxu0 0.0
    %3233 = vmatpush1.msra.mxu0 0.0
    %3234 = vmatprep.subr.mxu0 0.0
    %3235 = vmatpush1.msra.mxu0 0.0
    %3236 = vmatprep.subr.mxu0 0.0
    %3237 = vmatpush1.msra.mxu0 0.0
    %3238 = vmatprep.subr.mxu0 0.0
    %3239 = vmatpush1.msra.mxu0 0.0
    %3240 = vmatprep.subr.mxu0 0.0
    %3241 = vmatpush1.msra.mxu0 0.0
    %3242 = vmatprep.subr.mxu0 0.0
    %3243 = vmatpush1.msra.mxu0 0.0
    %3244 = vmatprep.subr.mxu0 0.0
    %3245 = vmatpush1.msra.mxu0 0.0
    %3246 = vmatprep.subr.mxu0 0.0
    %3247 = vmatpush1.msra.mxu0 0.0
    %3248 = vmatprep.subr.mxu0 0.0
    %3249 = vmatpush1.msra.mxu0 0.0
    %3250 = vmatprep.subr.mxu0 0.0
    %3251 = vmatpush1.msra.mxu0 0.0
    %3252 = vmatprep.subr.mxu0 0.0
    %3253 = vmatpush1.msra.mxu0 0.0
    %3254 = vmatprep.subr.mxu0 0.0
    %3255 = vmatpush1.msra.mxu0 0.0
    %3256 = vmatprep.subr.mxu0 0.0
    %3257 = vmatpush1.msra.mxu0 0.0
    %3258 = vmatprep.subr.mxu0 0.0
    %3259 = vmatpush1.msra.mxu0 0.0
    %3260 = vmatprep.subr.mxu0 0.0
    %3261 = vmatpush1.msra.mxu0 0.0
    %3262 = vmatprep.subr.mxu0 0.0
    %3263 = vmatpush1.msra.mxu0 0.0
    %3264 = vmatprep.subr.mxu0 0.0
    %3265 = vmatpush1.msra.mxu0 0.0
    %3266 = vmatprep.subr.mxu0 0.0
    %3267 = vmatpush1.msra.mxu0 0.0
    %3268 = vmatprep.subr.mxu0 0.0
    %3269 = vmatpush1.msra.mxu0 0.0
    %3270 = vmatprep.subr.mxu0 0.0
    %3271 = vmatpush1.msra.mxu0 0.0
    %3272 = vmatprep.subr.mxu0 0.0
    %3273 = vmatpush1.msra.mxu0 0.0
    %3274 = vmatprep.mubr.f32.mxu0 0.0
    %3275 = vmatmul.mubr.f32.gmra.mrb[0].mxu0 %v2697
    %v3276 = vpop.f32.mrb[0].mxu0
    %v3277 = vadd.f32 %v3203, %v3276
    %v3278 = vpop.f32.mrb[0].mxu0
    %3279 = vmatprep.mubr.f32.mxu0 0.0
    %3280 = vmatmul.mubr.f32.gmra.mrb[0].mxu0 %v2797
    %v3281 = vpop.f32.mrb[0].mxu0
    %v3282 = vadd.f32 %v3203, %v3281
    %v3283 = vpop.f32.mrb[0].mxu0
    %3284 = vmatprep.mubr.f32.mxu0 0.0
    %3285 = vmatmul.mubr.f32.gmra.mrb[0].mxu0 %v2897
    %v3286 = vpop.f32.mrb[0].mxu0
    %v3287 = vadd.f32 %v3203, %v3286
    %v3288 = vpop.f32.mrb[0].mxu0
    %3289 = vmatprep.mubr.f32.mxu0 0.0
    %3290 = vmatmul.mubr.f32.gmra.mrb[0].mxu0 %v2997
    %v3291 = vpop.f32.mrb[0].mxu0
    %v3292 = vadd.f32 %v3203, %v3291
    %v3293 = vpop.f32.mrb[0].mxu0
    %3294 = vmatprep.mubr.f32.mxu0 0.0
    %3295 = vmatmul.mubr.f32.gmra.mrb[0].mxu0 %v3097
    %v3296 = vpop.f32.mrb[0].mxu0
    %v3297 = vadd.f32 %v3203, %v3296
    %v3298 = vpop.f32.mrb[0].mxu0
    %3299 = vmatprep.mubr.f32.mxu0 0.0
    %3300 = vmatmul.mubr.f32.gmra.mrb[0].mxu0 %v3208
    %v3301 = vpop.f32.mrb[0].mxu0
    %v3302 = vadd.f32 %v3203, %v3301
    %v3303 = vpop.f32.mrb[0].mxu0
    %3304 = vdwg.mxu0
    %s3305 = scalar_lea.vmem %s1, 32
    %v3306 = vld [vmem:[%s3305] sm:$0xff]
    %s3307 = scalar_lea.vmem %s2, 32
    %v3308 = vld [vmem:[%s3307] sm:$0xff]
    %s3309 = scalar_lea.vmem %s8, 64
    %v3310 = vld [vmem:[%s3309] sm:$0xff]
    %v3311 = vld [vmem:[%s3309 + $0x8] sm:$0xff]
    %v3313 = vsel %vm387, %v3306, 0
    %3315 = vmatprep.subr.mxu0 0.0
    %3316 = vmatpush1.msra.mxu0 %v3310
    %3317 = vmatprep.subr.mxu0 0.0
    %3318 = vmatpush1.msra.mxu0 %v3311
    %3319 = vmatprep.subr.mxu0 0.0
    %3320 = vmatpush1.msra.mxu0 0.0
    %3321 = vmatprep.subr.mxu0 0.0
    %3322 = vmatpush1.msra.mxu0 0.0
    %3323 = vmatprep.subr.mxu0 0.0
    %3324 = vmatpush1.msra.mxu0 0.0
    %3325 = vmatprep.subr.mxu0 0.0
    %3326 = vmatpush1.msra.mxu0 0.0
    %3327 = vmatprep.subr.mxu0 0.0
    %3328 = vmatpush1.msra.mxu0 0.0
    %3329 = vmatprep.subr.mxu0 0.0
    %3330 = vmatpush1.msra.mxu0 0.0
    %3331 = vmatprep.subr.mxu0 0.0
    %3332 = vmatpush1.msra.mxu0 0.0
    %3333 = vmatprep.subr.mxu0 0.0
    %3334 = vmatpush1.msra.mxu0 0.0
    %3335 = vmatprep.subr.mxu0 0.0
    %3336 = vmatpush1.msra.mxu0 0.0
    %3337 = vmatprep.subr.mxu0 0.0
    %3338 = vmatpush1.msra.mxu0 0.0
    %3339 = vmatprep.subr.mxu0 0.0
    %3340 = vmatpush1.msra.mxu0 0.0
    %3341 = vmatprep.subr.mxu0 0.0
    %3342 = vmatpush1.msra.mxu0 0.0
    %3343 = vmatprep.subr.mxu0 0.0
    %3344 = vmatpush1.msra.mxu0 0.0
    %3345 = vmatprep.subr.mxu0 0.0
    %3346 = vmatpush1.msra.mxu0 0.0
    %3347 = vmatprep.subr.mxu0 0.0
    %3348 = vmatpush1.msra.mxu0 0.0
    %3349 = vmatprep.subr.mxu0 0.0
    %3350 = vmatpush1.msra.mxu0 0.0
    %3351 = vmatprep.subr.mxu0 0.0
    %3352 = vmatpush1.msra.mxu0 0.0
    %3353 = vmatprep.subr.mxu0 0.0
    %3354 = vmatpush1.msra.mxu0 0.0
    %3355 = vmatprep.subr.mxu0 0.0
    %3356 = vmatpush1.msra.mxu0 0.0
    %3357 = vmatprep.subr.mxu0 0.0
    %3358 = vmatpush1.msra.mxu0 0.0
    %3359 = vmatprep.subr.mxu0 0.0
    %3360 = vmatpush1.msra.mxu0 0.0
    %3361 = vmatprep.subr.mxu0 0.0
    %3362 = vmatpush1.msra.mxu0 0.0
    %3363 = vmatprep.subr.mxu0 0.0
    %3364 = vmatpush1.msra.mxu0 0.0
    %3365 = vmatprep.subr.mxu0 0.0
    %3366 = vmatpush1.msra.mxu0 0.0
    %3367 = vmatprep.subr.mxu0 0.0
    %3368 = vmatpush1.msra.mxu0 0.0
    %3369 = vmatprep.subr.mxu0 0.0
    %3370 = vmatpush1.msra.mxu0 0.0
    %3371 = vmatprep.subr.mxu0 0.0
    %3372 = vmatpush1.msra.mxu0 0.0
    %3373 = vmatprep.subr.mxu0 0.0
    %3374 = vmatpush1.msra.mxu0 0.0
    %3375 = vmatprep.subr.mxu0 0.0
    %3376 = vmatpush1.msra.mxu0 0.0
    %3377 = vmatprep.subr.mxu0 0.0
    %3378 = vmatpush1.msra.mxu0 0.0
    %3379 = vmatprep.mubr.f32.mxu0 0.0
    %3380 = vmatmul.mubr.f32.gmra.mrb[0].mxu0 %v3313
    %v3381 = vpop.f32.mrb[0].mxu0
    %v3382 = vadd.f32 0.0, %v3381
    %v3383 = vpop.f32.mrb[0].mxu0
    %3384 = vdwg.mxu0
    %v3385 = vadd.f32 %v3277, %v3382
    %v3386 = vxor.u32 %v3385, 2147483648
    %v3387 = vmul.f32 %v3386, 1.442695
    %v3388 = vpow.pop %v3387
    %v3389 = vadd.f32 %v3388, 1.0
    %v3390 = vrcp.pop %v3389
    %v3391 = vmul.f32 1.0, %v3390
    %v3392 = vtanh.pop %v3385
    %3394 = vrot.lane.b32.xlu0 %v3308, 16
    %v3395 = vpop.permute.xlu0 %3394
    %v3397 = vmul.f32 %v3391, %v3395
    %3399 = vrot.lane.b32.xlu0 %v3392, 80
    %v3400 = vpop.permute.xlu0 %3399
    %v3402 = vmul.f32 %v3391, %v3400
    %3404 = vrot.lane.b32.xlu0 %v3402, 16
    %v3405 = vpop.permute.xlu0 %3404
    %v3407 = vadd.f32 %v3397, %v3405
    %v3408 = vtanh.pop %v3407
    %3410 = vrot.lane.b32.xlu0 %v3408, 16
    %v3411 = vpop.permute.xlu0 %3410
    %v3413 = vmul.f32 %v3391, %v3411
    %3415 = vrot.lane.b32.xlu0 %v3413, 96
    %v3416 = vpop.permute.xlu0 %3415
    %v3417 = vsel %vm387, %v3416, 0
    %3419 = vmatprep.subr.mxu0 0.0
    %3420 = vmatpush1.msra.mxu0 %v3310
    %3421 = vmatprep.subr.mxu0 0.0
    %3422 = vmatpush1.msra.mxu0 %v3311
    %3423 = vmatprep.subr.mxu0 0.0
    %3424 = vmatpush1.msra.mxu0 0.0
    %3425 = vmatprep.subr.mxu0 0.0
    %3426 = vmatpush1.msra.mxu0 0.0
    %3427 = vmatprep.subr.mxu0 0.0
    %3428 = vmatpush1.msra.mxu0 0.0
    %3429 = vmatprep.subr.mxu0 0.0
    %3430 = vmatpush1.msra.mxu0 0.0
    %3431 = vmatprep.subr.mxu0 0.0
    %3432 = vmatpush1.msra.mxu0 0.0
    %3433 = vmatprep.subr.mxu0 0.0
    %3434 = vmatpush1.msra.mxu0 0.0
    %3435 = vmatprep.subr.mxu0 0.0
    %3436 = vmatpush1.msra.mxu0 0.0
    %3437 = vmatprep.subr.mxu0 0.0
    %3438 = vmatpush1.msra.mxu0 0.0
    %3439 = vmatprep.subr.mxu0 0.0
    %3440 = vmatpush1.msra.mxu0 0.0
    %3441 = vmatprep.subr.mxu0 0.0
    %3442 = vmatpush1.msra.mxu0 0.0
    %3443 = vmatprep.subr.mxu0 0.0
    %3444 = vmatpush1.msra.mxu0 0.0
    %3445 = vmatprep.subr.mxu0 0.0
    %3446 = vmatpush1.msra.mxu0 0.0
    %3447 = vmatprep.subr.mxu0 0.0
    %3448 = vmatpush1.msra.mxu0 0.0
    %3449 = vmatprep.subr.mxu0 0.0
    %3450 = vmatpush1.msra.mxu0 0.0
    %3451 = vmatprep.subr.mxu0 0.0
    %3452 = vmatpush1.msra.mxu0 0.0
    %3453 = vmatprep.subr.mxu0 0.0
    %3454 = vmatpush1.msra.mxu0 0.0
    %3455 = vmatprep.subr.mxu0 0.0
    %3456 = vmatpush1.msra.mxu0 0.0
    %3457 = vmatprep.subr.mxu0 0.0
    %3458 = vmatpush1.msra.mxu0 0.0
    %3459 = vmatprep.subr.mxu0 0.0
    %3460 = vmatpush1.msra.mxu0 0.0
    %3461 = vmatprep.subr.mxu0 0.0
    %3462 = vmatpush1.msra.mxu0 0.0
    %3463 = vmatprep.subr.mxu0 0.0
    %3464 = vmatpush1.msra.mxu0 0.0
    %3465 = vmatprep.subr.mxu0 0.0
    %3466 = vmatpush1.msra.mxu0 0.0
    %3467 = vmatprep.subr.mxu0 0.0
    %3468 = vmatpush1.msra.mxu0 0.0
    %3469 = vmatprep.subr.mxu0 0.0
    %3470 = vmatpush1.msra.mxu0 0.0
    %3471 = vmatprep.subr.mxu0 0.0
    %3472 = vmatpush1.msra.mxu0 0.0
    %3473 = vmatprep.subr.mxu0 0.0
    %3474 = vmatpush1.msra.mxu0 0.0
    %3475 = vmatprep.subr.mxu0 0.0
    %3476 = vmatpush1.msra.mxu0 0.0
    %3477 = vmatprep.subr.mxu0 0.0
    %3478 = vmatpush1.msra.mxu0 0.0
    %3479 = vmatprep.subr.mxu0 0.0
    %3480 = vmatpush1.msra.mxu0 0.0
    %3481 = vmatprep.subr.mxu0 0.0
    %3482 = vmatpush1.msra.mxu0 0.0
    %3483 = vmatprep.mubr.f32.mxu0 0.0
    %3484 = vmatmul.mubr.f32.gmra.mrb[0].mxu0 %v3417
    %v3485 = vpop.f32.mrb[0].mxu0
    %v3486 = vadd.f32 0.0, %v3485
    %v3487 = vpop.f32.mrb[0].mxu0
    %3488 = vdwg.mxu0
    %v3489 = vadd.f32 %v3282, %v3486
    %v3490 = vxor.u32 %v3489, 2147483648
    %v3491 = vmul.f32 %v3490, 1.442695
    %v3492 = vpow.pop %v3491
    %v3493 = vadd.f32 %v3492, 1.0
    %v3494 = vrcp.pop %v3493
    %v3495 = vmul.f32 1.0, %v3494
    %v3496 = vtanh.pop %v3489
    %v3497 = vmul.f32 %v3495, %v3407
    %3499 = vrot.lane.b32.xlu0 %v3496, 80
    %v3500 = vpop.permute.xlu0 %3499
    %v3502 = vmul.f32 %v3495, %v3500
    %3504 = vrot.lane.b32.xlu0 %v3502, 16
    %v3505 = vpop.permute.xlu0 %3504
    %v3507 = vadd.f32 %v3497, %v3505
    %v3508 = vtanh.pop %v3507
    %3510 = vrot.lane.b32.xlu0 %v3508, 16
    %v3511 = vpop.permute.xlu0 %3510
    %v3513 = vmul.f32 %v3495, %v3511
    %3515 = vrot.lane.b32.xlu0 %v3513, 96
    %v3516 = vpop.permute.xlu0 %3515
    %v3517 = vsel %vm387, %v3516, 0
    %3519 = vmatprep.subr.mxu0 0.0
    %3520 = vmatpush1.msra.mxu0 %v3310
    %3521 = vmatprep.subr.mxu0 0.0
    %3522 = vmatpush1.msra.mxu0 %v3311
    %3523 = vmatprep.subr.mxu0 0.0
    %3524 = vmatpush1.msra.mxu0 0.0
    %3525 = vmatprep.subr.mxu0 0.0
    %3526 = vmatpush1.msra.mxu0 0.0
    %3527 = vmatprep.subr.mxu0 0.0
    %3528 = vmatpush1.msra.mxu0 0.0
    %3529 = vmatprep.subr.mxu0 0.0
    %3530 = vmatpush1.msra.mxu0 0.0
    %3531 = vmatprep.subr.mxu0 0.0
    %3532 = vmatpush1.msra.mxu0 0.0
    %3533 = vmatprep.subr.mxu0 0.0
    %3534 = vmatpush1.msra.mxu0 0.0
    %3535 = vmatprep.subr.mxu0 0.0
    %3536 = vmatpush1.msra.mxu0 0.0
    %3537 = vmatprep.subr.mxu0 0.0
    %3538 = vmatpush1.msra.mxu0 0.0
    %3539 = vmatprep.subr.mxu0 0.0
    %3540 = vmatpush1.msra.mxu0 0.0
    %3541 = vmatprep.subr.mxu0 0.0
    %3542 = vmatpush1.msra.mxu0 0.0
    %3543 = vmatprep.subr.mxu0 0.0
    %3544 = vmatpush1.msra.mxu0 0.0
    %3545 = vmatprep.subr.mxu0 0.0
    %3546 = vmatpush1.msra.mxu0 0.0
    %3547 = vmatprep.subr.mxu0 0.0
    %3548 = vmatpush1.msra.mxu0 0.0
    %3549 = vmatprep.subr.mxu0 0.0
    %3550 = vmatpush1.msra.mxu0 0.0
    %3551 = vmatprep.subr.mxu0 0.0
    %3552 = vmatpush1.msra.mxu0 0.0
    %3553 = vmatprep.subr.mxu0 0.0
    %3554 = vmatpush1.msra.mxu0 0.0
    %3555 = vmatprep.subr.mxu0 0.0
    %3556 = vmatpush1.msra.mxu0 0.0
    %3557 = vmatprep.subr.mxu0 0.0
    %3558 = vmatpush1.msra.mxu0 0.0
    %3559 = vmatprep.subr.mxu0 0.0
    %3560 = vmatpush1.msra.mxu0 0.0
    %3561 = vmatprep.subr.mxu0 0.0
    %3562 = vmatpush1.msra.mxu0 0.0
    %3563 = vmatprep.subr.mxu0 0.0
    %3564 = vmatpush1.msra.mxu0 0.0
    %3565 = vmatprep.subr.mxu0 0.0
    %3566 = vmatpush1.msra.mxu0 0.0
    %3567 = vmatprep.subr.mxu0 0.0
    %3568 = vmatpush1.msra.mxu0 0.0
    %3569 = vmatprep.subr.mxu0 0.0
    %3570 = vmatpush1.msra.mxu0 0.0
    %3571 = vmatprep.subr.mxu0 0.0
    %3572 = vmatpush1.msra.mxu0 0.0
    %3573 = vmatprep.subr.mxu0 0.0
    %3574 = vmatpush1.msra.mxu0 0.0
    %3575 = vmatprep.subr.mxu0 0.0
    %3576 = vmatpush1.msra.mxu0 0.0
    %3577 = vmatprep.subr.mxu0 0.0
    %3578 = vmatpush1.msra.mxu0 0.0
    %3579 = vmatprep.subr.mxu0 0.0
    %3580 = vmatpush1.msra.mxu0 0.0
    %3581 = vmatprep.subr.mxu0 0.0
    %3582 = vmatpush1.msra.mxu0 0.0
    %3583 = vmatprep.mubr.f32.mxu0 0.0
    %3584 = vmatmul.mubr.f32.gmra.mrb[0].mxu0 %v3517
    %v3585 = vpop.f32.mrb[0].mxu0
    %v3586 = vadd.f32 0.0, %v3585
    %v3587 = vpop.f32.mrb[0].mxu0
    %3588 = vdwg.mxu0
    %v3589 = vadd.f32 %v3287, %v3586
    %v3590 = vxor.u32 %v3589, 2147483648
    %v3591 = vmul.f32 %v3590, 1.442695
    %v3592 = vpow.pop %v3591
    %v3593 = vadd.f32 %v3592, 1.0
    %v3594 = vrcp.pop %v3593
    %v3595 = vmul.f32 1.0, %v3594
    %v3596 = vtanh.pop %v3589
    %v3597 = vmul.f32 %v3595, %v3507
    %3599 = vrot.lane.b32.xlu0 %v3596, 80
    %v3600 = vpop.permute.xlu0 %3599
    %v3602 = vmul.f32 %v3595, %v3600
    %3604 = vrot.lane.b32.xlu0 %v3602, 16
    %v3605 = vpop.permute.xlu0 %3604
    %v3607 = vadd.f32 %v3597, %v3605
    %v3608 = vtanh.pop %v3607
    %3610 = vrot.lane.b32.xlu0 %v3608, 16
    %v3611 = vpop.permute.xlu0 %3610
    %v3613 = vmul.f32 %v3595, %v3611
    %3615 = vrot.lane.b32.xlu0 %v3613, 96
    %v3616 = vpop.permute.xlu0 %3615
    %v3617 = vsel %vm387, %v3616, 0
    %3619 = vmatprep.subr.mxu0 0.0
    %3620 = vmatpush1.msra.mxu0 %v3310
    %3621 = vmatprep.subr.mxu0 0.0
    %3622 = vmatpush1.msra.mxu0 %v3311
    %3623 = vmatprep.subr.mxu0 0.0
    %3624 = vmatpush1.msra.mxu0 0.0
    %3625 = vmatprep.subr.mxu0 0.0
    %3626 = vmatpush1.msra.mxu0 0.0
    %3627 = vmatprep.subr.mxu0 0.0
    %3628 = vmatpush1.msra.mxu0 0.0
    %3629 = vmatprep.subr.mxu0 0.0
    %3630 = vmatpush1.msra.mxu0 0.0
    %3631 = vmatprep.subr.mxu0 0.0
    %3632 = vmatpush1.msra.mxu0 0.0
    %3633 = vmatprep.subr.mxu0 0.0
    %3634 = vmatpush1.msra.mxu0 0.0
    %3635 = vmatprep.subr.mxu0 0.0
    %3636 = vmatpush1.msra.mxu0 0.0
    %3637 = vmatprep.subr.mxu0 0.0
    %3638 = vmatpush1.msra.mxu0 0.0
    %3639 = vmatprep.subr.mxu0 0.0
    %3640 = vmatpush1.msra.mxu0 0.0
    %3641 = vmatprep.subr.mxu0 0.0
    %3642 = vmatpush1.msra.mxu0 0.0
    %3643 = vmatprep.subr.mxu0 0.0
    %3644 = vmatpush1.msra.mxu0 0.0
    %3645 = vmatprep.subr.mxu0 0.0
    %3646 = vmatpush1.msra.mxu0 0.0
    %3647 = vmatprep.subr.mxu0 0.0
    %3648 = vmatpush1.msra.mxu0 0.0
    %3649 = vmatprep.subr.mxu0 0.0
    %3650 = vmatpush1.msra.mxu0 0.0
    %3651 = vmatprep.subr.mxu0 0.0
    %3652 = vmatpush1.msra.mxu0 0.0
    %3653 = vmatprep.subr.mxu0 0.0
    %3654 = vmatpush1.msra.mxu0 0.0
    %3655 = vmatprep.subr.mxu0 0.0
    %3656 = vmatpush1.msra.mxu0 0.0
    %3657 = vmatprep.subr.mxu0 0.0
    %3658 = vmatpush1.msra.mxu0 0.0
    %3659 = vmatprep.subr.mxu0 0.0
    %3660 = vmatpush1.msra.mxu0 0.0
    %3661 = vmatprep.subr.mxu0 0.0
    %3662 = vmatpush1.msra.mxu0 0.0
    %3663 = vmatprep.subr.mxu0 0.0
    %3664 = vmatpush1.msra.mxu0 0.0
    %3665 = vmatprep.subr.mxu0 0.0
    %3666 = vmatpush1.msra.mxu0 0.0
    %3667 = vmatprep.subr.mxu0 0.0
    %3668 = vmatpush1.msra.mxu0 0.0
    %3669 = vmatprep.subr.mxu0 0.0
    %3670 = vmatpush1.msra.mxu0 0.0
    %3671 = vmatprep.subr.mxu0 0.0
    %3672 = vmatpush1.msra.mxu0 0.0
    %3673 = vmatprep.subr.mxu0 0.0
    %3674 = vmatpush1.msra.mxu0 0.0
    %3675 = vmatprep.subr.mxu0 0.0
    %3676 = vmatpush1.msra.mxu0 0.0
    %3677 = vmatprep.subr.mxu0 0.0
    %3678 = vmatpush1.msra.mxu0 0.0
    %3679 = vmatprep.subr.mxu0 0.0
    %3680 = vmatpush1.msra.mxu0 0.0
    %3681 = vmatprep.subr.mxu0 0.0
    %3682 = vmatpush1.msra.mxu0 0.0
    %3683 = vmatprep.mubr.f32.mxu0 0.0
    %3684 = vmatmul.mubr.f32.gmra.mrb[0].mxu0 %v3617
    %v3685 = vpop.f32.mrb[0].mxu0
    %v3686 = vadd.f32 0.0, %v3685
    %v3687 = vpop.f32.mrb[0].mxu0
    %3688 = vdwg.mxu0
    %v3689 = vadd.f32 %v3292, %v3686
    %v3690 = vxor.u32 %v3689, 2147483648
    %v3691 = vmul.f32 %v3690, 1.442695
    %v3692 = vpow.pop %v3691
    %v3693 = vadd.f32 %v3692, 1.0
    %v3694 = vrcp.pop %v3693
    %v3695 = vmul.f32 1.0, %v3694
    %v3696 = vtanh.pop %v3689
    %v3697 = vmul.f32 %v3695, %v3607
    %3699 = vrot.lane.b32.xlu0 %v3696, 80
    %v3700 = vpop.permute.xlu0 %3699
    %v3702 = vmul.f32 %v3695, %v3700
    %3704 = vrot.lane.b32.xlu0 %v3702, 16
    %v3705 = vpop.permute.xlu0 %3704
    %v3707 = vadd.f32 %v3697, %v3705
    %v3708 = vtanh.pop %v3707
    %3710 = vrot.lane.b32.xlu0 %v3708, 16
    %v3711 = vpop.permute.xlu0 %3710
    %v3713 = vmul.f32 %v3695, %v3711
    %3715 = vrot.lane.b32.xlu0 %v3713, 96
    %v3716 = vpop.permute.xlu0 %3715
    %v3717 = vsel %vm387, %v3716, 0
    %3719 = vmatprep.subr.mxu0 0.0
    %3720 = vmatpush1.msra.mxu0 %v3310
    %3721 = vmatprep.subr.mxu0 0.0
    %3722 = vmatpush1.msra.mxu0 %v3311
    %3723 = vmatprep.subr.mxu0 0.0
    %3724 = vmatpush1.msra.mxu0 0.0
    %3725 = vmatprep.subr.mxu0 0.0
    %3726 = vmatpush1.msra.mxu0 0.0
    %3727 = vmatprep.subr.mxu0 0.0
    %3728 = vmatpush1.msra.mxu0 0.0
    %3729 = vmatprep.subr.mxu0 0.0
    %3730 = vmatpush1.msra.mxu0 0.0
    %3731 = vmatprep.subr.mxu0 0.0
    %3732 = vmatpush1.msra.mxu0 0.0
    %3733 = vmatprep.subr.mxu0 0.0
    %3734 = vmatpush1.msra.mxu0 0.0
    %3735 = vmatprep.subr.mxu0 0.0
    %3736 = vmatpush1.msra.mxu0 0.0
    %3737 = vmatprep.subr.mxu0 0.0
    %3738 = vmatpush1.msra.mxu0 0.0
    %3739 = vmatprep.subr.mxu0 0.0
    %3740 = vmatpush1.msra.mxu0 0.0
    %3741 = vmatprep.subr.mxu0 0.0
    %3742 = vmatpush1.msra.mxu0 0.0
    %3743 = vmatprep.subr.mxu0 0.0
    %3744 = vmatpush1.msra.mxu0 0.0
    %3745 = vmatprep.subr.mxu0 0.0
    %3746 = vmatpush1.msra.mxu0 0.0
    %3747 = vmatprep.subr.mxu0 0.0
    %3748 = vmatpush1.msra.mxu0 0.0
    %3749 = vmatprep.subr.mxu0 0.0
    %3750 = vmatpush1.msra.mxu0 0.0
    %3751 = vmatprep.subr.mxu0 0.0
    %3752 = vmatpush1.msra.mxu0 0.0
    %3753 = vmatprep.subr.mxu0 0.0
    %3754 = vmatpush1.msra.mxu0 0.0
    %3755 = vmatprep.subr.mxu0 0.0
    %3756 = vmatpush1.msra.mxu0 0.0
    %3757 = vmatprep.subr.mxu0 0.0
    %3758 = vmatpush1.msra.mxu0 0.0
    %3759 = vmatprep.subr.mxu0 0.0
    %3760 = vmatpush1.msra.mxu0 0.0
    %3761 = vmatprep.subr.mxu0 0.0
    %3762 = vmatpush1.msra.mxu0 0.0
    %3763 = vmatprep.subr.mxu0 0.0
    %3764 = vmatpush1.msra.mxu0 0.0
    %3765 = vmatprep.subr.mxu0 0.0
    %3766 = vmatpush1.msra.mxu0 0.0
    %3767 = vmatprep.subr.mxu0 0.0
    %3768 = vmatpush1.msra.mxu0 0.0
    %3769 = vmatprep.subr.mxu0 0.0
    %3770 = vmatpush1.msra.mxu0 0.0
    %3771 = vmatprep.subr.mxu0 0.0
    %3772 = vmatpush1.msra.mxu0 0.0
    %3773 = vmatprep.subr.mxu0 0.0
    %3774 = vmatpush1.msra.mxu0 0.0
    %3775 = vmatprep.subr.mxu0 0.0
    %3776 = vmatpush1.msra.mxu0 0.0
    %3777 = vmatprep.subr.mxu0 0.0
    %3778 = vmatpush1.msra.mxu0 0.0
    %3779 = vmatprep.subr.mxu0 0.0
    %3780 = vmatpush1.msra.mxu0 0.0
    %3781 = vmatprep.subr.mxu0 0.0
    %3782 = vmatpush1.msra.mxu0 0.0
    %3783 = vmatprep.mubr.f32.mxu0 0.0
    %3784 = vmatmul.mubr.f32.gmra.mrb[0].mxu0 %v3717
    %v3785 = vpop.f32.mrb[0].mxu0
    %v3786 = vadd.f32 0.0, %v3785
    %v3787 = vpop.f32.mrb[0].mxu0
    %3788 = vdwg.mxu0
    %v3789 = vadd.f32 %v3297, %v3786
    %v3790 = vxor.u32 %v3789, 2147483648
    %v3791 = vmul.f32 %v3790, 1.442695
    %v3792 = vpow.pop %v3791
    %v3793 = vadd.f32 %v3792, 1.0
    %v3794 = vrcp.pop %v3793
    %v3795 = vmul.f32 1.0, %v3794
    %v3796 = vtanh.pop %v3789
    %v3797 = vmul.f32 %v3795, %v3707
    %3799 = vrot.lane.b32.xlu0 %v3796, 80
    %v3800 = vpop.permute.xlu0 %3799
    %v3802 = vmul.f32 %v3795, %v3800
    %3804 = vrot.lane.b32.xlu0 %v3802, 16
    %v3805 = vpop.permute.xlu0 %3804
    %v3807 = vadd.f32 %v3797, %v3805
    %v3808 = vtanh.pop %v3807
    %3810 = vrot.lane.b32.xlu0 %v3808, 16
    %v3811 = vpop.permute.xlu0 %3810
    %v3813 = vmul.f32 %v3795, %v3811
    %3815 = vrot.lane.b32.xlu0 %v3813, 96
    %v3816 = vpop.permute.xlu0 %3815
    %v3817 = vsel %vm387, %v3816, 0
    %3819 = vmatprep.subr.mxu0 0.0
    %3820 = vmatpush1.msra.mxu0 %v3310
    %3821 = vmatprep.subr.mxu0 0.0
    %3822 = vmatpush1.msra.mxu0 %v3311
    %3823 = vmatprep.subr.mxu0 0.0
    %3824 = vmatpush1.msra.mxu0 0.0
    %3825 = vmatprep.subr.mxu0 0.0
    %3826 = vmatpush1.msra.mxu0 0.0
    %3827 = vmatprep.subr.mxu0 0.0
    %3828 = vmatpush1.msra.mxu0 0.0
    %3829 = vmatprep.subr.mxu0 0.0
    %3830 = vmatpush1.msra.mxu0 0.0
    %3831 = vmatprep.subr.mxu0 0.0
    %3832 = vmatpush1.msra.mxu0 0.0
    %3833 = vmatprep.subr.mxu0 0.0
    %3834 = vmatpush1.msra.mxu0 0.0
    %3835 = vmatprep.subr.mxu0 0.0
    %3836 = vmatpush1.msra.mxu0 0.0
    %3837 = vmatprep.subr.mxu0 0.0
    %3838 = vmatpush1.msra.mxu0 0.0
    %3839 = vmatprep.subr.mxu0 0.0
    %3840 = vmatpush1.msra.mxu0 0.0
    %3841 = vmatprep.subr.mxu0 0.0
    %3842 = vmatpush1.msra.mxu0 0.0
    %3843 = vmatprep.subr.mxu0 0.0
    %3844 = vmatpush1.msra.mxu0 0.0
    %3845 = vmatprep.subr.mxu0 0.0
    %3846 = vmatpush1.msra.mxu0 0.0
    %3847 = vmatprep.subr.mxu0 0.0
    %3848 = vmatpush1.msra.mxu0 0.0
    %3849 = vmatprep.subr.mxu0 0.0
    %3850 = vmatpush1.msra.mxu0 0.0
    %3851 = vmatprep.subr.mxu0 0.0
    %3852 = vmatpush1.msra.mxu0 0.0
    %3853 = vmatprep.subr.mxu0 0.0
    %3854 = vmatpush1.msra.mxu0 0.0
    %3855 = vmatprep.subr.mxu0 0.0
    %3856 = vmatpush1.msra.mxu0 0.0
    %3857 = vmatprep.subr.mxu0 0.0
    %3858 = vmatpush1.msra.mxu0 0.0
    %3859 = vmatprep.subr.mxu0 0.0
    %3860 = vmatpush1.msra.mxu0 0.0
    %3861 = vmatprep.subr.mxu0 0.0
    %3862 = vmatpush1.msra.mxu0 0.0
    %3863 = vmatprep.subr.mxu0 0.0
    %3864 = vmatpush1.msra.mxu0 0.0
    %3865 = vmatprep.subr.mxu0 0.0
    %3866 = vmatpush1.msra.mxu0 0.0
    %3867 = vmatprep.subr.mxu0 0.0
    %3868 = vmatpush1.msra.mxu0 0.0
    %3869 = vmatprep.subr.mxu0 0.0
    %3870 = vmatpush1.msra.mxu0 0.0
    %3871 = vmatprep.subr.mxu0 0.0
    %3872 = vmatpush1.msra.mxu0 0.0
    %3873 = vmatprep.subr.mxu0 0.0
    %3874 = vmatpush1.msra.mxu0 0.0
    %3875 = vmatprep.subr.mxu0 0.0
    %3876 = vmatpush1.msra.mxu0 0.0
    %3877 = vmatprep.subr.mxu0 0.0
    %3878 = vmatpush1.msra.mxu0 0.0
    %3879 = vmatprep.subr.mxu0 0.0
    %3880 = vmatpush1.msra.mxu0 0.0
    %3881 = vmatprep.subr.mxu0 0.0
    %3882 = vmatpush1.msra.mxu0 0.0
    %3883 = vmatprep.mubr.f32.mxu0 0.0
    %3884 = vmatmul.mubr.f32.gmra.mrb[0].mxu0 %v3817
    %v3885 = vpop.f32.mrb[0].mxu0
    %v3886 = vadd.f32 0.0, %v3885
    %v3887 = vpop.f32.mrb[0].mxu0
    %3888 = vdwg.mxu0
    %v3889 = vadd.f32 %v3302, %v3886
    %v3890 = vxor.u32 %v3889, 2147483648
    %v3891 = vmul.f32 %v3890, 1.442695
    %v3892 = vpow.pop %v3891
    %v3893 = vadd.f32 %v3892, 1.0
    %v3894 = vrcp.pop %v3893
    %v3895 = vmul.f32 1.0, %v3894
    %v3896 = vtanh.pop %v3889
    %v3897 = vmul.f32 %v3895, %v3807
    %3899 = vrot.lane.b32.xlu0 %v3896, 80
    %v3900 = vpop.permute.xlu0 %3899
    %v3902 = vmul.f32 %v3895, %v3900
    %3904 = vrot.lane.b32.xlu0 %v3902, 16
    %v3905 = vpop.permute.xlu0 %3904
    %v3907 = vadd.f32 %v3897, %v3905
    %v3908 = vtanh.pop %v3907
    %3910 = vrot.lane.b32.xlu0 %v3908, 16
    %v3911 = vpop.permute.xlu0 %3910
    %v3913 = vmul.f32 %v3895, %v3911
    %3915 = vrot.lane.b32.xlu0 %v3513, 112
    %v3916 = vpop.permute.xlu0 %3915
    %3918 = vrot.lane.b32.xlu0 %v3713, 16
    %v3919 = vpop.permute.xlu0 %3918
    %3921 = vrot.lane.b32.xlu0 %v3813, 32
    %v3922 = vpop.permute.xlu0 %3921
    %3925 = vrot.lane.b32.xlu0 %v3913, 48
    %v3926 = vpop.permute.xlu0 %3925
    %v3928 = vsel %vm387, %v3416, %v3916
    %vm3929 = vcmask 261120
    %v3930 = vsel %vm3929, %v3928, %v3613
    %vm3931 = vcmask 392192
    %v3932 = vsel %vm3931, %v3930, %v3919
    %vm3933 = vcmask 523264
    %v3934 = vsel %vm3933, %v3932, %v3922
    %vm3935 = vcmask 654336
    %v3936 = vsel %vm3935, %v3934, %v3926
    %v3937 = vld [vmem:[%s9] sm:$0xff]
    %v3938 = vld [vmem:[%s9 + $0x8] sm:$0xff]
    %v3939 = vld [vmem:[%s9 + $0x10] sm:$0xff]
    %v3940 = vld [vmem:[%s9 + $0x18] sm:$0xff]
    %v3941 = vld [vmem:[%s9 + $0x20] sm:$0xff]
    %v3942 = vld [vmem:[%s9 + $0x28] sm:$0xff]
    %v3943 = vld [vmem:[%s9 + $0x30] sm:$0xff]
    %v3944 = vld [vmem:[%s9 + $0x38] sm:$0xff]
    %v3945 = vld [vmem:[%s9 + $0x40] sm:$0xff]
    %v3946 = vld [vmem:[%s9 + $0x48] sm:$0xff]
    %v3947 = vld [vmem:[%s9 + $0x50] sm:$0xff]
    %v3948 = vld [vmem:[%s9 + $0x58] sm:$0xff]
    %v3949 = vld [vmem:[%s10] sm:$0x1]
    %v3951 = vlaneseq
    %v3952 = vshrl.u32 %v3951, 7
    %v3953 = vsub.s32 0, %v3952
    %v3954 = vrot.slane %v3949, %v3953
    %vm3956 = vcmask 785408
    %v3958 = vsel %vm3956, %v3936, 0
    %3960 = vmatprep.subr.mxu0 0.0
    %3961 = vmatpush1.msra.mxu0 %v3937
    %3962 = vmatprep.subr.mxu0 0.0
    %3963 = vmatpush1.msra.mxu0 %v3938
    %3964 = vmatprep.subr.mxu0 0.0
    %3965 = vmatpush1.msra.mxu0 %v3939
    %3966 = vmatprep.subr.mxu0 0.0
    %3967 = vmatpush1.msra.mxu0 %v3940
    %3968 = vmatprep.subr.mxu0 0.0
    %3969 = vmatpush1.msra.mxu0 %v3941
    %3970 = vmatprep.subr.mxu0 0.0
    %3971 = vmatpush1.msra.mxu0 %v3942
    %3972 = vmatprep.subr.mxu0 0.0
    %3973 = vmatpush1.msra.mxu0 %v3943
    %3974 = vmatprep.subr.mxu0 0.0
    %3975 = vmatpush1.msra.mxu0 %v3944
    %3976 = vmatprep.subr.mxu0 0.0
    %3977 = vmatpush1.msra.mxu0 %v3945
    %3978 = vmatprep.subr.mxu0 0.0
    %3979 = vmatpush1.msra.mxu0 %v3946
    %3980 = vmatprep.subr.mxu0 0.0
    %3981 = vmatpush1.msra.mxu0 %v3947
    %3982 = vmatprep.subr.mxu0 0.0
    %3983 = vmatpush1.msra.mxu0 %v3948
    %3984 = vmatprep.subr.mxu0 0.0
    %3985 = vmatpush1.msra.mxu0 0.0
    %3986 = vmatprep.subr.mxu0 0.0
    %3987 = vmatpush1.msra.mxu0 0.0
    %3988 = vmatprep.subr.mxu0 0.0
    %3989 = vmatpush1.msra.mxu0 0.0
    %3990 = vmatprep.subr.mxu0 0.0
    %3991 = vmatpush1.msra.mxu0 0.0
    %3992 = vmatprep.subr.mxu0 0.0
    %3993 = vmatpush1.msra.mxu0 0.0
    %3994 = vmatprep.subr.mxu0 0.0
    %3995 = vmatpush1.msra.mxu0 0.0
    %3996 = vmatprep.subr.mxu0 0.0
    %3997 = vmatpush1.msra.mxu0 0.0
    %3998 = vmatprep.subr.mxu0 0.0
    %3999 = vmatpush1.msra.mxu0 0.0
    %4000 = vmatprep.subr.mxu0 0.0
    %4001 = vmatpush1.msra.mxu0 0.0
    %4002 = vmatprep.subr.mxu0 0.0
    %4003 = vmatpush1.msra.mxu0 0.0
    %4004 = vmatprep.subr.mxu0 0.0
    %4005 = vmatpush1.msra.mxu0 0.0
    %4006 = vmatprep.subr.mxu0 0.0
    %4007 = vmatpush1.msra.mxu0 0.0
    %4008 = vmatprep.subr.mxu0 0.0
    %4009 = vmatpush1.msra.mxu0 0.0
    %4010 = vmatprep.subr.mxu0 0.0
    %4011 = vmatpush1.msra.mxu0 0.0
    %4012 = vmatprep.subr.mxu0 0.0
    %4013 = vmatpush1.msra.mxu0 0.0
    %4014 = vmatprep.subr.mxu0 0.0
    %4015 = vmatpush1.msra.mxu0 0.0
    %4016 = vmatprep.subr.mxu0 0.0
    %4017 = vmatpush1.msra.mxu0 0.0
    %4018 = vmatprep.subr.mxu0 0.0
    %4019 = vmatpush1.msra.mxu0 0.0
    %4020 = vmatprep.subr.mxu0 0.0
    %4021 = vmatpush1.msra.mxu0 0.0
    %4022 = vmatprep.subr.mxu0 0.0
    %4023 = vmatpush1.msra.mxu0 0.0
    %4024 = vmatprep.mubr.f32.mxu0 0.0
    %4025 = vmatmul.mubr.f32.gmra.mrb[0].mxu0 %v3958
    %v4026 = vpop.f32.mrb[0].mxu0
    %v4027 = vadd.f32 %v3954, %v4026
    %v4028 = vpop.f32.mrb[0].mxu0
    %4029 = vdwg.mxu0
    %v4030 = vmax.f32 %v4027, 0.0
    %v4031 = vld [vmem:[%s11] sm:$0xff]
    %v4032 = vld [vmem:[%s11 + $0x8] sm:$0xff]
    %v4033 = vld [vmem:[%s11 + $0x10] sm:$0xf]
    %v4034 = vld [vmem:[%s12] sm:$0x1]
    %v4036 = vlaneseq
    %v4037 = vshrl.u32 %v4036, 7
    %v4038 = vsub.s32 0, %v4037
    %v4039 = vrot.slane %v4034, %v4038
    %vm4041 = vcmask 162816
    %v4043 = vsel %vm4041, %v4030, 0
    %v4046 = vsel %vm232, %v4033, 0
    %4048 = vmatprep.subr.mxu0 0.0
    %4049 = vmatpush1.msra.mxu0 %v4031
    %4050 = vmatprep.subr.mxu0 0.0
    %4051 = vmatpush1.msra.mxu0 %v4032
    %4052 = vmatprep.subr.mxu0 0.0
    %4053 = vmatpush1.msra.mxu0 %v4046
    %4054 = vmatprep.subr.mxu0 0.0
    %4055 = vmatpush1.msra.mxu0 0.0
    %4056 = vmatprep.subr.mxu0 0.0
    %4057 = vmatpush1.msra.mxu0 0.0
    %4058 = vmatprep.subr.mxu0 0.0
    %4059 = vmatpush1.msra.mxu0 0.0
    %4060 = vmatprep.subr.mxu0 0.0
    %4061 = vmatpush1.msra.mxu0 0.0
    %4062 = vmatprep.subr.mxu0 0.0
    %4063 = vmatpush1.msra.mxu0 0.0
    %4064 = vmatprep.subr.mxu0 0.0
    %4065 = vmatpush1.msra.mxu0 0.0
    %4066 = vmatprep.subr.mxu0 0.0
    %4067 = vmatpush1.msra.mxu0 0.0
    %4068 = vmatprep.subr.mxu0 0.0
    %4069 = vmatpush1.msra.mxu0 0.0
    %4070 = vmatprep.subr.mxu0 0.0
    %4071 = vmatpush1.msra.mxu0 0.0
    %4072 = vmatprep.subr.mxu0 0.0
    %4073 = vmatpush1.msra.mxu0 0.0
    %4074 = vmatprep.subr.mxu0 0.0
    %4075 = vmatpush1.msra.mxu0 0.0
    %4076 = vmatprep.subr.mxu0 0.0
    %4077 = vmatpush1.msra.mxu0 0.0
    %4078 = vmatprep.subr.mxu0 0.0
    %4079 = vmatpush1.msra.mxu0 0.0
    %4080 = vmatprep.subr.mxu0 0.0
    %4081 = vmatpush1.msra.mxu0 0.0
    %4082 = vmatprep.subr.mxu0 0.0
    %4083 = vmatpush1.msra.mxu0 0.0
    %4084 = vmatprep.subr.mxu0 0.0
    %4085 = vmatpush1.msra.mxu0 0.0
    %4086 = vmatprep.subr.mxu0 0.0
    %4087 = vmatpush1.msra.mxu0 0.0
    %4088 = vmatprep.subr.mxu0 0.0
    %4089 = vmatpush1.msra.mxu0 0.0
    %4090 = vmatprep.subr.mxu0 0.0
    %4091 = vmatpush1.msra.mxu0 0.0
    %4092 = vmatprep.subr.mxu0 0.0
    %4093 = vmatpush1.msra.mxu0 0.0
    %4094 = vmatprep.subr.mxu0 0.0
    %4095 = vmatpush1.msra.mxu0 0.0
    %4096 = vmatprep.subr.mxu0 0.0
    %4097 = vmatpush1.msra.mxu0 0.0
    %4098 = vmatprep.subr.mxu0 0.0
    %4099 = vmatpush1.msra.mxu0 0.0
    %4100 = vmatprep.subr.mxu0 0.0
    %4101 = vmatpush1.msra.mxu0 0.0
    %4102 = vmatprep.subr.mxu0 0.0
    %4103 = vmatpush1.msra.mxu0 0.0
    %4104 = vmatprep.subr.mxu0 0.0
    %4105 = vmatpush1.msra.mxu0 0.0
    %4106 = vmatprep.subr.mxu0 0.0
    %4107 = vmatpush1.msra.mxu0 0.0
    %4108 = vmatprep.subr.mxu0 0.0
    %4109 = vmatpush1.msra.mxu0 0.0
    %4110 = vmatprep.subr.mxu0 0.0
    %4111 = vmatpush1.msra.mxu0 0.0
    %4112 = vmatprep.mubr.f32.mxu0 0.0
    %4113 = vmatmul.mubr.f32.gmra.mrb[0].mxu0 %v4043
    %v4114 = vpop.f32.mrb[0].mxu0
    %v4115 = vadd.f32 %v4039, %v4114
    %v4116 = vpop.f32.mrb[0].mxu0
    %4117 = vdwg.mxu0
    %v4118 = vmax.f32 %v4115, 0.0
    %vm4119 = vcmask 39936
    %4120 = vst.msk [vmem:[%s13] sm:$0xff] %vm4119, %v4118
    // Predicated region
    $region58: #{model_forward.1} parent=1 // pred_check
      _
    $region59: #{model_forward.1} parent=1 // pred_check_branch
      %4122 = sbr.rel (0) target = $region61
    $region60: #{model_forward.1} parent=1 // pred_region
      _
    $region61: #{model_forward.1} parent=1 // pred_fallthru
      _
    // Predicated region
    $region62: #{model_forward.1} parent=1 // pred_check
      _
    $region63: #{model_forward.1} parent=1 // pred_check_branch
      %4124 = sbr.rel (0) target = $region65
    $region64: #{model_forward.1} parent=1 // pred_region
      _
    $region65: #{model_forward.1} parent=1 // pred_fallthru
      _
    %4125 = vsyncpa [#allocation3], 1

</llo_original>
